<compile_context>
chip_gen: v6e
topology: v6e:2x2x1
jax: 0.10.0
libtpu: 0.0.40
codegen_flags: <defaults>
</compile_context>

<pallas_src>
import numpy as np
import jax
import jax.numpy as jnp
from jax import lax
from jax.experimental import pallas as pl
from jax.experimental.pallas import tpu as pltpu

# ----------------------------- model config (small) -------------------------
IMG = 16          # image size (module default 224 -> scaled down)
PATCH = 8         # DINO ViT-S/8 patch size
IN_CH = 3         # RGB
EMBED = 32        # embed dim (real model: 384) -> scaled down
DEPTH = 2         # transformer blocks (real model: 12)
HEADS = 2         # heads in backbone attention (real model: 6)
MLP_RATIO = 4
HID = MLP_RATIO * EMBED                # 128 -> lane-dense hidden dim
CLASS_NUM = 2
N_PATCH = (IMG // PATCH) ** 2          # 4
SEQ = N_PATCH + 1                      # 5 tokens per image (cls + patches)
HEAD_DIM = EMBED // HEADS              # 16
PATCH_K = IN_CH * PATCH * PATCH        # 192
LN_EPS = 1e-6                          # DINO/timm ViT LayerNorm eps


# ----------------------------- in-kernel math helpers ------------------------
def _layer_norm(x, g, b):
    mu = jnp.mean(x, axis=-1, keepdims=True)
    var = jnp.mean(jnp.square(x - mu), axis=-1, keepdims=True)
    return (x - mu) * lax.rsqrt(var + LN_EPS) * g + b


def _erf(x):
    # Abramowitz & Stegun 7.1.26 rational approximation, |err| < 1.5e-7.
    p = 0.3275911
    a1, a2, a3, a4, a5 = (0.254829592, -0.284496736, 1.421413741,
                          -1.453152027, 1.061405429)
    ax = jnp.abs(x)
    t = 1.0 / (1.0 + p * ax)
    poly = ((((a5 * t + a4) * t + a3) * t + a2) * t + a1) * t
    y = 1.0 - poly * jnp.exp(-ax * ax)
    return jnp.where(x >= 0.0, y, -y)


def _gelu_exact(x):
    return 0.5 * x * (1.0 + _erf(x * 0.7071067811865476))


def _softmax_lastdim(s):
    s = s - jnp.max(s, axis=-1, keepdims=True)
    e = jnp.exp(s)
    return e * pl.reciprocal(jnp.sum(e, axis=-1, keepdims=True), approx=True)


# ----------------------------- fully fused kernel ----------------------------
def _vit_kernel(patches_ref, scat_ref, sel_ref, amask_ref, pw_ref, emb_ref,
                qkvw_ref, qkvb_ref, projw_ref, fc1w_ref, fc1b_ref, fc2w_ref,
                vecs_ref, fnorm_ref, hw_ref, hb_ref, mw_ref, mb_ref,
                attn_ref, logit_ref):
    """One batch sample per grid step: all S images' tokens are batched into a
    single (S*SEQ, EMBED) activation; per-image attention is enforced with a
    block-diagonal additive mask. The MultiheadAttention head + classifier run
    in the same step on the freshly-computed CLS features (never leave VMEM).
    """
    tok = emb_ref.shape[0]                                  # S * SEQ

    # Patch embed (one matmul over all patch rows of all images), then place
    # patch rows into token slots with a 0/1 scatter matmul; emb carries
    # cls_token + pos_embed (+ patch bias) folded into one additive constant.
    pe = jnp.dot(patches_ref[0], pw_ref[...],
                 preferred_element_type=jnp.float32)        # (S*N_PATCH, E)
    x = jnp.dot(scat_ref[...], pe,
                preferred_element_type=jnp.float32) + emb_ref[...]   # (tok, E)

    # Hoisted constants (not re-built per depth/head iteration).
    col = lax.broadcasted_iota(jnp.int32, (1, EMBED), 1)
    head_masks = [(col >= hd * HEAD_DIM) & (col < (hd + 1) * HEAD_DIM)
                  for hd in range(HEADS)]
    amask = amask_ref[...]                                  # block-diag, 0/-1e30
    scale = HEAD_DIM ** -0.5

    # vecs rows per depth: 0 ln1_g, 1 ln1_b, 2 proj_b, 3 ln2_g, 4 ln2_b, 5 fc2_b
    for d in range(DEPTH):                                  # static unroll
        # --- attention branch (pre-norm) ---
        h = _layer_norm(x, vecs_ref[d, 0], vecs_ref[d, 1])
        q = jnp.dot(h, qkvw_ref[d, 0],
                    preferred_element_type=jnp.float32) + qkvb_ref[d, 0]
        k = jnp.dot(h, qkvw_ref[d, 1],
                    preferred_element_type=jnp.float32) + qkvb_ref[d, 1]
        v = jnp.dot(h, qkvw_ref[d, 2],
                    preferred_element_type=jnp.float32) + qkvb_ref[d, 2]
        attn = jnp.zeros((tok, EMBED), jnp.float32)
        for msk in head_masks:
            # Head folding via lane masks: masked q contracts only that head's
            # dims of k; P @ masked(v) lands the head output in its own lanes.
            qh = jnp.where(msk, q, 0.0)
            vh = jnp.where(msk, v, 0.0)
            s = lax.dot_general(qh, k, (((1,), (1,)), ((), ())),
                                preferred_element_type=jnp.float32)
            s = s * scale + amask                           # block-diag mask
            p = _softmax_lastdim(s)
            attn = attn + jnp.dot(p, vh, preferred_element_type=jnp.float32)
        x = x + jnp.dot(attn, projw_ref[d],
                        preferred_element_type=jnp.float32) + vecs_ref[d, 2]

        # --- MLP branch (pre-norm), GELU fused after FC1 ---
        h = _layer_norm(x, vecs_ref[d, 3], vecs_ref[d, 4])
        h = jnp.dot(h, fc1w_ref[d],
                    preferred_element_type=jnp.float32) + fc1b_ref[d]
        h = _gelu_exact(h)
        x = x + jnp.dot(h, fc2w_ref[d],
                        preferred_element_type=jnp.float32) + vecs_ref[d, 5]

    # Gather the S CLS rows (selection matmul), then final LN (row-wise).
    feats = jnp.dot(sel_ref[...], x, preferred_element_type=jnp.float32)
    feats = _layer_norm(feats, fnorm_ref[0], fnorm_ref[1])   # (S, EMBED)

    # --- torch.nn.MultiheadAttention(1 head) + out_proj + classifier ---
    q = jnp.dot(feats[0:1, :], hw_ref[0],
                preferred_element_type=jnp.float32) + hb_ref[0]   # first element
    k = jnp.dot(feats, hw_ref[1], preferred_element_type=jnp.float32) + hb_ref[1]
    v = jnp.dot(feats, hw_ref[2], preferred_element_type=jnp.float32) + hb_ref[2]
    s = lax.dot_general(q, k, (((1,), (1,)), ((), ())),
                        preferred_element_type=jnp.float32) * (EMBED ** -0.5)
    p = _softmax_lastdim(s)
    o = jnp.dot(p, v, preferred_element_type=jnp.float32)
    o = jnp.dot(o, hw_ref[3], preferred_element_type=jnp.float32) + hb_ref[3]
    attn_ref[0] = o
    logit_ref[0] = (jnp.dot(o, mw_ref[...], preferred_element_type=jnp.float32)
                    + mb_ref[...])


def _full(shape):
    zeros = (0,) * len(shape)
    return pl.BlockSpec(shape, lambda b, _z=zeros: _z)


def _fused_call(patches, prepped, B, S):
    bp, hp = prepped["backbone"], prepped["head"]
    TOK = S * SEQ
    in_specs = [
        pl.BlockSpec((1, S * N_PATCH, PATCH_K), lambda b: (b, 0, 0)),
        _full((TOK, S * N_PATCH)),          # scatter
        _full((S, TOK)),                    # CLS selection
        _full((TOK, TOK)),                  # block-diag additive mask
        _full((PATCH_K, EMBED)),            # patch-embed weight
        _full((TOK, EMBED)),                # folded cls/pos/bias
        _full((DEPTH, 3, EMBED, EMBED)),    # qkv weights
        _full((DEPTH, 3, 1, EMBED)),        # qkv biases
        _full((DEPTH, EMBED, EMBED)),       # proj weights
        _full((DEPTH, EMBED, HID)),         # fc1 weights
        _full((DEPTH, 1, HID)),             # fc1 bias
        _full((DEPTH, HID, EMBED)),         # fc2 weights
        _full((DEPTH, 6, 1, EMBED)),        # ln1_g, ln1_b, proj_b, ln2_g, ln2_b, fc2_b
        _full((2, 1, EMBED)),               # final norm g/b
        _full((4, EMBED, EMBED)),           # head q/k/v/out weights
        _full((4, 1, EMBED)),               # head q/k/v/out biases
        _full((EMBED, CLASS_NUM)),          # classifier weight
        _full((1, CLASS_NUM)),              # classifier bias
    ]
    attn3, logit3 = pl.pallas_call(
        _vit_kernel,
        out_shape=(jax.ShapeDtypeStruct((B, 1, EMBED), jnp.float32),
                   jax.ShapeDtypeStruct((B, 1, CLASS_NUM), jnp.float32)),
        grid=(B,),
        in_specs=in_specs,
        out_specs=(pl.BlockSpec((1, 1, EMBED), lambda b: (b, 0, 0)),
                   pl.BlockSpec((1, 1, CLASS_NUM), lambda b: (b, 0, 0))),
        compiler_params=pltpu.CompilerParams(
            dimension_semantics=("parallel",)),   # 2 steps -> both v7x TCs
    )(patches, bp["scat"], bp["sel"], bp["amask"], bp["patch_w_t"], bp["emb"],
      bp["qkv_w"], bp["qkv_b"], bp["proj_w"], bp["fc1_w"], bp["fc1_b"],
      bp["fc2_w"], bp["vecs"], bp["fnorm"],
      hp["w"], hp["b"], hp["mlp_w"], hp["mlp_b"])
    return attn3, logit3


# ----------------------------- parameter init (torch layouts) ----------------
def init_params(key):
    keys = iter(jax.random.split(key, 256))

    def nrm(shape, std=0.02):
        return (std * jax.random.normal(next(keys), shape)).astype(jnp.float32)

    def zeros(shape):
        return jnp.zeros(shape, jnp.float32)

    def ones(shape):
        return jnp.ones(shape, jnp.float32)

    blocks = []
    for _ in range(DEPTH):
        blocks.append(dict(
            n1g=ones((EMBED,)), n1b=zeros((EMBED,)),
            qkv_w=nrm((3 * EMBED, EMBED)), qkv_b=zeros((3 * EMBED,)),
            proj_w=nrm((EMBED, EMBED)), proj_b=zeros((EMBED,)),
            n2g=ones((EMBED,)), n2b=zeros((EMBED,)),
            fc1_w=nrm((HID, EMBED)), fc1_b=zeros((HID,)),
            fc2_w=nrm((EMBED, HID)), fc2_b=zeros((EMBED,)),
        ))

    backbone = dict(
        patch_w=nrm((EMBED, IN_CH, PATCH, PATCH)),
        patch_b=zeros((EMBED,)),
        cls_token=nrm((1, 1, EMBED)),
        pos_embed=nrm((1, SEQ, EMBED)),
        blocks=blocks,
        norm_g=ones((EMBED,)), norm_b=zeros((EMBED,)),
    )

    head = dict(
        in_proj_w=nrm((3 * EMBED, EMBED)), in_proj_b=zeros((3 * EMBED,)),
        out_w=nrm((EMBED, EMBED)), out_b=zeros((EMBED,)),
        mlp_w=nrm((CLASS_NUM, EMBED)), mlp_b=zeros((CLASS_NUM,)),
    )
    return dict(backbone=backbone, head=head)


def prepare_params(params, images_per_sample):
    """One-time re-layout (outside jit): (in,out) weights, depth-stacked and
    consolidated inputs, cls/pos/patch-bias folded, scatter/select/mask
    geometry matrices precomputed with numpy."""
    bb = params["backbone"]
    hp = params["head"]
    S = images_per_sample
    TOK = S * SEQ
    blocks = bb["blocks"]

    def stack(name):
        return jnp.stack([blk[name] for blk in blocks])

    qkv_w = stack("qkv_w").reshape(DEPTH, 3, EMBED, EMBED)     # torch (out,in)
    qkv_w = jnp.swapaxes(qkv_w, 2, 3)                          # -> (in,out)
    qkv_b = stack("qkv_b").reshape(DEPTH, 3, 1, EMBED)

    proj_w = jnp.swapaxes(stack("proj_w"), 1, 2)
    fc1_w = jnp.swapaxes(stack("fc1_w"), 1, 2)
    fc1_b = stack("fc1_b").reshape(DEPTH, 1, HID)
    fc2_w = jnp.swapaxes(stack("fc2_w"), 1, 2)

    vecs = jnp.stack([stack("n1g"), stack("n1b"), stack("proj_b"),
                      stack("n2g"), stack("n2b"), stack("fc2_b")], axis=1)
    vecs = vecs.reshape(DEPTH, 6, 1, EMBED)
    fnorm = jnp.stack([bb["norm_g"], bb["norm_b"]]).reshape(2, 1, EMBED)

    # Per-image additive constant: row 0 = cls_token + pos[0],
    # rows 1..N_PATCH = pos[1:] + patch bias; tiled over the S images.
    emb_img = bb["pos_embed"][0] + jnp.concatenate(
        [bb["cls_token"][0, 0][None, :],
         jnp.broadcast_to(bb["patch_b"][None, :], (N_PATCH, EMBED))], axis=0)
    emb = jnp.tile(emb_img, (S, 1))                            # (TOK, EMBED)

    # Geometry matrices (constants, built with numpy once).
    scat = np.zeros((TOK, S * N_PATCH), np.float32)
    for s in range(S):
        for p in range(N_PATCH):
            scat[s * SEQ + 1 + p, s * N_PATCH + p] = 1.0
    sel = np.zeros((S, TOK), np.float32)
    sel[np.arange(S), np.arange(S) * SEQ] = 1.0
    img_id = np.repeat(np.arange(S), SEQ)
    amask = np.where(img_id[:, None] == img_id[None, :], 0.0, -1e30)
    amask = amask.astype(np.float32)

    backbone = dict(
        patch_w_t=bb["patch_w"].reshape(EMBED, PATCH_K).T,     # (K, EMBED)
        emb=emb,
        scat=jnp.asarray(scat), sel=jnp.asarray(sel), amask=jnp.asarray(amask),
        qkv_w=qkv_w, qkv_b=qkv_b, proj_w=proj_w,
        fc1_w=fc1_w, fc1_b=fc1_b, fc2_w=fc2_w,
        vecs=vecs, fnorm=fnorm,
    )

    wq, wk, wv = jnp.split(hp["in_proj_w"], 3, axis=0)
    bq, bk, bv = jnp.split(hp["in_proj_b"], 3)
    head = dict(
        w=jnp.stack([wq.T, wk.T, wv.T, hp["out_w"].T]),        # (4, E, E)
        b=jnp.stack([bq, bk, bv, hp["out_b"]]).reshape(4, 1, EMBED),
        mlp_w=hp["mlp_w"].T, mlp_b=hp["mlp_b"][None, :],
    )
    return dict(backbone=backbone, head=head)


# ----------------------------- model forward ---------------------------------
@jax.jit
def vitdino_forward(input_tensor, prepped):
    B, S = input_tensor.shape[0], input_tensor.shape[1]
    assert S * SEQ == prepped["backbone"]["emb"].shape[0]
    x = input_tensor.reshape(-1, IN_CH, IMG, IMG)              # view(-1, 3, H, W)
    M = x.shape[0]
    nH = nW = IMG // PATCH
    # Conv2d(stride=kernel=PATCH) == patch extraction + matmul (matmul in-kernel)
    patches = x.reshape(M, IN_CH, nH, PATCH, nW, PATCH)
    patches = patches.transpose(0, 2, 4, 1, 3, 5).reshape(B, S * N_PATCH, PATCH_K)

    attn3, logit3 = _fused_call(patches, prepped, B, S)
    return logit3.reshape(B, CLASS_NUM), attn3.reshape(B, EMBED)


# ----------------------------- pure-JAX reference (for tolerance check) ------
def _reference_forward(input_tensor, params):
    bb, hp = params["backbone"], params["head"]
    B, S = input_tensor.shape[:2]
    x = input_tensor.reshape(-1, IN_CH, IMG, IMG)
    M = x.shape[0]
    nH = nW = IMG // PATCH
    patches = x.reshape(M, IN_CH, nH, PATCH, nW, PATCH)
    patches = patches.transpose(0, 2, 4, 1, 3, 5).reshape(M, N_PATCH, PATCH_K)
    w = bb["patch_w"].reshape(EMBED, PATCH_K)
    pe = patches @ w.T + bb["patch_b"]
    cls = jnp.broadcast_to(bb["cls_token"], (M, 1, EMBED))
    t = jnp.concatenate([cls, pe], axis=1) + bb["pos_embed"]

    def ln(v, g, b):
        mu = v.mean(-1, keepdims=True)
        var = ((v - mu) ** 2).mean(-1, keepdims=True)
        return (v - mu) / jnp.sqrt(var + LN_EPS) * g + b

    for blk in bb["blocks"]:
        h = ln(t, blk["n1g"], blk["n1b"])
        qkv = h @ blk["qkv_w"].T + blk["qkv_b"]
        q, k, v = jnp.split(qkv, 3, axis=-1)
        q = q.reshape(M, SEQ, HEADS, HEAD_DIM).transpose(0, 2, 1, 3)
        k = k.reshape(M, SEQ, HEADS, HEAD_DIM).transpose(0, 2, 1, 3)
        v = v.reshape(M, SEQ, HEADS, HEAD_DIM).transpose(0, 2, 1, 3)
        s = jnp.einsum("mhqd,mhkd->mhqk", q, k) * (HEAD_DIM ** -0.5)
        p = jax.nn.softmax(s, axis=-1)
        o = jnp.einsum("mhqk,mhkd->mhqd", p, v).transpose(0, 2, 1, 3)
        o = o.reshape(M, SEQ, EMBED)
        t = t + o @ blk["proj_w"].T + blk["proj_b"]
        h = ln(t, blk["n2g"], blk["n2b"])
        h = h @ blk["fc1_w"].T + blk["fc1_b"]
        h = 0.5 * h * (1.0 + jax.scipy.special.erf(h / jnp.sqrt(2.0)))
        t = t + h @ blk["fc2_w"].T + blk["fc2_b"]

    t = ln(t, bb["norm_g"], bb["norm_b"])
    feats = t[:, 0, :].reshape(B, S, EMBED)
    first = feats[:, 0:1, :]
    wq, wk, wv = jnp.split(hp["in_proj_w"], 3, axis=0)
    bq, bk, bv = jnp.split(hp["in_proj_b"], 3)
    q = first @ wq.T + bq
    k = feats @ wk.T + bk
    v = feats @ wv.T + bv
    s = jnp.einsum("bqe,bke->bqk", q, k) * (EMBED ** -0.5)
    p = jax.nn.softmax(s, axis=-1)
    o = jnp.einsum("bqk,bke->bqe", p, v)
    o = (o @ hp["out_w"].T + hp["out_b"])[:, 0, :]
    logits = o @ hp["mlp_w"].T + hp["mlp_b"]
    return logits, o


# ----------------------------- main ------------------------------------------
if __name__ == "__main__":
    key = jax.random.PRNGKey(0)
    k_in, k_par = jax.random.split(key)

    B, S = 2, 3  # batch of 2 samples, 3 images per sample
    input_tensor = jax.random.normal(k_in, (B, S, IN_CH, IMG, IMG),
                                     dtype=jnp.float32)

    params = init_params(k_par)
    prepped = prepare_params(params, images_per_sample=S)   # one-time re-layout

    logits, attn_features = vitdino_forward(input_tensor, prepped)
    jax.block_until_ready((logits, attn_features))

    assert logits.shape == (B, CLASS_NUM), logits.shape
    assert attn_features.shape == (B, EMBED), attn_features.shape
    assert logits.dtype == jnp.float32 and attn_features.dtype == jnp.float32

    # Tolerance check against a pure-JAX reference (approx reciprocal + erf
    # polynomial make the kernel ~1e-4-level different, not bit-exact).
    ref_logits, ref_attn = _reference_forward(input_tensor, params)
    np.testing.assert_allclose(np.asarray(logits), np.asarray(ref_logits),
                               rtol=2e-2, atol=2e-2)
    np.testing.assert_allclose(np.asarray(attn_features), np.asarray(ref_attn),
                               rtol=2e-2, atol=2e-2)

    print("KERNEL_OK")
</pallas_src>

<mosaic_0001>
module attributes {stable_mosaic.version = 11 : i64} {
  func.func @_vit_kernel(%arg0: i32, %arg1: memref<1x12x192xf32, #tpu.memory_space<vmem>>, %arg2: memref<15x12xf32, #tpu.memory_space<vmem>>, %arg3: memref<3x15xf32, #tpu.memory_space<vmem>>, %arg4: memref<15x15xf32, #tpu.memory_space<vmem>>, %arg5: memref<192x32xf32, #tpu.memory_space<vmem>>, %arg6: memref<15x32xf32, #tpu.memory_space<vmem>>, %arg7: memref<2x3x32x32xf32, #tpu.memory_space<vmem>>, %arg8: memref<2x3x1x32xf32, #tpu.memory_space<vmem>>, %arg9: memref<2x32x32xf32, #tpu.memory_space<vmem>>, %arg10: memref<2x32x128xf32, #tpu.memory_space<vmem>>, %arg11: memref<2x1x128xf32, #tpu.memory_space<vmem>>, %arg12: memref<2x128x32xf32, #tpu.memory_space<vmem>>, %arg13: memref<2x6x1x32xf32, #tpu.memory_space<vmem>>, %arg14: memref<2x1x32xf32, #tpu.memory_space<vmem>>, %arg15: memref<4x32x32xf32, #tpu.memory_space<vmem>>, %arg16: memref<4x1x32xf32, #tpu.memory_space<vmem>>, %arg17: memref<32x2xf32, #tpu.memory_space<vmem>>, %arg18: memref<1x2xf32, #tpu.memory_space<vmem>>, %arg19: memref<1x1x32xf32, #tpu.memory_space<vmem>>, %arg20: memref<1x1x2xf32, #tpu.memory_space<vmem>>) attributes {dimension_semantics = [#tpu.dimension_semantics<parallel>], iteration_bounds = array<i64: 2>, scalar_prefetch = 0 : i64, scratch_operands = 0 : i64, tpu.core_type = #tpu.core_type<tc>, window_params = [{transform_indices = @transform_0, window_bounds = array<i64: 1, 12, 192>}, {pipeline_mode = #tpu.pipeline_mode<synchronous>, transform_indices = @transform_1, window_bounds = array<i64: 15, 12>}, {pipeline_mode = #tpu.pipeline_mode<synchronous>, transform_indices = @transform_2, window_bounds = array<i64: 3, 15>}, {pipeline_mode = #tpu.pipeline_mode<synchronous>, transform_indices = @transform_3, window_bounds = array<i64: 15, 15>}, {pipeline_mode = #tpu.pipeline_mode<synchronous>, transform_indices = @transform_4, window_bounds = array<i64: 192, 32>}, {pipeline_mode = #tpu.pipeline_mode<synchronous>, transform_indices = @transform_5, window_bounds = array<i64: 15, 32>}, {pipeline_mode = #tpu.pipeline_mode<synchronous>, transform_indices = @transform_6, window_bounds = array<i64: 2, 3, 32, 32>}, {pipeline_mode = #tpu.pipeline_mode<synchronous>, transform_indices = @transform_7, window_bounds = array<i64: 2, 3, 1, 32>}, {pipeline_mode = #tpu.pipeline_mode<synchronous>, transform_indices = @transform_8, window_bounds = array<i64: 2, 32, 32>}, {pipeline_mode = #tpu.pipeline_mode<synchronous>, transform_indices = @transform_9, window_bounds = array<i64: 2, 32, 128>}, {pipeline_mode = #tpu.pipeline_mode<synchronous>, transform_indices = @transform_10, window_bounds = array<i64: 2, 1, 128>}, {pipeline_mode = #tpu.pipeline_mode<synchronous>, transform_indices = @transform_11, window_bounds = array<i64: 2, 128, 32>}, {pipeline_mode = #tpu.pipeline_mode<synchronous>, transform_indices = @transform_12, window_bounds = array<i64: 2, 6, 1, 32>}, {pipeline_mode = #tpu.pipeline_mode<synchronous>, transform_indices = @transform_13, window_bounds = array<i64: 2, 1, 32>}, {pipeline_mode = #tpu.pipeline_mode<synchronous>, transform_indices = @transform_14, window_bounds = array<i64: 4, 32, 32>}, {pipeline_mode = #tpu.pipeline_mode<synchronous>, transform_indices = @transform_15, window_bounds = array<i64: 4, 1, 32>}, {pipeline_mode = #tpu.pipeline_mode<synchronous>, transform_indices = @transform_16, window_bounds = array<i64: 32, 2>}, {pipeline_mode = #tpu.pipeline_mode<synchronous>, transform_indices = @transform_17, window_bounds = array<i64: 1, 2>}, {transform_indices = @transform_18, window_bounds = array<i64: 1, 1, 32>}, {transform_indices = @transform_19, window_bounds = array<i64: 1, 1, 2>}]} {
    %c0 = arith.constant 0 : index
    %c0_0 = arith.constant 0 : index
    %c0_1 = arith.constant 0 : index
    %0 = vector.load %arg1[%c0, %c0_0, %c0_1] : memref<1x12x192xf32, #tpu.memory_space<vmem>>, vector<1x12x192xf32>
    %1 = vector.shape_cast %0 : vector<1x12x192xf32> to vector<12x192xf32>
    %c0_2 = arith.constant 0 : index
    %c0_3 = arith.constant 0 : index
    %2 = vector.load %arg5[%c0_2, %c0_3] : memref<192x32xf32, #tpu.memory_space<vmem>>, vector<192x32xf32>
    %cst = arith.constant dense<0.000000e+00> : vector<12x32xf32>
    %3 = tpu.matmul %1, %2, %cst {dimension_numbers = #tpu.dot_dimension_numbers<[1], [0], [0], [1], [0, 0, 1, 1], [], []>} : vector<12x192xf32>, vector<192x32xf32>, vector<12x32xf32> -> vector<12x32xf32>
    %c0_4 = arith.constant 0 : index
    %c0_5 = arith.constant 0 : index
    %4 = vector.load %arg2[%c0_4, %c0_5] : memref<15x12xf32, #tpu.memory_space<vmem>>, vector<15x12xf32>
    %cst_6 = arith.constant dense<0.000000e+00> : vector<15x32xf32>
    %5 = tpu.matmul %4, %3, %cst_6 {dimension_numbers = #tpu.dot_dimension_numbers<[1], [0], [0], [1], [0, 0, 1, 1], [], []>} : vector<15x12xf32>, vector<12x32xf32>, vector<15x32xf32> -> vector<15x32xf32>
    %c0_7 = arith.constant 0 : index
    %c0_8 = arith.constant 0 : index
    %6 = vector.load %arg6[%c0_7, %c0_8] : memref<15x32xf32, #tpu.memory_space<vmem>>, vector<15x32xf32>
    %7 = arith.addf %5, %6 : vector<15x32xf32>
    %8 = tpu.iota {dimensions = array<i32: 1>} : vector<1x32xi32>
    %c0_i32 = arith.constant 0 : i32
    %9 = vector.broadcast %c0_i32 : i32 to vector<1x32xi32>
    %10 = arith.cmpi sge, %8, %9 : vector<1x32xi32>
    %c16_i32 = arith.constant 16 : i32
    %11 = vector.broadcast %c16_i32 : i32 to vector<1x32xi32>
    %12 = arith.cmpi slt, %8, %11 : vector<1x32xi32>
    %13 = arith.andi %10, %12 : vector<1x32xi1>
    %c16_i32_9 = arith.constant 16 : i32
    %14 = vector.broadcast %c16_i32_9 : i32 to vector<1x32xi32>
    %15 = arith.cmpi sge, %8, %14 : vector<1x32xi32>
    %c32_i32 = arith.constant 32 : i32
    %16 = vector.broadcast %c32_i32 : i32 to vector<1x32xi32>
    %17 = arith.cmpi slt, %8, %16 : vector<1x32xi32>
    %18 = arith.andi %15, %17 : vector<1x32xi1>
    %c0_10 = arith.constant 0 : index
    %c0_11 = arith.constant 0 : index
    %19 = vector.load %arg4[%c0_10, %c0_11] : memref<15x15xf32, #tpu.memory_space<vmem>>, vector<15x15xf32>
    %c0_12 = arith.constant 0 : index
    %c0_13 = arith.constant 0 : index
    %c0_14 = arith.constant 0 : index
    %c0_15 = arith.constant 0 : index
    %20 = vector.load %arg13[%c0_12, %c0_13, %c0_14, %c0_15] : memref<2x6x1x32xf32, #tpu.memory_space<vmem>>, vector<1x1x1x32xf32>
    %21 = vector.shape_cast %20 : vector<1x1x1x32xf32> to vector<1x32xf32>
    %c0_16 = arith.constant 0 : index
    %c1 = arith.constant 1 : index
    %c0_17 = arith.constant 0 : index
    %c0_18 = arith.constant 0 : index
    %22 = vector.load %arg13[%c0_16, %c1, %c0_17, %c0_18] : memref<2x6x1x32xf32, #tpu.memory_space<vmem>>, vector<1x1x1x32xf32>
    %23 = vector.shape_cast %22 : vector<1x1x1x32xf32> to vector<1x32xf32>
    %cst_19 = arith.constant dense<0.000000e+00> : vector<15xf32>
    %24 = vector.multi_reduction <add>, %7, %cst_19 [1] : vector<15x32xf32> to vector<15xf32>
    %25 = vector.shape_cast %24 : vector<15xf32> to vector<15x1xf32>
    %cst_20 = arith.constant 3.200000e+01 : f32
    %26 = vector.broadcast %cst_20 : f32 to vector<15x1xf32>
    %27 = arith.divf %25, %26 : vector<15x1xf32>
    %28 = vector.broadcast %27 : vector<15x1xf32> to vector<15x32xf32>
    %29 = arith.subf %7, %28 : vector<15x32xf32>
    %30 = arith.mulf %29, %29 : vector<15x32xf32>
    %cst_21 = arith.constant dense<0.000000e+00> : vector<15xf32>
    %31 = vector.multi_reduction <add>, %30, %cst_21 [1] : vector<15x32xf32> to vector<15xf32>
    %32 = vector.shape_cast %31 : vector<15xf32> to vector<15x1xf32>
    %cst_22 = arith.constant 3.200000e+01 : f32
    %33 = vector.broadcast %cst_22 : f32 to vector<15x1xf32>
    %34 = arith.divf %32, %33 : vector<15x1xf32>
    %35 = vector.broadcast %27 : vector<15x1xf32> to vector<15x32xf32>
    %36 = arith.subf %7, %35 : vector<15x32xf32>
    %cst_23 = arith.constant 9.99999997E-7 : f32
    %37 = vector.broadcast %cst_23 : f32 to vector<15x1xf32>
    %38 = arith.addf %34, %37 : vector<15x1xf32>
    %39 = math.rsqrt %38 : vector<15x1xf32>
    %40 = vector.broadcast %39 : vector<15x1xf32> to vector<15x32xf32>
    %41 = arith.mulf %36, %40 : vector<15x32xf32>
    %42 = vector.broadcast %21 : vector<1x32xf32> to vector<15x32xf32>
    %43 = arith.mulf %41, %42 : vector<15x32xf32>
    %44 = vector.broadcast %23 : vector<1x32xf32> to vector<15x32xf32>
    %45 = arith.addf %43, %44 : vector<15x32xf32>
    %c0_24 = arith.constant 0 : index
    %c0_25 = arith.constant 0 : index
    %c0_26 = arith.constant 0 : index
    %c0_27 = arith.constant 0 : index
    %46 = vector.load %arg7[%c0_24, %c0_25, %c0_26, %c0_27] : memref<2x3x32x32xf32, #tpu.memory_space<vmem>>, vector<1x1x32x32xf32>
    %47 = vector.shape_cast %46 : vector<1x1x32x32xf32> to vector<32x32xf32>
    %cst_28 = arith.constant dense<0.000000e+00> : vector<15x32xf32>
    %48 = tpu.matmul %45, %47, %cst_28 {dimension_numbers = #tpu.dot_dimension_numbers<[1], [0], [0], [1], [0, 0, 1, 1], [], []>} : vector<15x32xf32>, vector<32x32xf32>, vector<15x32xf32> -> vector<15x32xf32>
    %c0_29 = arith.constant 0 : index
    %c0_30 = arith.constant 0 : index
    %c0_31 = arith.constant 0 : index
    %c0_32 = arith.constant 0 : index
    %49 = vector.load %arg8[%c0_29, %c0_30, %c0_31, %c0_32] : memref<2x3x1x32xf32, #tpu.memory_space<vmem>>, vector<1x1x1x32xf32>
    %50 = vector.shape_cast %49 : vector<1x1x1x32xf32> to vector<1x32xf32>
    %51 = vector.broadcast %50 : vector<1x32xf32> to vector<15x32xf32>
    %52 = arith.addf %48, %51 : vector<15x32xf32>
    %c0_33 = arith.constant 0 : index
    %c1_34 = arith.constant 1 : index
    %c0_35 = arith.constant 0 : index
    %c0_36 = arith.constant 0 : index
    %53 = vector.load %arg7[%c0_33, %c1_34, %c0_35, %c0_36] : memref<2x3x32x32xf32, #tpu.memory_space<vmem>>, vector<1x1x32x32xf32>
    %54 = vector.shape_cast %53 : vector<1x1x32x32xf32> to vector<32x32xf32>
    %cst_37 = arith.constant dense<0.000000e+00> : vector<15x32xf32>
    %55 = tpu.matmul %45, %54, %cst_37 {dimension_numbers = #tpu.dot_dimension_numbers<[1], [0], [0], [1], [0, 0, 1, 1], [], []>} : vector<15x32xf32>, vector<32x32xf32>, vector<15x32xf32> -> vector<15x32xf32>
    %c0_38 = arith.constant 0 : index
    %c1_39 = arith.constant 1 : index
    %c0_40 = arith.constant 0 : index
    %c0_41 = arith.constant 0 : index
    %56 = vector.load %arg8[%c0_38, %c1_39, %c0_40, %c0_41] : memref<2x3x1x32xf32, #tpu.memory_space<vmem>>, vector<1x1x1x32xf32>
    %57 = vector.shape_cast %56 : vector<1x1x1x32xf32> to vector<1x32xf32>
    %58 = vector.broadcast %57 : vector<1x32xf32> to vector<15x32xf32>
    %59 = arith.addf %55, %58 : vector<15x32xf32>
    %c0_42 = arith.constant 0 : index
    %c2 = arith.constant 2 : index
    %c0_43 = arith.constant 0 : index
    %c0_44 = arith.constant 0 : index
    %60 = vector.load %arg7[%c0_42, %c2, %c0_43, %c0_44] : memref<2x3x32x32xf32, #tpu.memory_space<vmem>>, vector<1x1x32x32xf32>
    %61 = vector.shape_cast %60 : vector<1x1x32x32xf32> to vector<32x32xf32>
    %cst_45 = arith.constant dense<0.000000e+00> : vector<15x32xf32>
    %62 = tpu.matmul %45, %61, %cst_45 {dimension_numbers = #tpu.dot_dimension_numbers<[1], [0], [0], [1], [0, 0, 1, 1], [], []>} : vector<15x32xf32>, vector<32x32xf32>, vector<15x32xf32> -> vector<15x32xf32>
    %c0_46 = arith.constant 0 : index
    %c2_47 = arith.constant 2 : index
    %c0_48 = arith.constant 0 : index
    %c0_49 = arith.constant 0 : index
    %63 = vector.load %arg8[%c0_46, %c2_47, %c0_48, %c0_49] : memref<2x3x1x32xf32, #tpu.memory_space<vmem>>, vector<1x1x1x32xf32>
    %64 = vector.shape_cast %63 : vector<1x1x1x32xf32> to vector<1x32xf32>
    %65 = vector.broadcast %64 : vector<1x32xf32> to vector<15x32xf32>
    %66 = arith.addf %62, %65 : vector<15x32xf32>
    %cst_50 = arith.constant 0.000000e+00 : f32
    %67 = vector.broadcast %cst_50 : f32 to vector<15x32xf32>
    %cst_51 = arith.constant 0.000000e+00 : f32
    %68 = vector.shape_cast %13 : vector<1x32xi1> to vector<1x32xi1>
    %69 = vector.broadcast %68 : vector<1x32xi1> to vector<15x32xi1>
    %70 = vector.broadcast %cst_51 : f32 to vector<15x32xf32>
    %71 = arith.select %69, %52, %70 : vector<15x32xi1>, vector<15x32xf32>
    %cst_52 = arith.constant 0.000000e+00 : f32
    %72 = vector.shape_cast %13 : vector<1x32xi1> to vector<1x32xi1>
    %73 = vector.broadcast %72 : vector<1x32xi1> to vector<15x32xi1>
    %74 = vector.broadcast %cst_52 : f32 to vector<15x32xf32>
    %75 = arith.select %73, %66, %74 : vector<15x32xi1>, vector<15x32xf32>
    %cst_53 = arith.constant dense<0.000000e+00> : vector<15x15xf32>
    %76 = tpu.matmul %71, %59, %cst_53 {dimension_numbers = #tpu.dot_dimension_numbers<[1], [1], [0], [0], [0, 0, 1, 0], [], []>} : vector<15x32xf32>, vector<15x32xf32>, vector<15x15xf32> -> vector<15x15xf32>
    %cst_54 = arith.constant 2.500000e-01 : f32
    %77 = vector.broadcast %cst_54 : f32 to vector<15x15xf32>
    %78 = arith.mulf %76, %77 : vector<15x15xf32>
    %79 = arith.addf %78, %19 : vector<15x15xf32>
    %cst_55 = arith.constant dense<0xFF800000> : vector<15xf32>
    %80 = vector.multi_reduction <maximumf>, %79, %cst_55 [1] : vector<15x15xf32> to vector<15xf32>
    %81 = vector.shape_cast %80 : vector<15xf32> to vector<15x1xf32>
    %82 = vector.broadcast %81 : vector<15x1xf32> to vector<15x15xf32>
    %83 = arith.subf %79, %82 : vector<15x15xf32>
    %84 = math.exp %83 : vector<15x15xf32>
    %cst_56 = arith.constant dense<0.000000e+00> : vector<15xf32>
    %85 = vector.multi_reduction <add>, %84, %cst_56 [1] : vector<15x15xf32> to vector<15xf32>
    %86 = vector.shape_cast %85 : vector<15xf32> to vector<15x1xf32>
    %87 = tpu.reciprocal %86 {approx = true} : vector<15x1xf32> -> vector<15x1xf32>
    %88 = vector.broadcast %87 : vector<15x1xf32> to vector<15x15xf32>
    %89 = arith.mulf %84, %88 : vector<15x15xf32>
    %cst_57 = arith.constant dense<0.000000e+00> : vector<15x32xf32>
    %90 = tpu.matmul %89, %75, %cst_57 {dimension_numbers = #tpu.dot_dimension_numbers<[1], [0], [0], [1], [0, 0, 1, 1], [], []>} : vector<15x15xf32>, vector<15x32xf32>, vector<15x32xf32> -> vector<15x32xf32>
    %91 = arith.addf %67, %90 : vector<15x32xf32>
    %cst_58 = arith.constant 0.000000e+00 : f32
    %92 = vector.shape_cast %18 : vector<1x32xi1> to vector<1x32xi1>
    %93 = vector.broadcast %92 : vector<1x32xi1> to vector<15x32xi1>
    %94 = vector.broadcast %cst_58 : f32 to vector<15x32xf32>
    %95 = arith.select %93, %52, %94 : vector<15x32xi1>, vector<15x32xf32>
    %cst_59 = arith.constant 0.000000e+00 : f32
    %96 = vector.shape_cast %18 : vector<1x32xi1> to vector<1x32xi1>
    %97 = vector.broadcast %96 : vector<1x32xi1> to vector<15x32xi1>
    %98 = vector.broadcast %cst_59 : f32 to vector<15x32xf32>
    %99 = arith.select %97, %66, %98 : vector<15x32xi1>, vector<15x32xf32>
    %cst_60 = arith.constant dense<0.000000e+00> : vector<15x15xf32>
    %100 = tpu.matmul %95, %59, %cst_60 {dimension_numbers = #tpu.dot_dimension_numbers<[1], [1], [0], [0], [0, 0, 1, 0], [], []>} : vector<15x32xf32>, vector<15x32xf32>, vector<15x15xf32> -> vector<15x15xf32>
    %cst_61 = arith.constant 2.500000e-01 : f32
    %101 = vector.broadcast %cst_61 : f32 to vector<15x15xf32>
    %102 = arith.mulf %100, %101 : vector<15x15xf32>
    %103 = arith.addf %102, %19 : vector<15x15xf32>
    %cst_62 = arith.constant dense<0xFF800000> : vector<15xf32>
    %104 = vector.multi_reduction <maximumf>, %103, %cst_62 [1] : vector<15x15xf32> to vector<15xf32>
    %105 = vector.shape_cast %104 : vector<15xf32> to vector<15x1xf32>
    %106 = vector.broadcast %105 : vector<15x1xf32> to vector<15x15xf32>
    %107 = arith.subf %103, %106 : vector<15x15xf32>
    %108 = math.exp %107 : vector<15x15xf32>
    %cst_63 = arith.constant dense<0.000000e+00> : vector<15xf32>
    %109 = vector.multi_reduction <add>, %108, %cst_63 [1] : vector<15x15xf32> to vector<15xf32>
    %110 = vector.shape_cast %109 : vector<15xf32> to vector<15x1xf32>
    %111 = tpu.reciprocal %110 {approx = true} : vector<15x1xf32> -> vector<15x1xf32>
    %112 = vector.broadcast %111 : vector<15x1xf32> to vector<15x15xf32>
    %113 = arith.mulf %108, %112 : vector<15x15xf32>
    %cst_64 = arith.constant dense<0.000000e+00> : vector<15x32xf32>
    %114 = tpu.matmul %113, %99, %cst_64 {dimension_numbers = #tpu.dot_dimension_numbers<[1], [0], [0], [1], [0, 0, 1, 1], [], []>} : vector<15x15xf32>, vector<15x32xf32>, vector<15x32xf32> -> vector<15x32xf32>
    %115 = arith.addf %91, %114 : vector<15x32xf32>
    %c0_65 = arith.constant 0 : index
    %c0_66 = arith.constant 0 : index
    %c0_67 = arith.constant 0 : index
    %116 = vector.load %arg9[%c0_65, %c0_66, %c0_67] : memref<2x32x32xf32, #tpu.memory_space<vmem>>, vector<1x32x32xf32>
    %117 = vector.shape_cast %116 : vector<1x32x32xf32> to vector<32x32xf32>
    %cst_68 = arith.constant dense<0.000000e+00> : vector<15x32xf32>
    %118 = tpu.matmul %115, %117, %cst_68 {dimension_numbers = #tpu.dot_dimension_numbers<[1], [0], [0], [1], [0, 0, 1, 1], [], []>} : vector<15x32xf32>, vector<32x32xf32>, vector<15x32xf32> -> vector<15x32xf32>
    %119 = arith.addf %7, %118 : vector<15x32xf32>
    %c0_69 = arith.constant 0 : index
    %c2_70 = arith.constant 2 : index
    %c0_71 = arith.constant 0 : index
    %c0_72 = arith.constant 0 : index
    %120 = vector.load %arg13[%c0_69, %c2_70, %c0_71, %c0_72] : memref<2x6x1x32xf32, #tpu.memory_space<vmem>>, vector<1x1x1x32xf32>
    %121 = vector.shape_cast %120 : vector<1x1x1x32xf32> to vector<1x32xf32>
    %122 = vector.broadcast %121 : vector<1x32xf32> to vector<15x32xf32>
    %123 = arith.addf %119, %122 : vector<15x32xf32>
    %c0_73 = arith.constant 0 : index
    %c3 = arith.constant 3 : index
    %c0_74 = arith.constant 0 : index
    %c0_75 = arith.constant 0 : index
    %124 = vector.load %arg13[%c0_73, %c3, %c0_74, %c0_75] : memref<2x6x1x32xf32, #tpu.memory_space<vmem>>, vector<1x1x1x32xf32>
    %125 = vector.shape_cast %124 : vector<1x1x1x32xf32> to vector<1x32xf32>
    %c0_76 = arith.constant 0 : index
    %c4 = arith.constant 4 : index
    %c0_77 = arith.constant 0 : index
    %c0_78 = arith.constant 0 : index
    %126 = vector.load %arg13[%c0_76, %c4, %c0_77, %c0_78] : memref<2x6x1x32xf32, #tpu.memory_space<vmem>>, vector<1x1x1x32xf32>
    %127 = vector.shape_cast %126 : vector<1x1x1x32xf32> to vector<1x32xf32>
    %cst_79 = arith.constant dense<0.000000e+00> : vector<15xf32>
    %128 = vector.multi_reduction <add>, %123, %cst_79 [1] : vector<15x32xf32> to vector<15xf32>
    %129 = vector.shape_cast %128 : vector<15xf32> to vector<15x1xf32>
    %cst_80 = arith.constant 3.200000e+01 : f32
    %130 = vector.broadcast %cst_80 : f32 to vector<15x1xf32>
    %131 = arith.divf %129, %130 : vector<15x1xf32>
    %132 = vector.broadcast %131 : vector<15x1xf32> to vector<15x32xf32>
    %133 = arith.subf %123, %132 : vector<15x32xf32>
    %134 = arith.mulf %133, %133 : vector<15x32xf32>
    %cst_81 = arith.constant dense<0.000000e+00> : vector<15xf32>
    %135 = vector.multi_reduction <add>, %134, %cst_81 [1] : vector<15x32xf32> to vector<15xf32>
    %136 = vector.shape_cast %135 : vector<15xf32> to vector<15x1xf32>
    %cst_82 = arith.constant 3.200000e+01 : f32
    %137 = vector.broadcast %cst_82 : f32 to vector<15x1xf32>
    %138 = arith.divf %136, %137 : vector<15x1xf32>
    %139 = vector.broadcast %131 : vector<15x1xf32> to vector<15x32xf32>
    %140 = arith.subf %123, %139 : vector<15x32xf32>
    %cst_83 = arith.constant 9.99999997E-7 : f32
    %141 = vector.broadcast %cst_83 : f32 to vector<15x1xf32>
    %142 = arith.addf %138, %141 : vector<15x1xf32>
    %143 = math.rsqrt %142 : vector<15x1xf32>
    %144 = vector.broadcast %143 : vector<15x1xf32> to vector<15x32xf32>
    %145 = arith.mulf %140, %144 : vector<15x32xf32>
    %146 = vector.broadcast %125 : vector<1x32xf32> to vector<15x32xf32>
    %147 = arith.mulf %145, %146 : vector<15x32xf32>
    %148 = vector.broadcast %127 : vector<1x32xf32> to vector<15x32xf32>
    %149 = arith.addf %147, %148 : vector<15x32xf32>
    %c0_84 = arith.constant 0 : index
    %c0_85 = arith.constant 0 : index
    %c0_86 = arith.constant 0 : index
    %150 = vector.load %arg10[%c0_84, %c0_85, %c0_86] : memref<2x32x128xf32, #tpu.memory_space<vmem>>, vector<1x32x128xf32>
    %151 = vector.shape_cast %150 : vector<1x32x128xf32> to vector<32x128xf32>
    %cst_87 = arith.constant dense<0.000000e+00> : vector<15x128xf32>
    %152 = tpu.matmul %149, %151, %cst_87 {dimension_numbers = #tpu.dot_dimension_numbers<[1], [0], [0], [1], [0, 0, 1, 1], [], []>} : vector<15x32xf32>, vector<32x128xf32>, vector<15x128xf32> -> vector<15x128xf32>
    %c0_88 = arith.constant 0 : index
    %c0_89 = arith.constant 0 : index
    %c0_90 = arith.constant 0 : index
    %153 = vector.load %arg11[%c0_88, %c0_89, %c0_90] : memref<2x1x128xf32, #tpu.memory_space<vmem>>, vector<1x1x128xf32>
    %154 = vector.shape_cast %153 : vector<1x1x128xf32> to vector<1x128xf32>
    %155 = vector.broadcast %154 : vector<1x128xf32> to vector<15x128xf32>
    %156 = arith.addf %152, %155 : vector<15x128xf32>
    %cst_91 = arith.constant 5.000000e-01 : f32
    %157 = vector.broadcast %cst_91 : f32 to vector<15x128xf32>
    %158 = arith.mulf %157, %156 : vector<15x128xf32>
    %cst_92 = arith.constant 0.707106769 : f32
    %159 = vector.broadcast %cst_92 : f32 to vector<15x128xf32>
    %160 = arith.mulf %156, %159 : vector<15x128xf32>
    %161 = math.absf %160 : vector<15x128xf32>
    %cst_93 = arith.constant 0.327591091 : f32
    %162 = vector.broadcast %cst_93 : f32 to vector<15x128xf32>
    %163 = arith.mulf %162, %161 : vector<15x128xf32>
    %cst_94 = arith.constant 1.000000e+00 : f32
    %164 = vector.broadcast %cst_94 : f32 to vector<15x128xf32>
    %165 = arith.addf %164, %163 : vector<15x128xf32>
    %cst_95 = arith.constant 1.000000e+00 : f32
    %166 = vector.broadcast %cst_95 : f32 to vector<15x128xf32>
    %167 = arith.divf %166, %165 : vector<15x128xf32>
    %cst_96 = arith.constant 1.06140542 : f32
    %168 = vector.broadcast %cst_96 : f32 to vector<15x128xf32>
    %169 = arith.mulf %168, %167 : vector<15x128xf32>
    %cst_97 = arith.constant -1.45315206 : f32
    %170 = vector.broadcast %cst_97 : f32 to vector<15x128xf32>
    %171 = arith.addf %169, %170 : vector<15x128xf32>
    %172 = arith.mulf %171, %167 : vector<15x128xf32>
    %cst_98 = arith.constant 1.42141378 : f32
    %173 = vector.broadcast %cst_98 : f32 to vector<15x128xf32>
    %174 = arith.addf %172, %173 : vector<15x128xf32>
    %175 = arith.mulf %174, %167 : vector<15x128xf32>
    %cst_99 = arith.constant -0.284496725 : f32
    %176 = vector.broadcast %cst_99 : f32 to vector<15x128xf32>
    %177 = arith.addf %175, %176 : vector<15x128xf32>
    %178 = arith.mulf %177, %167 : vector<15x128xf32>
    %cst_100 = arith.constant 0.254829586 : f32
    %179 = vector.broadcast %cst_100 : f32 to vector<15x128xf32>
    %180 = arith.addf %178, %179 : vector<15x128xf32>
    %181 = arith.mulf %180, %167 : vector<15x128xf32>
    %cst_101 = arith.constant 0.000000e+00 : f32
    %182 = vector.broadcast %cst_101 : f32 to vector<15x128xf32>
    %183 = arith.subf %182, %161 : vector<15x128xf32>
    %184 = arith.mulf %183, %161 : vector<15x128xf32>
    %185 = math.exp %184 : vector<15x128xf32>
    %186 = arith.mulf %181, %185 : vector<15x128xf32>
    %cst_102 = arith.constant 1.000000e+00 : f32
    %187 = vector.broadcast %cst_102 : f32 to vector<15x128xf32>
    %188 = arith.subf %187, %186 : vector<15x128xf32>
    %cst_103 = arith.constant 0.000000e+00 : f32
    %189 = vector.broadcast %cst_103 : f32 to vector<15x128xf32>
    %190 = arith.cmpf oge, %160, %189 : vector<15x128xf32>
    %cst_104 = arith.constant 0.000000e+00 : f32
    %191 = vector.broadcast %cst_104 : f32 to vector<15x128xf32>
    %192 = arith.subf %191, %188 : vector<15x128xf32>
    %193 = arith.select %190, %188, %192 : vector<15x128xi1>, vector<15x128xf32>
    %cst_105 = arith.constant 1.000000e+00 : f32
    %194 = vector.broadcast %cst_105 : f32 to vector<15x128xf32>
    %195 = arith.addf %194, %193 : vector<15x128xf32>
    %196 = arith.mulf %158, %195 : vector<15x128xf32>
    %c0_106 = arith.constant 0 : index
    %c0_107 = arith.constant 0 : index
    %c0_108 = arith.constant 0 : index
    %197 = vector.load %arg12[%c0_106, %c0_107, %c0_108] : memref<2x128x32xf32, #tpu.memory_space<vmem>>, vector<1x128x32xf32>
    %198 = vector.shape_cast %197 : vector<1x128x32xf32> to vector<128x32xf32>
    %cst_109 = arith.constant dense<0.000000e+00> : vector<15x32xf32>
    %199 = tpu.matmul %196, %198, %cst_109 {dimension_numbers = #tpu.dot_dimension_numbers<[1], [0], [0], [1], [0, 0, 1, 1], [], []>} : vector<15x128xf32>, vector<128x32xf32>, vector<15x32xf32> -> vector<15x32xf32>
    %200 = arith.addf %123, %199 : vector<15x32xf32>
    %c0_110 = arith.constant 0 : index
    %c5 = arith.constant 5 : index
    %c0_111 = arith.constant 0 : index
    %c0_112 = arith.constant 0 : index
    %201 = vector.load %arg13[%c0_110, %c5, %c0_111, %c0_112] : memref<2x6x1x32xf32, #tpu.memory_space<vmem>>, vector<1x1x1x32xf32>
    %202 = vector.shape_cast %201 : vector<1x1x1x32xf32> to vector<1x32xf32>
    %203 = vector.broadcast %202 : vector<1x32xf32> to vector<15x32xf32>
    %204 = arith.addf %200, %203 : vector<15x32xf32>
    %c1_113 = arith.constant 1 : index
    %c0_114 = arith.constant 0 : index
    %c0_115 = arith.constant 0 : index
    %c0_116 = arith.constant 0 : index
    %205 = vector.load %arg13[%c1_113, %c0_114, %c0_115, %c0_116] : memref<2x6x1x32xf32, #tpu.memory_space<vmem>>, vector<1x1x1x32xf32>
    %206 = vector.shape_cast %205 : vector<1x1x1x32xf32> to vector<1x32xf32>
    %c1_117 = arith.constant 1 : index
    %c1_118 = arith.constant 1 : index
    %c0_119 = arith.constant 0 : index
    %c0_120 = arith.constant 0 : index
    %207 = vector.load %arg13[%c1_117, %c1_118, %c0_119, %c0_120] : memref<2x6x1x32xf32, #tpu.memory_space<vmem>>, vector<1x1x1x32xf32>
    %208 = vector.shape_cast %207 : vector<1x1x1x32xf32> to vector<1x32xf32>
    %cst_121 = arith.constant dense<0.000000e+00> : vector<15xf32>
    %209 = vector.multi_reduction <add>, %204, %cst_121 [1] : vector<15x32xf32> to vector<15xf32>
    %210 = vector.shape_cast %209 : vector<15xf32> to vector<15x1xf32>
    %cst_122 = arith.constant 3.200000e+01 : f32
    %211 = vector.broadcast %cst_122 : f32 to vector<15x1xf32>
    %212 = arith.divf %210, %211 : vector<15x1xf32>
    %213 = vector.broadcast %212 : vector<15x1xf32> to vector<15x32xf32>
    %214 = arith.subf %204, %213 : vector<15x32xf32>
    %215 = arith.mulf %214, %214 : vector<15x32xf32>
    %cst_123 = arith.constant dense<0.000000e+00> : vector<15xf32>
    %216 = vector.multi_reduction <add>, %215, %cst_123 [1] : vector<15x32xf32> to vector<15xf32>
    %217 = vector.shape_cast %216 : vector<15xf32> to vector<15x1xf32>
    %cst_124 = arith.constant 3.200000e+01 : f32
    %218 = vector.broadcast %cst_124 : f32 to vector<15x1xf32>
    %219 = arith.divf %217, %218 : vector<15x1xf32>
    %220 = vector.broadcast %212 : vector<15x1xf32> to vector<15x32xf32>
    %221 = arith.subf %204, %220 : vector<15x32xf32>
    %cst_125 = arith.constant 9.99999997E-7 : f32
    %222 = vector.broadcast %cst_125 : f32 to vector<15x1xf32>
    %223 = arith.addf %219, %222 : vector<15x1xf32>
    %224 = math.rsqrt %223 : vector<15x1xf32>
    %225 = vector.broadcast %224 : vector<15x1xf32> to vector<15x32xf32>
    %226 = arith.mulf %221, %225 : vector<15x32xf32>
    %227 = vector.broadcast %206 : vector<1x32xf32> to vector<15x32xf32>
    %228 = arith.mulf %226, %227 : vector<15x32xf32>
    %229 = vector.broadcast %208 : vector<1x32xf32> to vector<15x32xf32>
    %230 = arith.addf %228, %229 : vector<15x32xf32>
    %c1_126 = arith.constant 1 : index
    %c0_127 = arith.constant 0 : index
    %c0_128 = arith.constant 0 : index
    %c0_129 = arith.constant 0 : index
    %231 = vector.load %arg7[%c1_126, %c0_127, %c0_128, %c0_129] : memref<2x3x32x32xf32, #tpu.memory_space<vmem>>, vector<1x1x32x32xf32>
    %232 = vector.shape_cast %231 : vector<1x1x32x32xf32> to vector<32x32xf32>
    %cst_130 = arith.constant dense<0.000000e+00> : vector<15x32xf32>
    %233 = tpu.matmul %230, %232, %cst_130 {dimension_numbers = #tpu.dot_dimension_numbers<[1], [0], [0], [1], [0, 0, 1, 1], [], []>} : vector<15x32xf32>, vector<32x32xf32>, vector<15x32xf32> -> vector<15x32xf32>
    %c1_131 = arith.constant 1 : index
    %c0_132 = arith.constant 0 : index
    %c0_133 = arith.constant 0 : index
    %c0_134 = arith.constant 0 : index
    %234 = vector.load %arg8[%c1_131, %c0_132, %c0_133, %c0_134] : memref<2x3x1x32xf32, #tpu.memory_space<vmem>>, vector<1x1x1x32xf32>
    %235 = vector.shape_cast %234 : vector<1x1x1x32xf32> to vector<1x32xf32>
    %236 = vector.broadcast %235 : vector<1x32xf32> to vector<15x32xf32>
    %237 = arith.addf %233, %236 : vector<15x32xf32>
    %c1_135 = arith.constant 1 : index
    %c1_136 = arith.constant 1 : index
    %c0_137 = arith.constant 0 : index
    %c0_138 = arith.constant 0 : index
    %238 = vector.load %arg7[%c1_135, %c1_136, %c0_137, %c0_138] : memref<2x3x32x32xf32, #tpu.memory_space<vmem>>, vector<1x1x32x32xf32>
    %239 = vector.shape_cast %238 : vector<1x1x32x32xf32> to vector<32x32xf32>
    %cst_139 = arith.constant dense<0.000000e+00> : vector<15x32xf32>
    %240 = tpu.matmul %230, %239, %cst_139 {dimension_numbers = #tpu.dot_dimension_numbers<[1], [0], [0], [1], [0, 0, 1, 1], [], []>} : vector<15x32xf32>, vector<32x32xf32>, vector<15x32xf32> -> vector<15x32xf32>
    %c1_140 = arith.constant 1 : index
    %c1_141 = arith.constant 1 : index
    %c0_142 = arith.constant 0 : index
    %c0_143 = arith.constant 0 : index
    %241 = vector.load %arg8[%c1_140, %c1_141, %c0_142, %c0_143] : memref<2x3x1x32xf32, #tpu.memory_space<vmem>>, vector<1x1x1x32xf32>
    %242 = vector.shape_cast %241 : vector<1x1x1x32xf32> to vector<1x32xf32>
    %243 = vector.broadcast %242 : vector<1x32xf32> to vector<15x32xf32>
    %244 = arith.addf %240, %243 : vector<15x32xf32>
    %c1_144 = arith.constant 1 : index
    %c2_145 = arith.constant 2 : index
    %c0_146 = arith.constant 0 : index
    %c0_147 = arith.constant 0 : index
    %245 = vector.load %arg7[%c1_144, %c2_145, %c0_146, %c0_147] : memref<2x3x32x32xf32, #tpu.memory_space<vmem>>, vector<1x1x32x32xf32>
    %246 = vector.shape_cast %245 : vector<1x1x32x32xf32> to vector<32x32xf32>
    %cst_148 = arith.constant dense<0.000000e+00> : vector<15x32xf32>
    %247 = tpu.matmul %230, %246, %cst_148 {dimension_numbers = #tpu.dot_dimension_numbers<[1], [0], [0], [1], [0, 0, 1, 1], [], []>} : vector<15x32xf32>, vector<32x32xf32>, vector<15x32xf32> -> vector<15x32xf32>
    %c1_149 = arith.constant 1 : index
    %c2_150 = arith.constant 2 : index
    %c0_151 = arith.constant 0 : index
    %c0_152 = arith.constant 0 : index
    %248 = vector.load %arg8[%c1_149, %c2_150, %c0_151, %c0_152] : memref<2x3x1x32xf32, #tpu.memory_space<vmem>>, vector<1x1x1x32xf32>
    %249 = vector.shape_cast %248 : vector<1x1x1x32xf32> to vector<1x32xf32>
    %250 = vector.broadcast %249 : vector<1x32xf32> to vector<15x32xf32>
    %251 = arith.addf %247, %250 : vector<15x32xf32>
    %cst_153 = arith.constant 0.000000e+00 : f32
    %252 = vector.broadcast %cst_153 : f32 to vector<15x32xf32>
    %cst_154 = arith.constant 0.000000e+00 : f32
    %253 = vector.shape_cast %13 : vector<1x32xi1> to vector<1x32xi1>
    %254 = vector.broadcast %253 : vector<1x32xi1> to vector<15x32xi1>
    %255 = vector.broadcast %cst_154 : f32 to vector<15x32xf32>
    %256 = arith.select %254, %237, %255 : vector<15x32xi1>, vector<15x32xf32>
    %cst_155 = arith.constant 0.000000e+00 : f32
    %257 = vector.shape_cast %13 : vector<1x32xi1> to vector<1x32xi1>
    %258 = vector.broadcast %257 : vector<1x32xi1> to vector<15x32xi1>
    %259 = vector.broadcast %cst_155 : f32 to vector<15x32xf32>
    %260 = arith.select %258, %251, %259 : vector<15x32xi1>, vector<15x32xf32>
    %cst_156 = arith.constant dense<0.000000e+00> : vector<15x15xf32>
    %261 = tpu.matmul %256, %244, %cst_156 {dimension_numbers = #tpu.dot_dimension_numbers<[1], [1], [0], [0], [0, 0, 1, 0], [], []>} : vector<15x32xf32>, vector<15x32xf32>, vector<15x15xf32> -> vector<15x15xf32>
    %cst_157 = arith.constant 2.500000e-01 : f32
    %262 = vector.broadcast %cst_157 : f32 to vector<15x15xf32>
    %263 = arith.mulf %261, %262 : vector<15x15xf32>
    %264 = arith.addf %263, %19 : vector<15x15xf32>
    %cst_158 = arith.constant dense<0xFF800000> : vector<15xf32>
    %265 = vector.multi_reduction <maximumf>, %264, %cst_158 [1] : vector<15x15xf32> to vector<15xf32>
    %266 = vector.shape_cast %265 : vector<15xf32> to vector<15x1xf32>
    %267 = vector.broadcast %266 : vector<15x1xf32> to vector<15x15xf32>
    %268 = arith.subf %264, %267 : vector<15x15xf32>
    %269 = math.exp %268 : vector<15x15xf32>
    %cst_159 = arith.constant dense<0.000000e+00> : vector<15xf32>
    %270 = vector.multi_reduction <add>, %269, %cst_159 [1] : vector<15x15xf32> to vector<15xf32>
    %271 = vector.shape_cast %270 : vector<15xf32> to vector<15x1xf32>
    %272 = tpu.reciprocal %271 {approx = true} : vector<15x1xf32> -> vector<15x1xf32>
    %273 = vector.broadcast %272 : vector<15x1xf32> to vector<15x15xf32>
    %274 = arith.mulf %269, %273 : vector<15x15xf32>
    %cst_160 = arith.constant dense<0.000000e+00> : vector<15x32xf32>
    %275 = tpu.matmul %274, %260, %cst_160 {dimension_numbers = #tpu.dot_dimension_numbers<[1], [0], [0], [1], [0, 0, 1, 1], [], []>} : vector<15x15xf32>, vector<15x32xf32>, vector<15x32xf32> -> vector<15x32xf32>
    %276 = arith.addf %252, %275 : vector<15x32xf32>
    %cst_161 = arith.constant 0.000000e+00 : f32
    %277 = vector.shape_cast %18 : vector<1x32xi1> to vector<1x32xi1>
    %278 = vector.broadcast %277 : vector<1x32xi1> to vector<15x32xi1>
    %279 = vector.broadcast %cst_161 : f32 to vector<15x32xf32>
    %280 = arith.select %278, %237, %279 : vector<15x32xi1>, vector<15x32xf32>
    %cst_162 = arith.constant 0.000000e+00 : f32
    %281 = vector.shape_cast %18 : vector<1x32xi1> to vector<1x32xi1>
    %282 = vector.broadcast %281 : vector<1x32xi1> to vector<15x32xi1>
    %283 = vector.broadcast %cst_162 : f32 to vector<15x32xf32>
    %284 = arith.select %282, %251, %283 : vector<15x32xi1>, vector<15x32xf32>
    %cst_163 = arith.constant dense<0.000000e+00> : vector<15x15xf32>
    %285 = tpu.matmul %280, %244, %cst_163 {dimension_numbers = #tpu.dot_dimension_numbers<[1], [1], [0], [0], [0, 0, 1, 0], [], []>} : vector<15x32xf32>, vector<15x32xf32>, vector<15x15xf32> -> vector<15x15xf32>
    %cst_164 = arith.constant 2.500000e-01 : f32
    %286 = vector.broadcast %cst_164 : f32 to vector<15x15xf32>
    %287 = arith.mulf %285, %286 : vector<15x15xf32>
    %288 = arith.addf %287, %19 : vector<15x15xf32>
    %cst_165 = arith.constant dense<0xFF800000> : vector<15xf32>
    %289 = vector.multi_reduction <maximumf>, %288, %cst_165 [1] : vector<15x15xf32> to vector<15xf32>
    %290 = vector.shape_cast %289 : vector<15xf32> to vector<15x1xf32>
    %291 = vector.broadcast %290 : vector<15x1xf32> to vector<15x15xf32>
    %292 = arith.subf %288, %291 : vector<15x15xf32>
    %293 = math.exp %292 : vector<15x15xf32>
    %cst_166 = arith.constant dense<0.000000e+00> : vector<15xf32>
    %294 = vector.multi_reduction <add>, %293, %cst_166 [1] : vector<15x15xf32> to vector<15xf32>
    %295 = vector.shape_cast %294 : vector<15xf32> to vector<15x1xf32>
    %296 = tpu.reciprocal %295 {approx = true} : vector<15x1xf32> -> vector<15x1xf32>
    %297 = vector.broadcast %296 : vector<15x1xf32> to vector<15x15xf32>
    %298 = arith.mulf %293, %297 : vector<15x15xf32>
    %cst_167 = arith.constant dense<0.000000e+00> : vector<15x32xf32>
    %299 = tpu.matmul %298, %284, %cst_167 {dimension_numbers = #tpu.dot_dimension_numbers<[1], [0], [0], [1], [0, 0, 1, 1], [], []>} : vector<15x15xf32>, vector<15x32xf32>, vector<15x32xf32> -> vector<15x32xf32>
    %300 = arith.addf %276, %299 : vector<15x32xf32>
    %c1_168 = arith.constant 1 : index
    %c0_169 = arith.constant 0 : index
    %c0_170 = arith.constant 0 : index
    %301 = vector.load %arg9[%c1_168, %c0_169, %c0_170] : memref<2x32x32xf32, #tpu.memory_space<vmem>>, vector<1x32x32xf32>
    %302 = vector.shape_cast %301 : vector<1x32x32xf32> to vector<32x32xf32>
    %cst_171 = arith.constant dense<0.000000e+00> : vector<15x32xf32>
    %303 = tpu.matmul %300, %302, %cst_171 {dimension_numbers = #tpu.dot_dimension_numbers<[1], [0], [0], [1], [0, 0, 1, 1], [], []>} : vector<15x32xf32>, vector<32x32xf32>, vector<15x32xf32> -> vector<15x32xf32>
    %304 = arith.addf %204, %303 : vector<15x32xf32>
    %c1_172 = arith.constant 1 : index
    %c2_173 = arith.constant 2 : index
    %c0_174 = arith.constant 0 : index
    %c0_175 = arith.constant 0 : index
    %305 = vector.load %arg13[%c1_172, %c2_173, %c0_174, %c0_175] : memref<2x6x1x32xf32, #tpu.memory_space<vmem>>, vector<1x1x1x32xf32>
    %306 = vector.shape_cast %305 : vector<1x1x1x32xf32> to vector<1x32xf32>
    %307 = vector.broadcast %306 : vector<1x32xf32> to vector<15x32xf32>
    %308 = arith.addf %304, %307 : vector<15x32xf32>
    %c1_176 = arith.constant 1 : index
    %c3_177 = arith.constant 3 : index
    %c0_178 = arith.constant 0 : index
    %c0_179 = arith.constant 0 : index
    %309 = vector.load %arg13[%c1_176, %c3_177, %c0_178, %c0_179] : memref<2x6x1x32xf32, #tpu.memory_space<vmem>>, vector<1x1x1x32xf32>
    %310 = vector.shape_cast %309 : vector<1x1x1x32xf32> to vector<1x32xf32>
    %c1_180 = arith.constant 1 : index
    %c4_181 = arith.constant 4 : index
    %c0_182 = arith.constant 0 : index
    %c0_183 = arith.constant 0 : index
    %311 = vector.load %arg13[%c1_180, %c4_181, %c0_182, %c0_183] : memref<2x6x1x32xf32, #tpu.memory_space<vmem>>, vector<1x1x1x32xf32>
    %312 = vector.shape_cast %311 : vector<1x1x1x32xf32> to vector<1x32xf32>
    %cst_184 = arith.constant dense<0.000000e+00> : vector<15xf32>
    %313 = vector.multi_reduction <add>, %308, %cst_184 [1] : vector<15x32xf32> to vector<15xf32>
    %314 = vector.shape_cast %313 : vector<15xf32> to vector<15x1xf32>
    %cst_185 = arith.constant 3.200000e+01 : f32
    %315 = vector.broadcast %cst_185 : f32 to vector<15x1xf32>
    %316 = arith.divf %314, %315 : vector<15x1xf32>
    %317 = vector.broadcast %316 : vector<15x1xf32> to vector<15x32xf32>
    %318 = arith.subf %308, %317 : vector<15x32xf32>
    %319 = arith.mulf %318, %318 : vector<15x32xf32>
    %cst_186 = arith.constant dense<0.000000e+00> : vector<15xf32>
    %320 = vector.multi_reduction <add>, %319, %cst_186 [1] : vector<15x32xf32> to vector<15xf32>
    %321 = vector.shape_cast %320 : vector<15xf32> to vector<15x1xf32>
    %cst_187 = arith.constant 3.200000e+01 : f32
    %322 = vector.broadcast %cst_187 : f32 to vector<15x1xf32>
    %323 = arith.divf %321, %322 : vector<15x1xf32>
    %324 = vector.broadcast %316 : vector<15x1xf32> to vector<15x32xf32>
    %325 = arith.subf %308, %324 : vector<15x32xf32>
    %cst_188 = arith.constant 9.99999997E-7 : f32
    %326 = vector.broadcast %cst_188 : f32 to vector<15x1xf32>
    %327 = arith.addf %323, %326 : vector<15x1xf32>
    %328 = math.rsqrt %327 : vector<15x1xf32>
    %329 = vector.broadcast %328 : vector<15x1xf32> to vector<15x32xf32>
    %330 = arith.mulf %325, %329 : vector<15x32xf32>
    %331 = vector.broadcast %310 : vector<1x32xf32> to vector<15x32xf32>
    %332 = arith.mulf %330, %331 : vector<15x32xf32>
    %333 = vector.broadcast %312 : vector<1x32xf32> to vector<15x32xf32>
    %334 = arith.addf %332, %333 : vector<15x32xf32>
    %c1_189 = arith.constant 1 : index
    %c0_190 = arith.constant 0 : index
    %c0_191 = arith.constant 0 : index
    %335 = vector.load %arg10[%c1_189, %c0_190, %c0_191] : memref<2x32x128xf32, #tpu.memory_space<vmem>>, vector<1x32x128xf32>
    %336 = vector.shape_cast %335 : vector<1x32x128xf32> to vector<32x128xf32>
    %cst_192 = arith.constant dense<0.000000e+00> : vector<15x128xf32>
    %337 = tpu.matmul %334, %336, %cst_192 {dimension_numbers = #tpu.dot_dimension_numbers<[1], [0], [0], [1], [0, 0, 1, 1], [], []>} : vector<15x32xf32>, vector<32x128xf32>, vector<15x128xf32> -> vector<15x128xf32>
    %c1_193 = arith.constant 1 : index
    %c0_194 = arith.constant 0 : index
    %c0_195 = arith.constant 0 : index
    %338 = vector.load %arg11[%c1_193, %c0_194, %c0_195] : memref<2x1x128xf32, #tpu.memory_space<vmem>>, vector<1x1x128xf32>
    %339 = vector.shape_cast %338 : vector<1x1x128xf32> to vector<1x128xf32>
    %340 = vector.broadcast %339 : vector<1x128xf32> to vector<15x128xf32>
    %341 = arith.addf %337, %340 : vector<15x128xf32>
    %cst_196 = arith.constant 5.000000e-01 : f32
    %342 = vector.broadcast %cst_196 : f32 to vector<15x128xf32>
    %343 = arith.mulf %342, %341 : vector<15x128xf32>
    %cst_197 = arith.constant 0.707106769 : f32
    %344 = vector.broadcast %cst_197 : f32 to vector<15x128xf32>
    %345 = arith.mulf %341, %344 : vector<15x128xf32>
    %346 = math.absf %345 : vector<15x128xf32>
    %cst_198 = arith.constant 0.327591091 : f32
    %347 = vector.broadcast %cst_198 : f32 to vector<15x128xf32>
    %348 = arith.mulf %347, %346 : vector<15x128xf32>
    %cst_199 = arith.constant 1.000000e+00 : f32
    %349 = vector.broadcast %cst_199 : f32 to vector<15x128xf32>
    %350 = arith.addf %349, %348 : vector<15x128xf32>
    %cst_200 = arith.constant 1.000000e+00 : f32
    %351 = vector.broadcast %cst_200 : f32 to vector<15x128xf32>
    %352 = arith.divf %351, %350 : vector<15x128xf32>
    %cst_201 = arith.constant 1.06140542 : f32
    %353 = vector.broadcast %cst_201 : f32 to vector<15x128xf32>
    %354 = arith.mulf %353, %352 : vector<15x128xf32>
    %cst_202 = arith.constant -1.45315206 : f32
    %355 = vector.broadcast %cst_202 : f32 to vector<15x128xf32>
    %356 = arith.addf %354, %355 : vector<15x128xf32>
    %357 = arith.mulf %356, %352 : vector<15x128xf32>
    %cst_203 = arith.constant 1.42141378 : f32
    %358 = vector.broadcast %cst_203 : f32 to vector<15x128xf32>
    %359 = arith.addf %357, %358 : vector<15x128xf32>
    %360 = arith.mulf %359, %352 : vector<15x128xf32>
    %cst_204 = arith.constant -0.284496725 : f32
    %361 = vector.broadcast %cst_204 : f32 to vector<15x128xf32>
    %362 = arith.addf %360, %361 : vector<15x128xf32>
    %363 = arith.mulf %362, %352 : vector<15x128xf32>
    %cst_205 = arith.constant 0.254829586 : f32
    %364 = vector.broadcast %cst_205 : f32 to vector<15x128xf32>
    %365 = arith.addf %363, %364 : vector<15x128xf32>
    %366 = arith.mulf %365, %352 : vector<15x128xf32>
    %cst_206 = arith.constant 0.000000e+00 : f32
    %367 = vector.broadcast %cst_206 : f32 to vector<15x128xf32>
    %368 = arith.subf %367, %346 : vector<15x128xf32>
    %369 = arith.mulf %368, %346 : vector<15x128xf32>
    %370 = math.exp %369 : vector<15x128xf32>
    %371 = arith.mulf %366, %370 : vector<15x128xf32>
    %cst_207 = arith.constant 1.000000e+00 : f32
    %372 = vector.broadcast %cst_207 : f32 to vector<15x128xf32>
    %373 = arith.subf %372, %371 : vector<15x128xf32>
    %cst_208 = arith.constant 0.000000e+00 : f32
    %374 = vector.broadcast %cst_208 : f32 to vector<15x128xf32>
    %375 = arith.cmpf oge, %345, %374 : vector<15x128xf32>
    %cst_209 = arith.constant 0.000000e+00 : f32
    %376 = vector.broadcast %cst_209 : f32 to vector<15x128xf32>
    %377 = arith.subf %376, %373 : vector<15x128xf32>
    %378 = arith.select %375, %373, %377 : vector<15x128xi1>, vector<15x128xf32>
    %cst_210 = arith.constant 1.000000e+00 : f32
    %379 = vector.broadcast %cst_210 : f32 to vector<15x128xf32>
    %380 = arith.addf %379, %378 : vector<15x128xf32>
    %381 = arith.mulf %343, %380 : vector<15x128xf32>
    %c1_211 = arith.constant 1 : index
    %c0_212 = arith.constant 0 : index
    %c0_213 = arith.constant 0 : index
    %382 = vector.load %arg12[%c1_211, %c0_212, %c0_213] : memref<2x128x32xf32, #tpu.memory_space<vmem>>, vector<1x128x32xf32>
    %383 = vector.shape_cast %382 : vector<1x128x32xf32> to vector<128x32xf32>
    %cst_214 = arith.constant dense<0.000000e+00> : vector<15x32xf32>
    %384 = tpu.matmul %381, %383, %cst_214 {dimension_numbers = #tpu.dot_dimension_numbers<[1], [0], [0], [1], [0, 0, 1, 1], [], []>} : vector<15x128xf32>, vector<128x32xf32>, vector<15x32xf32> -> vector<15x32xf32>
    %385 = arith.addf %308, %384 : vector<15x32xf32>
    %c1_215 = arith.constant 1 : index
    %c5_216 = arith.constant 5 : index
    %c0_217 = arith.constant 0 : index
    %c0_218 = arith.constant 0 : index
    %386 = vector.load %arg13[%c1_215, %c5_216, %c0_217, %c0_218] : memref<2x6x1x32xf32, #tpu.memory_space<vmem>>, vector<1x1x1x32xf32>
    %387 = vector.shape_cast %386 : vector<1x1x1x32xf32> to vector<1x32xf32>
    %388 = vector.broadcast %387 : vector<1x32xf32> to vector<15x32xf32>
    %389 = arith.addf %385, %388 : vector<15x32xf32>
    %c0_219 = arith.constant 0 : index
    %c0_220 = arith.constant 0 : index
    %390 = vector.load %arg3[%c0_219, %c0_220] : memref<3x15xf32, #tpu.memory_space<vmem>>, vector<3x15xf32>
    %cst_221 = arith.constant dense<0.000000e+00> : vector<3x32xf32>
    %391 = tpu.matmul %390, %389, %cst_221 {dimension_numbers = #tpu.dot_dimension_numbers<[1], [0], [0], [1], [0, 0, 1, 1], [], []>} : vector<3x15xf32>, vector<15x32xf32>, vector<3x32xf32> -> vector<3x32xf32>
    %c0_222 = arith.constant 0 : index
    %c0_223 = arith.constant 0 : index
    %c0_224 = arith.constant 0 : index
    %392 = vector.load %arg14[%c0_222, %c0_223, %c0_224] : memref<2x1x32xf32, #tpu.memory_space<vmem>>, vector<1x1x32xf32>
    %393 = vector.shape_cast %392 : vector<1x1x32xf32> to vector<1x32xf32>
    %c1_225 = arith.constant 1 : index
    %c0_226 = arith.constant 0 : index
    %c0_227 = arith.constant 0 : index
    %394 = vector.load %arg14[%c1_225, %c0_226, %c0_227] : memref<2x1x32xf32, #tpu.memory_space<vmem>>, vector<1x1x32xf32>
    %395 = vector.shape_cast %394 : vector<1x1x32xf32> to vector<1x32xf32>
    %cst_228 = arith.constant dense<0.000000e+00> : vector<3xf32>
    %396 = vector.multi_reduction <add>, %391, %cst_228 [1] : vector<3x32xf32> to vector<3xf32>
    %397 = vector.shape_cast %396 : vector<3xf32> to vector<3x1xf32>
    %cst_229 = arith.constant 3.200000e+01 : f32
    %398 = vector.broadcast %cst_229 : f32 to vector<3x1xf32>
    %399 = arith.divf %397, %398 : vector<3x1xf32>
    %400 = vector.broadcast %399 : vector<3x1xf32> to vector<3x32xf32>
    %401 = arith.subf %391, %400 : vector<3x32xf32>
    %402 = arith.mulf %401, %401 : vector<3x32xf32>
    %cst_230 = arith.constant dense<0.000000e+00> : vector<3xf32>
    %403 = vector.multi_reduction <add>, %402, %cst_230 [1] : vector<3x32xf32> to vector<3xf32>
    %404 = vector.shape_cast %403 : vector<3xf32> to vector<3x1xf32>
    %cst_231 = arith.constant 3.200000e+01 : f32
    %405 = vector.broadcast %cst_231 : f32 to vector<3x1xf32>
    %406 = arith.divf %404, %405 : vector<3x1xf32>
    %407 = vector.broadcast %399 : vector<3x1xf32> to vector<3x32xf32>
    %408 = arith.subf %391, %407 : vector<3x32xf32>
    %cst_232 = arith.constant 9.99999997E-7 : f32
    %409 = vector.broadcast %cst_232 : f32 to vector<3x1xf32>
    %410 = arith.addf %406, %409 : vector<3x1xf32>
    %411 = math.rsqrt %410 : vector<3x1xf32>
    %412 = vector.broadcast %411 : vector<3x1xf32> to vector<3x32xf32>
    %413 = arith.mulf %408, %412 : vector<3x32xf32>
    %414 = vector.broadcast %393 : vector<1x32xf32> to vector<3x32xf32>
    %415 = arith.mulf %413, %414 : vector<3x32xf32>
    %416 = vector.broadcast %395 : vector<1x32xf32> to vector<3x32xf32>
    %417 = arith.addf %415, %416 : vector<3x32xf32>
    %418 = vector.extract_strided_slice %417 {offsets = [0, 0], sizes = [1, 32], strides = [1, 1]} : vector<3x32xf32> to vector<1x32xf32>
    %c0_233 = arith.constant 0 : index
    %c0_234 = arith.constant 0 : index
    %c0_235 = arith.constant 0 : index
    %419 = vector.load %arg15[%c0_233, %c0_234, %c0_235] : memref<4x32x32xf32, #tpu.memory_space<vmem>>, vector<1x32x32xf32>
    %420 = vector.shape_cast %419 : vector<1x32x32xf32> to vector<32x32xf32>
    %cst_236 = arith.constant dense<0.000000e+00> : vector<1x32xf32>
    %421 = tpu.matmul %418, %420, %cst_236 {dimension_numbers = #tpu.dot_dimension_numbers<[1], [0], [0], [1], [0, 0, 1, 1], [], []>} : vector<1x32xf32>, vector<32x32xf32>, vector<1x32xf32> -> vector<1x32xf32>
    %c0_237 = arith.constant 0 : index
    %c0_238 = arith.constant 0 : index
    %c0_239 = arith.constant 0 : index
    %422 = vector.load %arg16[%c0_237, %c0_238, %c0_239] : memref<4x1x32xf32, #tpu.memory_space<vmem>>, vector<1x1x32xf32>
    %423 = vector.shape_cast %422 : vector<1x1x32xf32> to vector<1x32xf32>
    %424 = arith.addf %421, %423 : vector<1x32xf32>
    %c1_240 = arith.constant 1 : index
    %c0_241 = arith.constant 0 : index
    %c0_242 = arith.constant 0 : index
    %425 = vector.load %arg15[%c1_240, %c0_241, %c0_242] : memref<4x32x32xf32, #tpu.memory_space<vmem>>, vector<1x32x32xf32>
    %426 = vector.shape_cast %425 : vector<1x32x32xf32> to vector<32x32xf32>
    %cst_243 = arith.constant dense<0.000000e+00> : vector<3x32xf32>
    %427 = tpu.matmul %417, %426, %cst_243 {dimension_numbers = #tpu.dot_dimension_numbers<[1], [0], [0], [1], [0, 0, 1, 1], [], []>} : vector<3x32xf32>, vector<32x32xf32>, vector<3x32xf32> -> vector<3x32xf32>
    %c1_244 = arith.constant 1 : index
    %c0_245 = arith.constant 0 : index
    %c0_246 = arith.constant 0 : index
    %428 = vector.load %arg16[%c1_244, %c0_245, %c0_246] : memref<4x1x32xf32, #tpu.memory_space<vmem>>, vector<1x1x32xf32>
    %429 = vector.shape_cast %428 : vector<1x1x32xf32> to vector<1x32xf32>
    %430 = vector.broadcast %429 : vector<1x32xf32> to vector<3x32xf32>
    %431 = arith.addf %427, %430 : vector<3x32xf32>
    %c2_247 = arith.constant 2 : index
    %c0_248 = arith.constant 0 : index
    %c0_249 = arith.constant 0 : index
    %432 = vector.load %arg15[%c2_247, %c0_248, %c0_249] : memref<4x32x32xf32, #tpu.memory_space<vmem>>, vector<1x32x32xf32>
    %433 = vector.shape_cast %432 : vector<1x32x32xf32> to vector<32x32xf32>
    %cst_250 = arith.constant dense<0.000000e+00> : vector<3x32xf32>
    %434 = tpu.matmul %417, %433, %cst_250 {dimension_numbers = #tpu.dot_dimension_numbers<[1], [0], [0], [1], [0, 0, 1, 1], [], []>} : vector<3x32xf32>, vector<32x32xf32>, vector<3x32xf32> -> vector<3x32xf32>
    %c2_251 = arith.constant 2 : index
    %c0_252 = arith.constant 0 : index
    %c0_253 = arith.constant 0 : index
    %435 = vector.load %arg16[%c2_251, %c0_252, %c0_253] : memref<4x1x32xf32, #tpu.memory_space<vmem>>, vector<1x1x32xf32>
    %436 = vector.shape_cast %435 : vector<1x1x32xf32> to vector<1x32xf32>
    %437 = vector.broadcast %436 : vector<1x32xf32> to vector<3x32xf32>
    %438 = arith.addf %434, %437 : vector<3x32xf32>
    %cst_254 = arith.constant dense<0.000000e+00> : vector<1x3xf32>
    %439 = tpu.matmul %424, %431, %cst_254 {dimension_numbers = #tpu.dot_dimension_numbers<[1], [1], [0], [0], [0, 0, 1, 0], [], []>} : vector<1x32xf32>, vector<3x32xf32>, vector<1x3xf32> -> vector<1x3xf32>
    %cst_255 = arith.constant 0.176776692 : f32
    %440 = vector.broadcast %cst_255 : f32 to vector<1x3xf32>
    %441 = arith.mulf %439, %440 : vector<1x3xf32>
    %cst_256 = arith.constant dense<0xFF800000> : vector<1xf32>
    %442 = vector.multi_reduction <maximumf>, %441, %cst_256 [1] : vector<1x3xf32> to vector<1xf32>
    %443 = vector.shape_cast %442 : vector<1xf32> to vector<1x1xf32>
    %444 = vector.broadcast %443 : vector<1x1xf32> to vector<1x3xf32>
    %445 = arith.subf %441, %444 : vector<1x3xf32>
    %446 = math.exp %445 : vector<1x3xf32>
    %cst_257 = arith.constant dense<0.000000e+00> : vector<1xf32>
    %447 = vector.multi_reduction <add>, %446, %cst_257 [1] : vector<1x3xf32> to vector<1xf32>
    %448 = vector.shape_cast %447 : vector<1xf32> to vector<1x1xf32>
    %449 = tpu.reciprocal %448 {approx = true} : vector<1x1xf32> -> vector<1x1xf32>
    %450 = vector.broadcast %449 : vector<1x1xf32> to vector<1x3xf32>
    %451 = arith.mulf %446, %450 : vector<1x3xf32>
    %cst_258 = arith.constant dense<0.000000e+00> : vector<1x32xf32>
    %452 = tpu.matmul %451, %438, %cst_258 {dimension_numbers = #tpu.dot_dimension_numbers<[1], [0], [0], [1], [0, 0, 1, 1], [], []>} : vector<1x3xf32>, vector<3x32xf32>, vector<1x32xf32> -> vector<1x32xf32>
    %c3_259 = arith.constant 3 : index
    %c0_260 = arith.constant 0 : index
    %c0_261 = arith.constant 0 : index
    %453 = vector.load %arg15[%c3_259, %c0_260, %c0_261] : memref<4x32x32xf32, #tpu.memory_space<vmem>>, vector<1x32x32xf32>
    %454 = vector.shape_cast %453 : vector<1x32x32xf32> to vector<32x32xf32>
    %cst_262 = arith.constant dense<0.000000e+00> : vector<1x32xf32>
    %455 = tpu.matmul %452, %454, %cst_262 {dimension_numbers = #tpu.dot_dimension_numbers<[1], [0], [0], [1], [0, 0, 1, 1], [], []>} : vector<1x32xf32>, vector<32x32xf32>, vector<1x32xf32> -> vector<1x32xf32>
    %c3_263 = arith.constant 3 : index
    %c0_264 = arith.constant 0 : index
    %c0_265 = arith.constant 0 : index
    %456 = vector.load %arg16[%c3_263, %c0_264, %c0_265] : memref<4x1x32xf32, #tpu.memory_space<vmem>>, vector<1x1x32xf32>
    %457 = vector.shape_cast %456 : vector<1x1x32xf32> to vector<1x32xf32>
    %458 = arith.addf %455, %457 : vector<1x32xf32>
    %c0_266 = arith.constant 0 : index
    %c0_267 = arith.constant 0 : index
    %c0_268 = arith.constant 0 : index
    %459 = vector.load %arg19[%c0_266, %c0_267, %c0_268] : memref<1x1x32xf32, #tpu.memory_space<vmem>>, vector<1x1x32xf32>
    %460 = vector.shape_cast %459 : vector<1x1x32xf32> to vector<1x32xf32>
    %461 = vector.shape_cast %458 : vector<1x32xf32> to vector<1x1x32xf32>
    tpu.vector_store %arg19[%c0_266, %c0_267, %c0_268], %461 {strides = array<i32>} : memref<1x1x32xf32, #tpu.memory_space<vmem>>, vector<1x1x32xf32>,
    %c0_269 = arith.constant 0 : index
    %c0_270 = arith.constant 0 : index
    %462 = vector.load %arg17[%c0_269, %c0_270] : memref<32x2xf32, #tpu.memory_space<vmem>>, vector<32x2xf32>
    %cst_271 = arith.constant dense<0.000000e+00> : vector<1x2xf32>
    %463 = tpu.matmul %458, %462, %cst_271 {dimension_numbers = #tpu.dot_dimension_numbers<[1], [0], [0], [1], [0, 0, 1, 1], [], []>} : vector<1x32xf32>, vector<32x2xf32>, vector<1x2xf32> -> vector<1x2xf32>
    %c0_272 = arith.constant 0 : index
    %c0_273 = arith.constant 0 : index
    %464 = vector.load %arg18[%c0_272, %c0_273] : memref<1x2xf32, #tpu.memory_space<vmem>>, vector<1x2xf32>
    %465 = arith.addf %463, %464 : vector<1x2xf32>
    %c0_274 = arith.constant 0 : index
    %c0_275 = arith.constant 0 : index
    %c0_276 = arith.constant 0 : index
    %466 = vector.load %arg20[%c0_274, %c0_275, %c0_276] : memref<1x1x2xf32, #tpu.memory_space<vmem>>, vector<1x1x2xf32>
    %467 = vector.shape_cast %466 : vector<1x1x2xf32> to vector<1x2xf32>
    %468 = vector.shape_cast %465 : vector<1x2xf32> to vector<1x1x2xf32>
    tpu.vector_store %arg20[%c0_274, %c0_275, %c0_276], %468 {strides = array<i32>} : memref<1x1x2xf32, #tpu.memory_space<vmem>>, vector<1x1x2xf32>,
    return
  }
  func.func @transform_0(%arg0: i32) -> (i32, i32, i32) {
    %c0_i32 = arith.constant 0 : i32
    %c0_i32_0 = arith.constant 0 : i32
    %c0_i32_1 = arith.constant 0 : i32
    return %arg0, %c0_i32, %c0_i32_0 : i32, i32, i32
  }
  func.func @transform_1(%arg0: i32) -> (i32, i32) {
    %c0_i32 = arith.constant 0 : i32
    %c0_i32_0 = arith.constant 0 : i32
    %c0_i32_1 = arith.constant 0 : i32
    return %c0_i32, %c0_i32_0 : i32, i32
  }
  func.func @transform_2(%arg0: i32) -> (i32, i32) {
    %c0_i32 = arith.constant 0 : i32
    %c0_i32_0 = arith.constant 0 : i32
    %c0_i32_1 = arith.constant 0 : i32
    return %c0_i32, %c0_i32_0 : i32, i32
  }
  func.func @transform_3(%arg0: i32) -> (i32, i32) {
    %c0_i32 = arith.constant 0 : i32
    %c0_i32_0 = arith.constant 0 : i32
    %c0_i32_1 = arith.constant 0 : i32
    return %c0_i32, %c0_i32_0 : i32, i32
  }
  func.func @transform_4(%arg0: i32) -> (i32, i32) {
    %c0_i32 = arith.constant 0 : i32
    %c0_i32_0 = arith.constant 0 : i32
    %c0_i32_1 = arith.constant 0 : i32
    return %c0_i32, %c0_i32_0 : i32, i32
  }
  func.func @transform_5(%arg0: i32) -> (i32, i32) {
    %c0_i32 = arith.constant 0 : i32
    %c0_i32_0 = arith.constant 0 : i32
    %c0_i32_1 = arith.constant 0 : i32
    return %c0_i32, %c0_i32_0 : i32, i32
  }
  func.func @transform_6(%arg0: i32) -> (i32, i32, i32, i32) {
    %c0_i32 = arith.constant 0 : i32
    %c0_i32_0 = arith.constant 0 : i32
    %c0_i32_1 = arith.constant 0 : i32
    %c0_i32_2 = arith.constant 0 : i32
    %c0_i32_3 = arith.constant 0 : i32
    return %c0_i32, %c0_i32_0, %c0_i32_1, %c0_i32_2 : i32, i32, i32, i32
  }
  func.func @transform_7(%arg0: i32) -> (i32, i32, i32, i32) {
    %c0_i32 = arith.constant 0 : i32
    %c0_i32_0 = arith.constant 0 : i32
    %c0_i32_1 = arith.constant 0 : i32
    %c0_i32_2 = arith.constant 0 : i32
    %c0_i32_3 = arith.constant 0 : i32
    return %c0_i32, %c0_i32_0, %c0_i32_1, %c0_i32_2 : i32, i32, i32, i32
  }
  func.func @transform_8(%arg0: i32) -> (i32, i32, i32) {
    %c0_i32 = arith.constant 0 : i32
    %c0_i32_0 = arith.constant 0 : i32
    %c0_i32_1 = arith.constant 0 : i32
    %c0_i32_2 = arith.constant 0 : i32
    return %c0_i32, %c0_i32_0, %c0_i32_1 : i32, i32, i32
  }
  func.func @transform_9(%arg0: i32) -> (i32, i32, i32) {
    %c0_i32 = arith.constant 0 : i32
    %c0_i32_0 = arith.constant 0 : i32
    %c0_i32_1 = arith.constant 0 : i32
    %c0_i32_2 = arith.constant 0 : i32
    return %c0_i32, %c0_i32_0, %c0_i32_1 : i32, i32, i32
  }
  func.func @transform_10(%arg0: i32) -> (i32, i32, i32) {
    %c0_i32 = arith.constant 0 : i32
    %c0_i32_0 = arith.constant 0 : i32
    %c0_i32_1 = arith.constant 0 : i32
    %c0_i32_2 = arith.constant 0 : i32
    return %c0_i32, %c0_i32_0, %c0_i32_1 : i32, i32, i32
  }
  func.func @transform_11(%arg0: i32) -> (i32, i32, i32) {
    %c0_i32 = arith.constant 0 : i32
    %c0_i32_0 = arith.constant 0 : i32
    %c0_i32_1 = arith.constant 0 : i32
    %c0_i32_2 = arith.constant 0 : i32
    return %c0_i32, %c0_i32_0, %c0_i32_1 : i32, i32, i32
  }
  func.func @transform_12(%arg0: i32) -> (i32, i32, i32, i32) {
    %c0_i32 = arith.constant 0 : i32
    %c0_i32_0 = arith.constant 0 : i32
    %c0_i32_1 = arith.constant 0 : i32
    %c0_i32_2 = arith.constant 0 : i32
    %c0_i32_3 = arith.constant 0 : i32
    return %c0_i32, %c0_i32_0, %c0_i32_1, %c0_i32_2 : i32, i32, i32, i32
  }
  func.func @transform_13(%arg0: i32) -> (i32, i32, i32) {
    %c0_i32 = arith.constant 0 : i32
    %c0_i32_0 = arith.constant 0 : i32
    %c0_i32_1 = arith.constant 0 : i32
    %c0_i32_2 = arith.constant 0 : i32
    return %c0_i32, %c0_i32_0, %c0_i32_1 : i32, i32, i32
  }
  func.func @transform_14(%arg0: i32) -> (i32, i32, i32) {
    %c0_i32 = arith.constant 0 : i32
    %c0_i32_0 = arith.constant 0 : i32
    %c0_i32_1 = arith.constant 0 : i32
    %c0_i32_2 = arith.constant 0 : i32
    return %c0_i32, %c0_i32_0, %c0_i32_1 : i32, i32, i32
  }
  func.func @transform_15(%arg0: i32) -> (i32, i32, i32) {
    %c0_i32 = arith.constant 0 : i32
    %c0_i32_0 = arith.constant 0 : i32
    %c0_i32_1 = arith.constant 0 : i32
    %c0_i32_2 = arith.constant 0 : i32
    return %c0_i32, %c0_i32_0, %c0_i32_1 : i32, i32, i32
  }
  func.func @transform_16(%arg0: i32) -> (i32, i32) {
    %c0_i32 = arith.constant 0 : i32
    %c0_i32_0 = arith.constant 0 : i32
    %c0_i32_1 = arith.constant 0 : i32
    return %c0_i32, %c0_i32_0 : i32, i32
  }
  func.func @transform_17(%arg0: i32) -> (i32, i32) {
    %c0_i32 = arith.constant 0 : i32
    %c0_i32_0 = arith.constant 0 : i32
    %c0_i32_1 = arith.constant 0 : i32
    return %c0_i32, %c0_i32_0 : i32, i32
  }
  func.func @transform_18(%arg0: i32) -> (i32, i32, i32) {
    %c0_i32 = arith.constant 0 : i32
    %c0_i32_0 = arith.constant 0 : i32
    %c0_i32_1 = arith.constant 0 : i32
    return %arg0, %c0_i32, %c0_i32_0 : i32, i32, i32
  }
  func.func @transform_19(%arg0: i32) -> (i32, i32, i32) {
    %c0_i32 = arith.constant 0 : i32
    %c0_i32_0 = arith.constant 0 : i32
    %c0_i32_1 = arith.constant 0 : i32
    return %arg0, %c0_i32, %c0_i32_0 : i32, i32, i32
  }
}

</mosaic_0001>

<llo_original>
// kernel: vitdino_forward.1
$region0: #{vitdino_forward.1}
  #allocation0 [shape = 'u32[]', space=smem, size = 0x4, offset = 0x4, fixed_abs, tag = 'smem constant byte address 0x4 - core index']
  #allocation1 [shape = 'u32[144,128]{1,0:T(1,128)}', space=vmem, size = 0x12000, scoped, tag = 'internal scratch']
  %s0 = inlined_call_operand.vmem [shape: f32[2,12,192], index: 0, kind: input, shape index: {}]
  %s1 = inlined_call_operand.vmem [shape: f32[15,12], index: 1, kind: input, shape index: {}]
  %s2 = inlined_call_operand.vmem [shape: f32[3,15], index: 2, kind: input, shape index: {}]
  %s3 = inlined_call_operand.vmem [shape: f32[15,15], index: 3, kind: input, shape index: {}]
  %s4 = inlined_call_operand.vmem [shape: f32[192,32], index: 4, kind: input, shape index: {}]
  %s5 = inlined_call_operand.vmem [shape: f32[15,32], index: 5, kind: input, shape index: {}]
  %s6 = inlined_call_operand.vmem [shape: f32[2,3,32,32], index: 6, kind: input, shape index: {}]
  %s7 = inlined_call_operand.vmem [shape: f32[2,3,1,32], index: 7, kind: input, shape index: {}]
  %s8 = inlined_call_operand.vmem [shape: f32[2,32,32], index: 8, kind: input, shape index: {}]
  %s9 = inlined_call_operand.vmem [shape: f32[2,32,128], index: 9, kind: input, shape index: {}]
  %s10 = inlined_call_operand.vmem [shape: f32[2,1,128], index: 10, kind: input, shape index: {}]
  %s11 = inlined_call_operand.vmem [shape: f32[2,128,32], index: 11, kind: input, shape index: {}]
  %s12 = inlined_call_operand.vmem [shape: f32[2,6,1,32], index: 12, kind: input, shape index: {}]
  %s13 = inlined_call_operand.vmem [shape: f32[2,1,32], index: 13, kind: input, shape index: {}]
  %s14 = inlined_call_operand.vmem [shape: f32[4,32,32], index: 14, kind: input, shape index: {}]
  %s15 = inlined_call_operand.vmem [shape: f32[4,1,32], index: 15, kind: input, shape index: {}]
  %s16 = inlined_call_operand.vmem [shape: f32[32,2], index: 16, kind: input, shape index: {}]
  %s17 = inlined_call_operand.vmem [shape: f32[1,2], index: 17, kind: input, shape index: {}]
  %s18 = inlined_call_operand.hbm [shape: f32[2,1,32], index: 18, kind: output, shape index: {0}]
  %s19 = inlined_call_operand.hbm [shape: f32[2,1,2], index: 19, kind: output, shape index: {1}]
  %20 = xla_tuple %s18, %s19
  %s21 = sld [smem:[#allocation0]]
  $region113: #{vitdino_forward.1} parent=0
    _
  %s23 = ssub.s32 1, %s21
  %s24 = scalar_select 0, %s23, %s21
  $region1: #{vitdino_forward.1} parent=0
    #allocation2 [shape = 'u8[1024]{0}', space=vmem, size = 0x400, scoped, tag = 'output window, operand 0']
    #allocation3 [shape = 's32[2]{0}', space=sflag, size = 0x8, scoped, tag = 'scoped memory for vitdino_forward.1']
    #allocation4 [shape = 'u8[1024]{0}', space=vmem, size = 0x400, scoped, tag = 'output window, operand 1']
    #allocation5 [shape = 's32[2]{0}', space=sflag, size = 0x8, scoped, tag = 'scoped memory for vitdino_forward.1']
    %25 = vsyncpa [#allocation3], 0
    %s26 = scalar_lea.sflag [#allocation3], 1
    %27 = vsyncpa %s26, 0
    %28 = vsyncpa [#allocation5], 0
    %s29 = scalar_lea.sflag [#allocation5], 1
    %30 = vsyncpa %s29, 0
    loop: start=0, step=1, limit=4
    $region2: #{vitdino_forward.1} parent=1 // loop_pre_header
      _
    $region3: #{vitdino_forward.1} parent=1 // loop_header
      %s32 = sphi 0, %s36
      %p33 = scmp.ge.s32.totalorder %s32, 4
      %s42 = sphi 0, %s44
      %s45 = sphi 0, %s42
      %s46 = sphi 0, %s45
      %s62 = sphi 0, %s46
      %s66 = sphi 0, %s66
      %s68 = sphi 0, %s66
      %s69 = sphi 0, %s68
      %s83 = sphi 0, %s69
      %s87 = sphi 0, %s87
      %s89 = sphi 0, %s87
      %s90 = sphi 0, %s89
      %s104 = sphi 0, %s90
      %s108 = sphi 0, %s108
      %s110 = sphi 0, %s108
      %s111 = sphi 0, %s110
      %s125 = sphi 0, %s111
      %s129 = sphi 0, %s129
      %s131 = sphi 0, %s129
      %s132 = sphi 0, %s131
      %s146 = sphi 0, %s132
      %s150 = sphi 0, %s150
      %s152 = sphi 0, %s150
      %s153 = sphi 0, %s152
      %s167 = sphi 0, %s153
      %s171 = sphi 0, %s171
      %s173 = sphi 0, %s171
      %s174 = sphi 0, %s173
      %s188 = sphi 0, %s174
      %s192 = sphi 0, %s192
      %s194 = sphi 0, %s192
      %s195 = sphi 0, %s194
      %s209 = sphi 0, %s195
      %s213 = sphi 0, %s213
      %s215 = sphi 0, %s213
      %s216 = sphi 0, %s215
      %s230 = sphi 0, %s216
      %s234 = sphi 0, %s234
      %s236 = sphi 0, %s234
      %s237 = sphi 0, %s236
      %s251 = sphi 0, %s237
      %s255 = sphi 0, %s255
      %s257 = sphi 0, %s255
      %s258 = sphi 0, %s257
      %s272 = sphi 0, %s258
      %s276 = sphi 0, %s276
      %s278 = sphi 0, %s276
      %s279 = sphi 0, %s278
      %s293 = sphi 0, %s279
      %s297 = sphi 0, %s297
      %s299 = sphi 0, %s297
      %s300 = sphi 0, %s299
      %s314 = sphi 0, %s300
      %s318 = sphi 0, %s318
      %s320 = sphi 0, %s318
      %s321 = sphi 0, %s320
      %s335 = sphi 0, %s321
      %s339 = sphi 0, %s339
      %s341 = sphi 0, %s339
      %s342 = sphi 0, %s341
      %s356 = sphi 0, %s342
      %s360 = sphi 0, %s360
      %s362 = sphi 0, %s360
      %s363 = sphi 0, %s362
      %s377 = sphi 0, %s363
      %s381 = sphi 0, %s381
      %s383 = sphi 0, %s381
      %s384 = sphi 0, %s383
      %s398 = sphi 0, %s384
      %s402 = sphi 0, %s402
      %s404 = sphi 0, %s402
      %s405 = sphi 0, %s404
      %s419 = sphi 0, %s405
      %s425 = sphi 0, %s427
      %s428 = sphi 0, %s425
      %s429 = sphi 0, %s428
      %s445 = sphi 0, %s429
      %s451 = sphi 0, %s453
      %s454 = sphi 0, %s451
      %s455 = sphi 0, %s454
      %s471 = sphi 0, %s455
    $region4: #{vitdino_forward.1} parent=1 // loop_header_branch
      %35 = sbr.rel (%p33) target = $region8
    $region5: #{vitdino_forward.1} parent=1 // loop_body
      %s37 = ssub.s32 %s32, 1
      %s38 = ssub.s32 %s32, 2
      %s39 = sadd.s32 %s32, 1
      %s40 = ssub.s32 %s32, %s39
      %p41 = scmp.eq.s32.totalorder %s40, 0
      %s43 = sadd.s32 %s42, 1
      %s44 = scalar_select %p41, %s42, %s43
      %p47 = pneg %p41
      %p48 = scmp.eq.s32.totalorder %s32, 1
      %p49 = por %p47, %p48
      %p50 = scmp.ne.s32.totalorder %s42, %s45
      %p51 = scmp.eq.s32.totalorder %s32, 0
      %p52 = por %p50, %p51
      %p53 = scmp.ne.s32.totalorder %s42, %s45
      %p54 = scmp.eq.s32.totalorder %s37, 1
      %p55 = por %p53, %p54
      %p56 = scmp.ne.s32.totalorder %s45, %s46
      %p57 = scmp.eq.s32.totalorder %s37, 0
      %p58 = por %p56, %p57
      %p59 = scmp.ne.s32.totalorder %s45, %s46
      %p60 = scmp.eq.s32.totalorder %s38, 1
      %p61 = por %p59, %p60
      %p63 = scmp.ne.s32.totalorder %s46, %s62
      %p64 = scmp.eq.s32.totalorder %s38, 0
      %p65 = por %p63, %p64
      %s67 = sadd.s32 %s66, 1
      %p70 = scmp.eq.s32.totalorder %s32, 1
      %p71 = scmp.ne.s32.totalorder %s66, %s68
      %p72 = scmp.eq.s32.totalorder %s32, 0
      %p73 = por %p71, %p72
      %p74 = scmp.ne.s32.totalorder %s66, %s68
      %p75 = scmp.eq.s32.totalorder %s37, 1
      %p76 = por %p74, %p75
      %p77 = scmp.ne.s32.totalorder %s68, %s69
      %p78 = scmp.eq.s32.totalorder %s37, 0
      %p79 = por %p77, %p78
      %p80 = scmp.ne.s32.totalorder %s68, %s69
      %p81 = scmp.eq.s32.totalorder %s38, 1
      %p82 = por %p80, %p81
      %p84 = scmp.ne.s32.totalorder %s69, %s83
      %p85 = scmp.eq.s32.totalorder %s38, 0
      %p86 = por %p84, %p85
      %s88 = sadd.s32 %s87, 1
      %p91 = scmp.eq.s32.totalorder %s32, 1
      %p92 = scmp.ne.s32.totalorder %s87, %s89
      %p93 = scmp.eq.s32.totalorder %s32, 0
      %p94 = por %p92, %p93
      %p95 = scmp.ne.s32.totalorder %s87, %s89
      %p96 = scmp.eq.s32.totalorder %s37, 1
      %p97 = por %p95, %p96
      %p98 = scmp.ne.s32.totalorder %s89, %s90
      %p99 = scmp.eq.s32.totalorder %s37, 0
      %p100 = por %p98, %p99
      %p101 = scmp.ne.s32.totalorder %s89, %s90
      %p102 = scmp.eq.s32.totalorder %s38, 1
      %p103 = por %p101, %p102
      %p105 = scmp.ne.s32.totalorder %s90, %s104
      %p106 = scmp.eq.s32.totalorder %s38, 0
      %p107 = por %p105, %p106
      %s109 = sadd.s32 %s108, 1
      %p112 = scmp.eq.s32.totalorder %s32, 1
      %p113 = scmp.ne.s32.totalorder %s108, %s110
      %p114 = scmp.eq.s32.totalorder %s32, 0
      %p115 = por %p113, %p114
      %p116 = scmp.ne.s32.totalorder %s108, %s110
      %p117 = scmp.eq.s32.totalorder %s37, 1
      %p118 = por %p116, %p117
      %p119 = scmp.ne.s32.totalorder %s110, %s111
      %p120 = scmp.eq.s32.totalorder %s37, 0
      %p121 = por %p119, %p120
      %p122 = scmp.ne.s32.totalorder %s110, %s111
      %p123 = scmp.eq.s32.totalorder %s38, 1
      %p124 = por %p122, %p123
      %p126 = scmp.ne.s32.totalorder %s111, %s125
      %p127 = scmp.eq.s32.totalorder %s38, 0
      %p128 = por %p126, %p127
      %s130 = sadd.s32 %s129, 1
      %p133 = scmp.eq.s32.totalorder %s32, 1
      %p134 = scmp.ne.s32.totalorder %s129, %s131
      %p135 = scmp.eq.s32.totalorder %s32, 0
      %p136 = por %p134, %p135
      %p137 = scmp.ne.s32.totalorder %s129, %s131
      %p138 = scmp.eq.s32.totalorder %s37, 1
      %p139 = por %p137, %p138
      %p140 = scmp.ne.s32.totalorder %s131, %s132
      %p141 = scmp.eq.s32.totalorder %s37, 0
      %p142 = por %p140, %p141
      %p143 = scmp.ne.s32.totalorder %s131, %s132
      %p144 = scmp.eq.s32.totalorder %s38, 1
      %p145 = por %p143, %p144
      %p147 = scmp.ne.s32.totalorder %s132, %s146
      %p148 = scmp.eq.s32.totalorder %s38, 0
      %p149 = por %p147, %p148
      %s151 = sadd.s32 %s150, 1
      %p154 = scmp.eq.s32.totalorder %s32, 1
      %p155 = scmp.ne.s32.totalorder %s150, %s152
      %p156 = scmp.eq.s32.totalorder %s32, 0
      %p157 = por %p155, %p156
      %p158 = scmp.ne.s32.totalorder %s150, %s152
      %p159 = scmp.eq.s32.totalorder %s37, 1
      %p160 = por %p158, %p159
      %p161 = scmp.ne.s32.totalorder %s152, %s153
      %p162 = scmp.eq.s32.totalorder %s37, 0
      %p163 = por %p161, %p162
      %p164 = scmp.ne.s32.totalorder %s152, %s153
      %p165 = scmp.eq.s32.totalorder %s38, 1
      %p166 = por %p164, %p165
      %p168 = scmp.ne.s32.totalorder %s153, %s167
      %p169 = scmp.eq.s32.totalorder %s38, 0
      %p170 = por %p168, %p169
      %s172 = sadd.s32 %s171, 1
      %p175 = scmp.eq.s32.totalorder %s32, 1
      %p176 = scmp.ne.s32.totalorder %s171, %s173
      %p177 = scmp.eq.s32.totalorder %s32, 0
      %p178 = por %p176, %p177
      %p179 = scmp.ne.s32.totalorder %s171, %s173
      %p180 = scmp.eq.s32.totalorder %s37, 1
      %p181 = por %p179, %p180
      %p182 = scmp.ne.s32.totalorder %s173, %s174
      %p183 = scmp.eq.s32.totalorder %s37, 0
      %p184 = por %p182, %p183
      %p185 = scmp.ne.s32.totalorder %s173, %s174
      %p186 = scmp.eq.s32.totalorder %s38, 1
      %p187 = por %p185, %p186
      %p189 = scmp.ne.s32.totalorder %s174, %s188
      %p190 = scmp.eq.s32.totalorder %s38, 0
      %p191 = por %p189, %p190
      %s193 = sadd.s32 %s192, 1
      %p196 = scmp.eq.s32.totalorder %s32, 1
      %p197 = scmp.ne.s32.totalorder %s192, %s194
      %p198 = scmp.eq.s32.totalorder %s32, 0
      %p199 = por %p197, %p198
      %p200 = scmp.ne.s32.totalorder %s192, %s194
      %p201 = scmp.eq.s32.totalorder %s37, 1
      %p202 = por %p200, %p201
      %p203 = scmp.ne.s32.totalorder %s194, %s195
      %p204 = scmp.eq.s32.totalorder %s37, 0
      %p205 = por %p203, %p204
      %p206 = scmp.ne.s32.totalorder %s194, %s195
      %p207 = scmp.eq.s32.totalorder %s38, 1
      %p208 = por %p206, %p207
      %p210 = scmp.ne.s32.totalorder %s195, %s209
      %p211 = scmp.eq.s32.totalorder %s38, 0
      %p212 = por %p210, %p211
      %s214 = sadd.s32 %s213, 1
      %p217 = scmp.eq.s32.totalorder %s32, 1
      %p218 = scmp.ne.s32.totalorder %s213, %s215
      %p219 = scmp.eq.s32.totalorder %s32, 0
      %p220 = por %p218, %p219
      %p221 = scmp.ne.s32.totalorder %s213, %s215
      %p222 = scmp.eq.s32.totalorder %s37, 1
      %p223 = por %p221, %p222
      %p224 = scmp.ne.s32.totalorder %s215, %s216
      %p225 = scmp.eq.s32.totalorder %s37, 0
      %p226 = por %p224, %p225
      %p227 = scmp.ne.s32.totalorder %s215, %s216
      %p228 = scmp.eq.s32.totalorder %s38, 1
      %p229 = por %p227, %p228
      %p231 = scmp.ne.s32.totalorder %s216, %s230
      %p232 = scmp.eq.s32.totalorder %s38, 0
      %p233 = por %p231, %p232
      %s235 = sadd.s32 %s234, 1
      %p238 = scmp.eq.s32.totalorder %s32, 1
      %p239 = scmp.ne.s32.totalorder %s234, %s236
      %p240 = scmp.eq.s32.totalorder %s32, 0
      %p241 = por %p239, %p240
      %p242 = scmp.ne.s32.totalorder %s234, %s236
      %p243 = scmp.eq.s32.totalorder %s37, 1
      %p244 = por %p242, %p243
      %p245 = scmp.ne.s32.totalorder %s236, %s237
      %p246 = scmp.eq.s32.totalorder %s37, 0
      %p247 = por %p245, %p246
      %p248 = scmp.ne.s32.totalorder %s236, %s237
      %p249 = scmp.eq.s32.totalorder %s38, 1
      %p250 = por %p248, %p249
      %p252 = scmp.ne.s32.totalorder %s237, %s251
      %p253 = scmp.eq.s32.totalorder %s38, 0
      %p254 = por %p252, %p253
      %s256 = sadd.s32 %s255, 1
      %p259 = scmp.eq.s32.totalorder %s32, 1
      %p260 = scmp.ne.s32.totalorder %s255, %s257
      %p261 = scmp.eq.s32.totalorder %s32, 0
      %p262 = por %p260, %p261
      %p263 = scmp.ne.s32.totalorder %s255, %s257
      %p264 = scmp.eq.s32.totalorder %s37, 1
      %p265 = por %p263, %p264
      %p266 = scmp.ne.s32.totalorder %s257, %s258
      %p267 = scmp.eq.s32.totalorder %s37, 0
      %p268 = por %p266, %p267
      %p269 = scmp.ne.s32.totalorder %s257, %s258
      %p270 = scmp.eq.s32.totalorder %s38, 1
      %p271 = por %p269, %p270
      %p273 = scmp.ne.s32.totalorder %s258, %s272
      %p274 = scmp.eq.s32.totalorder %s38, 0
      %p275 = por %p273, %p274
      %s277 = sadd.s32 %s276, 1
      %p280 = scmp.eq.s32.totalorder %s32, 1
      %p281 = scmp.ne.s32.totalorder %s276, %s278
      %p282 = scmp.eq.s32.totalorder %s32, 0
      %p283 = por %p281, %p282
      %p284 = scmp.ne.s32.totalorder %s276, %s278
      %p285 = scmp.eq.s32.totalorder %s37, 1
      %p286 = por %p284, %p285
      %p287 = scmp.ne.s32.totalorder %s278, %s279
      %p288 = scmp.eq.s32.totalorder %s37, 0
      %p289 = por %p287, %p288
      %p290 = scmp.ne.s32.totalorder %s278, %s279
      %p291 = scmp.eq.s32.totalorder %s38, 1
      %p292 = por %p290, %p291
      %p294 = scmp.ne.s32.totalorder %s279, %s293
      %p295 = scmp.eq.s32.totalorder %s38, 0
      %p296 = por %p294, %p295
      %s298 = sadd.s32 %s297, 1
      %p301 = scmp.eq.s32.totalorder %s32, 1
      %p302 = scmp.ne.s32.totalorder %s297, %s299
      %p303 = scmp.eq.s32.totalorder %s32, 0
      %p304 = por %p302, %p303
      %p305 = scmp.ne.s32.totalorder %s297, %s299
      %p306 = scmp.eq.s32.totalorder %s37, 1
      %p307 = por %p305, %p306
      %p308 = scmp.ne.s32.totalorder %s299, %s300
      %p309 = scmp.eq.s32.totalorder %s37, 0
      %p310 = por %p308, %p309
      %p311 = scmp.ne.s32.totalorder %s299, %s300
      %p312 = scmp.eq.s32.totalorder %s38, 1
      %p313 = por %p311, %p312
      %p315 = scmp.ne.s32.totalorder %s300, %s314
      %p316 = scmp.eq.s32.totalorder %s38, 0
      %p317 = por %p315, %p316
      %s319 = sadd.s32 %s318, 1
      %p322 = scmp.eq.s32.totalorder %s32, 1
      %p323 = scmp.ne.s32.totalorder %s318, %s320
      %p324 = scmp.eq.s32.totalorder %s32, 0
      %p325 = por %p323, %p324
      %p326 = scmp.ne.s32.totalorder %s318, %s320
      %p327 = scmp.eq.s32.totalorder %s37, 1
      %p328 = por %p326, %p327
      %p329 = scmp.ne.s32.totalorder %s320, %s321
      %p330 = scmp.eq.s32.totalorder %s37, 0
      %p331 = por %p329, %p330
      %p332 = scmp.ne.s32.totalorder %s320, %s321
      %p333 = scmp.eq.s32.totalorder %s38, 1
      %p334 = por %p332, %p333
      %p336 = scmp.ne.s32.totalorder %s321, %s335
      %p337 = scmp.eq.s32.totalorder %s38, 0
      %p338 = por %p336, %p337
      %s340 = sadd.s32 %s339, 1
      %p343 = scmp.eq.s32.totalorder %s32, 1
      %p344 = scmp.ne.s32.totalorder %s339, %s341
      %p345 = scmp.eq.s32.totalorder %s32, 0
      %p346 = por %p344, %p345
      %p347 = scmp.ne.s32.totalorder %s339, %s341
      %p348 = scmp.eq.s32.totalorder %s37, 1
      %p349 = por %p347, %p348
      %p350 = scmp.ne.s32.totalorder %s341, %s342
      %p351 = scmp.eq.s32.totalorder %s37, 0
      %p352 = por %p350, %p351
      %p353 = scmp.ne.s32.totalorder %s341, %s342
      %p354 = scmp.eq.s32.totalorder %s38, 1
      %p355 = por %p353, %p354
      %p357 = scmp.ne.s32.totalorder %s342, %s356
      %p358 = scmp.eq.s32.totalorder %s38, 0
      %p359 = por %p357, %p358
      %s361 = sadd.s32 %s360, 1
      %p364 = scmp.eq.s32.totalorder %s32, 1
      %p365 = scmp.ne.s32.totalorder %s360, %s362
      %p366 = scmp.eq.s32.totalorder %s32, 0
      %p367 = por %p365, %p366
      %p368 = scmp.ne.s32.totalorder %s360, %s362
      %p369 = scmp.eq.s32.totalorder %s37, 1
      %p370 = por %p368, %p369
      %p371 = scmp.ne.s32.totalorder %s362, %s363
      %p372 = scmp.eq.s32.totalorder %s37, 0
      %p373 = por %p371, %p372
      %p374 = scmp.ne.s32.totalorder %s362, %s363
      %p375 = scmp.eq.s32.totalorder %s38, 1
      %p376 = por %p374, %p375
      %p378 = scmp.ne.s32.totalorder %s363, %s377
      %p379 = scmp.eq.s32.totalorder %s38, 0
      %p380 = por %p378, %p379
      %s382 = sadd.s32 %s381, 1
      %p385 = scmp.eq.s32.totalorder %s32, 1
      %p386 = scmp.ne.s32.totalorder %s381, %s383
      %p387 = scmp.eq.s32.totalorder %s32, 0
      %p388 = por %p386, %p387
      %p389 = scmp.ne.s32.totalorder %s381, %s383
      %p390 = scmp.eq.s32.totalorder %s37, 1
      %p391 = por %p389, %p390
      %p392 = scmp.ne.s32.totalorder %s383, %s384
      %p393 = scmp.eq.s32.totalorder %s37, 0
      %p394 = por %p392, %p393
      %p395 = scmp.ne.s32.totalorder %s383, %s384
      %p396 = scmp.eq.s32.totalorder %s38, 1
      %p397 = por %p395, %p396
      %p399 = scmp.ne.s32.totalorder %s384, %s398
      %p400 = scmp.eq.s32.totalorder %s38, 0
      %p401 = por %p399, %p400
      %s403 = sadd.s32 %s402, 1
      %p406 = scmp.eq.s32.totalorder %s32, 1
      %p407 = scmp.ne.s32.totalorder %s402, %s404
      %p408 = scmp.eq.s32.totalorder %s32, 0
      %p409 = por %p407, %p408
      %p410 = scmp.ne.s32.totalorder %s402, %s404
      %p411 = scmp.eq.s32.totalorder %s37, 1
      %p412 = por %p410, %p411
      %p413 = scmp.ne.s32.totalorder %s404, %s405
      %p414 = scmp.eq.s32.totalorder %s37, 0
      %p415 = por %p413, %p414
      %p416 = scmp.ne.s32.totalorder %s404, %s405
      %p417 = scmp.eq.s32.totalorder %s38, 1
      %p418 = por %p416, %p417
      %p420 = scmp.ne.s32.totalorder %s405, %s419
      %p421 = scmp.eq.s32.totalorder %s38, 0
      %p422 = por %p420, %p421
      %s423 = ssub.s32 %s32, %s39
      %p424 = scmp.eq.s32.totalorder %s423, 0
      %s426 = sadd.s32 %s425, 1
      %s427 = scalar_select %p424, %s425, %s426
      %p430 = pneg %p424
      %p431 = scmp.eq.s32.totalorder %s32, 1
      %p432 = por %p430, %p431
      %p433 = scmp.ne.s32.totalorder %s425, %s428
      %p434 = scmp.eq.s32.totalorder %s32, 0
      %p435 = por %p433, %p434
      %p436 = scmp.ne.s32.totalorder %s425, %s428
      %p437 = scmp.eq.s32.totalorder %s37, 1
      %p438 = por %p436, %p437
      %p439 = scmp.ne.s32.totalorder %s428, %s429
      %p440 = scmp.eq.s32.totalorder %s37, 0
      %p441 = por %p439, %p440
      %p442 = scmp.ne.s32.totalorder %s428, %s429
      %p443 = scmp.eq.s32.totalorder %s38, 1
      %p444 = por %p442, %p443
      %p446 = scmp.ne.s32.totalorder %s429, %s445
      %p447 = scmp.eq.s32.totalorder %s38, 0
      %p448 = por %p446, %p447
      %s449 = ssub.s32 %s32, %s39
      %p450 = scmp.eq.s32.totalorder %s449, 0
      %s452 = sadd.s32 %s451, 1
      %s453 = scalar_select %p450, %s451, %s452
      %p456 = pneg %p450
      %p457 = scmp.eq.s32.totalorder %s32, 1
      %p458 = por %p456, %p457
      %p459 = scmp.ne.s32.totalorder %s451, %s454
      %p460 = scmp.eq.s32.totalorder %s32, 0
      %p461 = por %p459, %p460
      %p462 = scmp.ne.s32.totalorder %s451, %s454
      %p463 = scmp.eq.s32.totalorder %s37, 1
      %p464 = por %p462, %p463
      %p465 = scmp.ne.s32.totalorder %s454, %s455
      %p466 = scmp.eq.s32.totalorder %s37, 0
      %p467 = por %p465, %p466
      %p468 = scmp.ne.s32.totalorder %s454, %s455
      %p469 = scmp.eq.s32.totalorder %s38, 1
      %p470 = por %p468, %p469
      %p472 = scmp.ne.s32.totalorder %s455, %s471
      %p473 = scmp.eq.s32.totalorder %s38, 0
      %p474 = por %p472, %p473
      %p475 = scmp.le.s32.totalorder 1, %s32
      %p476 = scmp.lt.s32.totalorder %s32, 3
      %p477 = pnand %p475, %p476
      %p478 = pneg %p477
      // Predicated region
      $region9: #{vitdino_forward.1} parent=5 // pred_check
        _
      $region10: #{vitdino_forward.1} parent=5 // pred_check_branch
        %480 = sbr.rel (%p477) target = $region12
      $region11: #{vitdino_forward.1} parent=5 // pred_region
        %s481 = ssub.s32 %s32, 1
        // Predicated region
        $region13: #{vitdino_forward.1} parent=11 // pred_check
          %p482 = pneg %p79
        $region14: #{vitdino_forward.1} parent=11 // pred_check_branch
          %484 = sbr.rel (%p482) target = $region16
        $region15: #{vitdino_forward.1} parent=11 // pred_region
          _
        $region16: #{vitdino_forward.1} parent=11 // pred_fallthru
          _
        // Predicated region
        $region17: #{vitdino_forward.1} parent=11 // pred_check
          %p485 = pneg %p100
        $region18: #{vitdino_forward.1} parent=11 // pred_check_branch
          %487 = sbr.rel (%p485) target = $region20
        $region19: #{vitdino_forward.1} parent=11 // pred_region
          _
        $region20: #{vitdino_forward.1} parent=11 // pred_fallthru
          _
        // Predicated region
        $region21: #{vitdino_forward.1} parent=11 // pred_check
          %p488 = pneg %p121
        $region22: #{vitdino_forward.1} parent=11 // pred_check_branch
          %490 = sbr.rel (%p488) target = $region24
        $region23: #{vitdino_forward.1} parent=11 // pred_region
          _
        $region24: #{vitdino_forward.1} parent=11 // pred_fallthru
          _
        // Predicated region
        $region25: #{vitdino_forward.1} parent=11 // pred_check
          %p491 = pneg %p142
        $region26: #{vitdino_forward.1} parent=11 // pred_check_branch
          %493 = sbr.rel (%p491) target = $region28
        $region27: #{vitdino_forward.1} parent=11 // pred_region
          _
        $region28: #{vitdino_forward.1} parent=11 // pred_fallthru
          _
        // Predicated region
        $region29: #{vitdino_forward.1} parent=11 // pred_check
          %p494 = pneg %p163
        $region30: #{vitdino_forward.1} parent=11 // pred_check_branch
          %496 = sbr.rel (%p494) target = $region32
        $region31: #{vitdino_forward.1} parent=11 // pred_region
          _
        $region32: #{vitdino_forward.1} parent=11 // pred_fallthru
          _
        // Predicated region
        $region33: #{vitdino_forward.1} parent=11 // pred_check
          %p497 = pneg %p184
        $region34: #{vitdino_forward.1} parent=11 // pred_check_branch
          %499 = sbr.rel (%p497) target = $region36
        $region35: #{vitdino_forward.1} parent=11 // pred_region
          _
        $region36: #{vitdino_forward.1} parent=11 // pred_fallthru
          _
        // Predicated region
        $region37: #{vitdino_forward.1} parent=11 // pred_check
          %p500 = pneg %p205
        $region38: #{vitdino_forward.1} parent=11 // pred_check_branch
          %502 = sbr.rel (%p500) target = $region40
        $region39: #{vitdino_forward.1} parent=11 // pred_region
          _
        $region40: #{vitdino_forward.1} parent=11 // pred_fallthru
          _
        // Predicated region
        $region41: #{vitdino_forward.1} parent=11 // pred_check
          %p503 = pneg %p226
        $region42: #{vitdino_forward.1} parent=11 // pred_check_branch
          %505 = sbr.rel (%p503) target = $region44
        $region43: #{vitdino_forward.1} parent=11 // pred_region
          _
        $region44: #{vitdino_forward.1} parent=11 // pred_fallthru
          _
        // Predicated region
        $region45: #{vitdino_forward.1} parent=11 // pred_check
          %p506 = pneg %p247
        $region46: #{vitdino_forward.1} parent=11 // pred_check_branch
          %508 = sbr.rel (%p506) target = $region48
        $region47: #{vitdino_forward.1} parent=11 // pred_region
          _
        $region48: #{vitdino_forward.1} parent=11 // pred_fallthru
          _
        // Predicated region
        $region49: #{vitdino_forward.1} parent=11 // pred_check
          %p509 = pneg %p268
        $region50: #{vitdino_forward.1} parent=11 // pred_check_branch
          %511 = sbr.rel (%p509) target = $region52
        $region51: #{vitdino_forward.1} parent=11 // pred_region
          _
        $region52: #{vitdino_forward.1} parent=11 // pred_fallthru
          _
        // Predicated region
        $region53: #{vitdino_forward.1} parent=11 // pred_check
          %p512 = pneg %p289
        $region54: #{vitdino_forward.1} parent=11 // pred_check_branch
          %514 = sbr.rel (%p512) target = $region56
        $region55: #{vitdino_forward.1} parent=11 // pred_region
          _
        $region56: #{vitdino_forward.1} parent=11 // pred_fallthru
          _
        // Predicated region
        $region57: #{vitdino_forward.1} parent=11 // pred_check
          %p515 = pneg %p310
        $region58: #{vitdino_forward.1} parent=11 // pred_check_branch
          %517 = sbr.rel (%p515) target = $region60
        $region59: #{vitdino_forward.1} parent=11 // pred_region
          _
        $region60: #{vitdino_forward.1} parent=11 // pred_fallthru
          _
        // Predicated region
        $region61: #{vitdino_forward.1} parent=11 // pred_check
          %p518 = pneg %p331
        $region62: #{vitdino_forward.1} parent=11 // pred_check_branch
          %520 = sbr.rel (%p518) target = $region64
        $region63: #{vitdino_forward.1} parent=11 // pred_region
          _
        $region64: #{vitdino_forward.1} parent=11 // pred_fallthru
          _
        // Predicated region
        $region65: #{vitdino_forward.1} parent=11 // pred_check
          %p521 = pneg %p352
        $region66: #{vitdino_forward.1} parent=11 // pred_check_branch
          %523 = sbr.rel (%p521) target = $region68
        $region67: #{vitdino_forward.1} parent=11 // pred_region
          _
        $region68: #{vitdino_forward.1} parent=11 // pred_fallthru
          _
        // Predicated region
        $region69: #{vitdino_forward.1} parent=11 // pred_check
          %p524 = pneg %p373
        $region70: #{vitdino_forward.1} parent=11 // pred_check_branch
          %526 = sbr.rel (%p524) target = $region72
        $region71: #{vitdino_forward.1} parent=11 // pred_region
          _
        $region72: #{vitdino_forward.1} parent=11 // pred_fallthru
          _
        // Predicated region
        $region73: #{vitdino_forward.1} parent=11 // pred_check
          %p527 = pneg %p394
        $region74: #{vitdino_forward.1} parent=11 // pred_check_branch
          %529 = sbr.rel (%p527) target = $region76
        $region75: #{vitdino_forward.1} parent=11 // pred_region
          _
        $region76: #{vitdino_forward.1} parent=11 // pred_fallthru
          _
        // Predicated region
        $region77: #{vitdino_forward.1} parent=11 // pred_check
          %p530 = pneg %p415
        $region78: #{vitdino_forward.1} parent=11 // pred_check_branch
          %532 = sbr.rel (%p530) target = $region80
        $region79: #{vitdino_forward.1} parent=11 // pred_region
          _
        $region80: #{vitdino_forward.1} parent=11 // pred_fallthru
          _
      $region12: #{vitdino_forward.1} parent=5 // pred_fallthru
        _
      %p533 = scmp.lt.s32.totalorder %s32, 2
      // Predicated region
      $region81: #{vitdino_forward.1} parent=5 // pred_check
        %p534 = pneg %p533
      $region82: #{vitdino_forward.1} parent=5 // pred_check_branch
        %536 = sbr.rel (%p534) target = $region84
      $region83: #{vitdino_forward.1} parent=5 // pred_region
        // Predicated region
        $region85: #{vitdino_forward.1} parent=83 // pred_check
          %p537 = pneg %p52
        $region86: #{vitdino_forward.1} parent=83 // pred_check_branch
          %539 = sbr.rel (%p537) target = $region88
        $region87: #{vitdino_forward.1} parent=83 // pred_region
          %p540 = scmp.lt.s32.totalorder %s32, 1
          %s541 = scalar_select %p540, %s32, 1
          %s542 = smul.addr %s541, 4
          %s543 = smul.addr %s542, 8
          %s544 = scalar_lea.vmem %s0, %s543
        $region88: #{vitdino_forward.1} parent=83 // pred_fallthru
          _
      $region84: #{vitdino_forward.1} parent=5 // pred_fallthru
        _
      %p545 = scmp.le.s32.totalorder 1, %s32
      %p546 = scmp.lt.s32.totalorder %s32, 3
      %p547 = pnand %p545, %p546
      %p548 = pneg %p547
      // Predicated region
      $region89: #{vitdino_forward.1} parent=5 // pred_check
        _
      $region90: #{vitdino_forward.1} parent=5 // pred_check_branch
        %550 = sbr.rel (%p547) target = $region92
      $region91: #{vitdino_forward.1} parent=5 // pred_region
        %s551 = ssub.s32 %s32, 1
        %p552 = scmp.lt.s32.totalorder %s37, 1
        %s553 = scalar_select %p552, %s37, 1
        %s554 = smul.addr %s553, 4
        %s555 = smul.addr %s554, 8
        %s556 = scalar_lea.vmem %s0, %s555
        %p557 = pneg %p58
        %p558 = pneg %p55
        %p559 = pneg %p79
        %p560 = pneg %p76
        %p561 = pneg %p100
        %p562 = pneg %p97
        %p563 = pneg %p121
        %p564 = pneg %p118
        %p565 = pneg %p142
        %p566 = pneg %p139
        %p567 = pneg %p163
        %p568 = pneg %p160
        %p569 = pneg %p184
        %p570 = pneg %p181
        %p571 = pneg %p205
        %p572 = pneg %p202
        %p573 = pneg %p226
        %p574 = pneg %p223
        %p575 = pneg %p247
        %p576 = pneg %p244
        %p577 = pneg %p268
        %p578 = pneg %p265
        %p579 = pneg %p289
        %p580 = pneg %p286
        %p581 = pneg %p310
        %p582 = pneg %p307
        %p583 = pneg %p331
        %p584 = pneg %p328
        %p585 = pneg %p352
        %p586 = pneg %p349
        %p587 = pneg %p373
        %p588 = pneg %p370
        %p589 = pneg %p394
        %p590 = pneg %p391
        %p591 = pneg %p415
        %p592 = pneg %p412
        %p593 = pneg %p441
        %p594 = pneg %p438
        %s595 = sand.u32 %s428, 1
        %s596 = scalar_lea.sflag [#allocation3], %s595
        %s597 = sand.u32 %s428, 1
        %s598 = scalar_lea.vmem [#allocation2], %s597
        %p599 = pneg %p467
        %p600 = pneg %p464
        %s601 = sand.u32 %s454, 1
        %s602 = scalar_lea.sflag [#allocation5], %s601
        %s603 = sand.u32 %s454, 1
        %s604 = scalar_lea.vmem [#allocation4], %s603
        %p605 = scmp.lt.s32.totalorder %s37, 1
        %s606 = scalar_select %p605, %s37, 1
        %s607 = smul.addr %s606, 4
        %s608 = smul.addr %s607, 8
        %s609 = scalar_lea.vmem %s0, %s608
        %v610 = vld [vmem:[%s609] sm:$0xff]
        %v611 = vld [vmem:[%s609 + $0x8] sm:$0xff]
        %v612 = vld [vmem:[%s609 + $0x10] sm:$0xf]
        %v613 = vld [vmem:[%s609 + $0x18] sm:$0xf]
        %v614 = vld [vmem:[%s4] sm:$0xff]
        %v615 = vld [vmem:[%s4 + $0x8] sm:$0xff]
        %v616 = vld [vmem:[%s4 + $0x10] sm:$0xff]
        %v617 = vld [vmem:[%s4 + $0x18] sm:$0xff]
        %v618 = vld [vmem:[%s4 + $0x20] sm:$0xff]
        %v619 = vld [vmem:[%s4 + $0x28] sm:$0xff]
        %v620 = vld [vmem:[%s4 + $0x30] sm:$0xff]
        %v621 = vld [vmem:[%s4 + $0x38] sm:$0xff]
        %v622 = vld [vmem:[%s4 + $0x40] sm:$0xff]
        %v623 = vld [vmem:[%s4 + $0x48] sm:$0xff]
        %v624 = vld [vmem:[%s4 + $0x50] sm:$0xff]
        %v625 = vld [vmem:[%s4 + $0x58] sm:$0xff]
        %v626 = vld [vmem:[%s4 + $0x60] sm:$0xff]
        %v627 = vld [vmem:[%s4 + $0x68] sm:$0xff]
        %v628 = vld [vmem:[%s4 + $0x70] sm:$0xff]
        %v629 = vld [vmem:[%s4 + $0x78] sm:$0xff]
        %v630 = vld [vmem:[%s4 + $0x80] sm:$0xff]
        %v631 = vld [vmem:[%s4 + $0x88] sm:$0xff]
        %v632 = vld [vmem:[%s4 + $0x90] sm:$0xff]
        %v633 = vld [vmem:[%s4 + $0x98] sm:$0xff]
        %v634 = vld [vmem:[%s4 + $0xa0] sm:$0xff]
        %v635 = vld [vmem:[%s4 + $0xa8] sm:$0xff]
        %v636 = vld [vmem:[%s4 + $0xb0] sm:$0xff]
        %v637 = vld [vmem:[%s4 + $0xb8] sm:$0xff]
        %vm638 = vcmask 523264
        %v640 = vsel %vm638, %v611, 0
        %v643 = vsel %vm638, %v613, 0
        %645 = vmatprep.subr.mxu0 0.0
        %646 = vmatpush1.msra.mxu0 %v629
        %647 = vmatprep.subr.mxu0 0.0
        %648 = vmatpush1.msra.mxu0 %v628
        %649 = vmatprep.subr.mxu0 0.0
        %650 = vmatpush1.msra.mxu0 %v627
        %651 = vmatprep.subr.mxu0 0.0
        %652 = vmatpush1.msra.mxu0 %v626
        %653 = vmatprep.subr.mxu0 0.0
        %654 = vmatpush1.msra.mxu0 %v625
        %655 = vmatprep.subr.mxu0 0.0
        %656 = vmatpush1.msra.mxu0 %v624
        %657 = vmatprep.subr.mxu0 0.0
        %658 = vmatpush1.msra.mxu0 %v623
        %659 = vmatprep.subr.mxu0 0.0
        %660 = vmatpush1.msra.mxu0 %v622
        %661 = vmatprep.subr.mxu0 0.0
        %662 = vmatpush1.msra.mxu0 %v621
        %663 = vmatprep.subr.mxu0 0.0
        %664 = vmatpush1.msra.mxu0 %v620
        %665 = vmatprep.subr.mxu0 0.0
        %666 = vmatpush1.msra.mxu0 %v619
        %667 = vmatprep.subr.mxu0 0.0
        %668 = vmatpush1.msra.mxu0 %v618
        %669 = vmatprep.subr.mxu0 0.0
        %670 = vmatpush1.msra.mxu0 %v617
        %671 = vmatprep.subr.mxu0 0.0
        %672 = vmatpush1.msra.mxu0 %v616
        %673 = vmatprep.subr.mxu0 0.0
        %674 = vmatpush1.msra.mxu0 %v615
        %675 = vmatprep.subr.mxu0 0.0
        %676 = vmatpush1.msra.mxu0 %v614
        %677 = vmatprep.subr.mxu0 0.0
        %678 = vmatpush2.msra.mxu0 0.0
        %679 = vmatprep.subr.mxu0 0.0
        %680 = vmatpush2.msra.mxu0 0.0
        %681 = vmatprep.subr.mxu0 0.0
        %682 = vmatpush2.msra.mxu0 0.0
        %683 = vmatprep.subr.mxu0 0.0
        %684 = vmatpush2.msra.mxu0 0.0
        %685 = vmatprep.subr.mxu0 0.0
        %686 = vmatpush2.msra.mxu0 0.0
        %687 = vmatprep.subr.mxu0 0.0
        %688 = vmatpush2.msra.mxu0 0.0
        %689 = vmatprep.subr.mxu0 0.0
        %690 = vmatpush2.msra.mxu0 0.0
        %691 = vmatprep.subr.mxu0 0.0
        %692 = vmatpush2.msra.mxu0 0.0
        %693 = vmatprep.subr.mxu0 0.0
        %694 = vmatpush2.msra.mxu0 %v637
        %695 = vmatprep.subr.mxu0 0.0
        %696 = vmatpush2.msra.mxu0 %v636
        %697 = vmatprep.subr.mxu0 0.0
        %698 = vmatpush2.msra.mxu0 %v635
        %699 = vmatprep.subr.mxu0 0.0
        %700 = vmatpush2.msra.mxu0 %v634
        %701 = vmatprep.subr.mxu0 0.0
        %702 = vmatpush2.msra.mxu0 %v633
        %703 = vmatprep.subr.mxu0 0.0
        %704 = vmatpush2.msra.mxu0 %v632
        %705 = vmatprep.subr.mxu0 0.0
        %706 = vmatpush2.msra.mxu0 %v631
        %707 = vmatprep.subr.mxu0 0.0
        %708 = vmatpush2.msra.mxu0 %v630
        %709 = vmatprep.mubr.f32.mxu0 %v640
        %710 = vmatmul.mubr.f32.gmra.mxu0 %v610
        %v711 = vpop.f32.mrf.mxu0
        %v712 = vadd.f32 0.0, %v711
        %v713 = vpop.f32.mrf.mxu0
        %714 = vmatprep.mubr.f32.mxu0 %v643
        %715 = vmatmul.mubr.f32.gmra.mxu0 %v612
        %v716 = vpop.f32.mrf.mxu0
        %v717 = vadd.f32 0.0, %v716
        %v718 = vpop.f32.mrf.mxu0
        %719 = vdwg.mxu0
        %v720 = vld [vmem:[%s1] sm:$0xff]
        %v721 = vld [vmem:[%s1 + $0x8] sm:$0x7f]
        %v722 = vld [vmem:[%s5] sm:$0xff]
        %v723 = vld [vmem:[%s5 + $0x8] sm:$0x7f]
        %vm724 = vcmask 97280
        %v726 = vsel %vm724, %v720, 0
        %v729 = vsel %vm724, %v721, 0
        %vm731 = vcmask 1043456
        %v733 = vsel %vm731, %v717, 0
        %735 = vmatprep.subr.mxu0 0.0
        %736 = vmatpush1.msra.mxu0 0.0
        %737 = vmatprep.subr.mxu0 0.0
        %738 = vmatpush1.msra.mxu0 0.0
        %739 = vmatprep.subr.mxu0 0.0
        %740 = vmatpush1.msra.mxu0 0.0
        %741 = vmatprep.subr.mxu0 0.0
        %742 = vmatpush1.msra.mxu0 0.0
        %743 = vmatprep.subr.mxu0 0.0
        %744 = vmatpush1.msra.mxu0 0.0
        %745 = vmatprep.subr.mxu0 0.0
        %746 = vmatpush1.msra.mxu0 0.0
        %747 = vmatprep.subr.mxu0 0.0
        %748 = vmatpush1.msra.mxu0 0.0
        %749 = vmatprep.subr.mxu0 0.0
        %750 = vmatpush1.msra.mxu0 0.0
        %751 = vmatprep.subr.mxu0 0.0
        %752 = vmatpush1.msra.mxu0 0.0
        %753 = vmatprep.subr.mxu0 0.0
        %754 = vmatpush1.msra.mxu0 0.0
        %755 = vmatprep.subr.mxu0 0.0
        %756 = vmatpush1.msra.mxu0 0.0
        %757 = vmatprep.subr.mxu0 0.0
        %758 = vmatpush1.msra.mxu0 0.0
        %759 = vmatprep.subr.mxu0 0.0
        %760 = vmatpush1.msra.mxu0 0.0
        %761 = vmatprep.subr.mxu0 0.0
        %762 = vmatpush1.msra.mxu0 0.0
        %763 = vmatprep.subr.mxu0 0.0
        %764 = vmatpush1.msra.mxu0 %v733
        %765 = vmatprep.subr.mxu0 0.0
        %766 = vmatpush1.msra.mxu0 %v712
        %767 = vmatprep.subr.mxu0 0.0
        %768 = vmatpush2.msra.mxu0 0.0
        %769 = vmatprep.subr.mxu0 0.0
        %770 = vmatpush2.msra.mxu0 0.0
        %771 = vmatprep.subr.mxu0 0.0
        %772 = vmatpush2.msra.mxu0 0.0
        %773 = vmatprep.subr.mxu0 0.0
        %774 = vmatpush2.msra.mxu0 0.0
        %775 = vmatprep.subr.mxu0 0.0
        %776 = vmatpush2.msra.mxu0 0.0
        %777 = vmatprep.subr.mxu0 0.0
        %778 = vmatpush2.msra.mxu0 0.0
        %779 = vmatprep.subr.mxu0 0.0
        %780 = vmatpush2.msra.mxu0 0.0
        %781 = vmatprep.subr.mxu0 0.0
        %782 = vmatpush2.msra.mxu0 0.0
        %783 = vmatprep.subr.mxu0 0.0
        %784 = vmatpush2.msra.mxu0 0.0
        %785 = vmatprep.subr.mxu0 0.0
        %786 = vmatpush2.msra.mxu0 0.0
        %787 = vmatprep.subr.mxu0 0.0
        %788 = vmatpush2.msra.mxu0 0.0
        %789 = vmatprep.subr.mxu0 0.0
        %790 = vmatpush2.msra.mxu0 0.0
        %791 = vmatprep.subr.mxu0 0.0
        %792 = vmatpush2.msra.mxu0 0.0
        %793 = vmatprep.subr.mxu0 0.0
        %794 = vmatpush2.msra.mxu0 0.0
        %795 = vmatprep.subr.mxu0 0.0
        %796 = vmatpush2.msra.mxu0 0.0
        %797 = vmatprep.subr.mxu0 0.0
        %798 = vmatpush2.msra.mxu0 0.0
        %799 = vmatprep.mubr.f32.mxu0 0.0
        %800 = vmatmul.mubr.f32.gmra.mxu0 %v726
        %v801 = vpop.f32.mrf.mxu0
        %v802 = vadd.f32 %v722, %v801
        %v803 = vpop.f32.mrf.mxu0
        %804 = vmatprep.mubr.f32.mxu0 0.0
        %805 = vmatmul.mubr.f32.gmra.mxu0 %v729
        %v806 = vpop.f32.mrf.mxu0
        %v807 = vadd.f32 %v723, %v806
        %v808 = vpop.f32.mrf.mxu0
        %809 = vdwg.mxu0
        %v810 = vlaneseq
        %v811 = vand.u32 %v810, 127
        %vm812 = vcmp.ge.s32.totalorder %v811, 0
        %vm813 = vcmp.lt.s32.totalorder %v811, 16
        %vm814 = vmand %vm812, %vm813
        %vm815 = vcmp.ge.s32.totalorder %v811, 16
        %vm816 = vcmp.lt.s32.totalorder %v811, 32
        %vm817 = vmand %vm815, %vm816
        %v818 = vld [vmem:[%s3] sm:$0xff]
        %v819 = vld [vmem:[%s3 + $0x8] sm:$0x7f]
        %v820 = vld [vmem:[%s12] sm:$0x1]
        %s821 = scalar_lea.vmem %s12, 1
        %v822 = vld [vmem:[%s821] sm:$0x1]
        %vm823 = vcmask 261120
        %v824 = vsel %vm823, %v802, 0.0
        %825 = vadd.xlane.f32.xlu0 %v824
        %v826 = vpop.xlane.xlu0 %825
        %vm827 = vcmask 260096
        %v828 = vsel %vm827, %v807, 0.0
        %829 = vadd.xlane.f32.xlu0 %v828
        %v830 = vpop.xlane.xlu0 %829
        %v831 = vrcp.pop 32.0
        %v832 = vmul.f32 %v826, %v831
        %v833 = vmul.f32 %v830, %v831
        %v834 = vsub.f32 %v802, %v832
        %v835 = vsub.f32 %v807, %v833
        %v836 = vmul.f32 %v834, %v834
        %v837 = vmul.f32 %v835, %v835
        %v838 = vsel %vm823, %v836, 0.0
        %839 = vadd.xlane.f32.xlu0 %v838
        %v840 = vpop.xlane.xlu0 %839
        %v841 = vsel %vm827, %v837, 0.0
        %842 = vadd.xlane.f32.xlu0 %v841
        %v843 = vpop.xlane.xlu0 %842
        %v844 = vmul.f32 %v840, %v831
        %v845 = vmul.f32 %v843, %v831
        %v846 = vadd.f32 %v844, 1e-06
        %v847 = vadd.f32 %v845, 1e-06
        %v848 = vrsqrt.pop %v846
        %v849 = vrsqrt.pop %v847
        %v850 = vmul.f32 %v834, %v848
        %v851 = vmul.f32 %v835, %v849
        %v853 = vlaneseq
        %v854 = vshrl.u32 %v853, 7
        %v855 = vsub.s32 0, %v854
        %v856 = vrot.slane %v820, %v855
        %v858 = vmul.f32 %v850, %v856
        %v859 = vmul.f32 %v851, %v856
        %v861 = vlaneseq
        %v862 = vshrl.u32 %v861, 7
        %v863 = vsub.s32 0, %v862
        %v864 = vrot.slane %v822, %v863
        %v866 = vadd.f32 %v858, %v864
        %v867 = vadd.f32 %v859, %v864
        %v868 = vld [vmem:[%s6] sm:$0xff]
        %v869 = vld [vmem:[%s6 + $0x8] sm:$0xff]
        %v870 = vld [vmem:[%s6 + $0x10] sm:$0xff]
        %v871 = vld [vmem:[%s6 + $0x18] sm:$0xff]
        %v872 = vld [vmem:[%s7] sm:$0x1]
        %v874 = vlaneseq
        %v875 = vshrl.u32 %v874, 7
        %v876 = vsub.s32 0, %v875
        %v877 = vrot.slane %v872, %v876
        %v880 = vsel %vm823, %v866, 0
        %v883 = vsel %vm823, %v867, 0
        %885 = vmatprep.subr.mxu0 0.0
        %886 = vmatpush1.msra.mxu0 0.0
        %887 = vmatprep.subr.mxu0 0.0
        %888 = vmatpush1.msra.mxu0 0.0
        %889 = vmatprep.subr.mxu0 0.0
        %890 = vmatpush1.msra.mxu0 0.0
        %891 = vmatprep.subr.mxu0 0.0
        %892 = vmatpush1.msra.mxu0 0.0
        %893 = vmatprep.subr.mxu0 0.0
        %894 = vmatpush1.msra.mxu0 0.0
        %895 = vmatprep.subr.mxu0 0.0
        %896 = vmatpush1.msra.mxu0 0.0
        %897 = vmatprep.subr.mxu0 0.0
        %898 = vmatpush1.msra.mxu0 0.0
        %899 = vmatprep.subr.mxu0 0.0
        %900 = vmatpush1.msra.mxu0 0.0
        %901 = vmatprep.subr.mxu0 0.0
        %902 = vmatpush1.msra.mxu0 0.0
        %903 = vmatprep.subr.mxu0 0.0
        %904 = vmatpush1.msra.mxu0 0.0
        %905 = vmatprep.subr.mxu0 0.0
        %906 = vmatpush1.msra.mxu0 0.0
        %907 = vmatprep.subr.mxu0 0.0
        %908 = vmatpush1.msra.mxu0 0.0
        %909 = vmatprep.subr.mxu0 0.0
        %910 = vmatpush1.msra.mxu0 %v871
        %911 = vmatprep.subr.mxu0 0.0
        %912 = vmatpush1.msra.mxu0 %v870
        %913 = vmatprep.subr.mxu0 0.0
        %914 = vmatpush1.msra.mxu0 %v869
        %915 = vmatprep.subr.mxu0 0.0
        %916 = vmatpush1.msra.mxu0 %v868
        %917 = vmatprep.subr.mxu0 0.0
        %918 = vmatpush2.msra.mxu0 0.0
        %919 = vmatprep.subr.mxu0 0.0
        %920 = vmatpush2.msra.mxu0 0.0
        %921 = vmatprep.subr.mxu0 0.0
        %922 = vmatpush2.msra.mxu0 0.0
        %923 = vmatprep.subr.mxu0 0.0
        %924 = vmatpush2.msra.mxu0 0.0
        %925 = vmatprep.subr.mxu0 0.0
        %926 = vmatpush2.msra.mxu0 0.0
        %927 = vmatprep.subr.mxu0 0.0
        %928 = vmatpush2.msra.mxu0 0.0
        %929 = vmatprep.subr.mxu0 0.0
        %930 = vmatpush2.msra.mxu0 0.0
        %931 = vmatprep.subr.mxu0 0.0
        %932 = vmatpush2.msra.mxu0 0.0
        %933 = vmatprep.subr.mxu0 0.0
        %934 = vmatpush2.msra.mxu0 0.0
        %935 = vmatprep.subr.mxu0 0.0
        %936 = vmatpush2.msra.mxu0 0.0
        %937 = vmatprep.subr.mxu0 0.0
        %938 = vmatpush2.msra.mxu0 0.0
        %939 = vmatprep.subr.mxu0 0.0
        %940 = vmatpush2.msra.mxu0 0.0
        %941 = vmatprep.subr.mxu0 0.0
        %942 = vmatpush2.msra.mxu0 0.0
        %943 = vmatprep.subr.mxu0 0.0
        %944 = vmatpush2.msra.mxu0 0.0
        %945 = vmatprep.subr.mxu0 0.0
        %946 = vmatpush2.msra.mxu0 0.0
        %947 = vmatprep.subr.mxu0 0.0
        %948 = vmatpush2.msra.mxu0 0.0
        %949 = vmatprep.mubr.f32.mxu0 0.0
        %950 = vmatmul.mubr.f32.gmra.mxu0 %v880
        %v951 = vpop.f32.mrf.mxu0
        %v952 = vadd.f32 %v877, %v951
        %v953 = vpop.f32.mrf.mxu0
        %954 = vmatprep.mubr.f32.mxu0 0.0
        %955 = vmatmul.mubr.f32.gmra.mxu0 %v883
        %v956 = vpop.f32.mrf.mxu0
        %v957 = vadd.f32 %v877, %v956
        %v958 = vpop.f32.mrf.mxu0
        %959 = vdwg.mxu0
        %s960 = scalar_lea.vmem %s6, 32
        %v961 = vld [vmem:[%s960] sm:$0xff]
        %v962 = vld [vmem:[%s960 + $0x8] sm:$0xff]
        %v963 = vld [vmem:[%s960 + $0x10] sm:$0xff]
        %v964 = vld [vmem:[%s960 + $0x18] sm:$0xff]
        %s965 = scalar_lea.vmem %s7, 1
        %v966 = vld [vmem:[%s965] sm:$0x1]
        %v968 = vlaneseq
        %v969 = vshrl.u32 %v968, 7
        %v970 = vsub.s32 0, %v969
        %v971 = vrot.slane %v966, %v970
        %973 = vmatprep.subr.mxu0 0.0
        %974 = vmatpush1.msra.mxu0 0.0
        %975 = vmatprep.subr.mxu0 0.0
        %976 = vmatpush1.msra.mxu0 0.0
        %977 = vmatprep.subr.mxu0 0.0
        %978 = vmatpush1.msra.mxu0 0.0
        %979 = vmatprep.subr.mxu0 0.0
        %980 = vmatpush1.msra.mxu0 0.0
        %981 = vmatprep.subr.mxu0 0.0
        %982 = vmatpush1.msra.mxu0 0.0
        %983 = vmatprep.subr.mxu0 0.0
        %984 = vmatpush1.msra.mxu0 0.0
        %985 = vmatprep.subr.mxu0 0.0
        %986 = vmatpush1.msra.mxu0 0.0
        %987 = vmatprep.subr.mxu0 0.0
        %988 = vmatpush1.msra.mxu0 0.0
        %989 = vmatprep.subr.mxu0 0.0
        %990 = vmatpush1.msra.mxu0 0.0
        %991 = vmatprep.subr.mxu0 0.0
        %992 = vmatpush1.msra.mxu0 0.0
        %993 = vmatprep.subr.mxu0 0.0
        %994 = vmatpush1.msra.mxu0 0.0
        %995 = vmatprep.subr.mxu0 0.0
        %996 = vmatpush1.msra.mxu0 0.0
        %997 = vmatprep.subr.mxu0 0.0
        %998 = vmatpush1.msra.mxu0 %v964
        %999 = vmatprep.subr.mxu0 0.0
        %1000 = vmatpush1.msra.mxu0 %v963
        %1001 = vmatprep.subr.mxu0 0.0
        %1002 = vmatpush1.msra.mxu0 %v962
        %1003 = vmatprep.subr.mxu0 0.0
        %1004 = vmatpush1.msra.mxu0 %v961
        %1005 = vmatprep.subr.mxu0 0.0
        %1006 = vmatpush2.msra.mxu0 0.0
        %1007 = vmatprep.subr.mxu0 0.0
        %1008 = vmatpush2.msra.mxu0 0.0
        %1009 = vmatprep.subr.mxu0 0.0
        %1010 = vmatpush2.msra.mxu0 0.0
        %1011 = vmatprep.subr.mxu0 0.0
        %1012 = vmatpush2.msra.mxu0 0.0
        %1013 = vmatprep.subr.mxu0 0.0
        %1014 = vmatpush2.msra.mxu0 0.0
        %1015 = vmatprep.subr.mxu0 0.0
        %1016 = vmatpush2.msra.mxu0 0.0
        %1017 = vmatprep.subr.mxu0 0.0
        %1018 = vmatpush2.msra.mxu0 0.0
        %1019 = vmatprep.subr.mxu0 0.0
        %1020 = vmatpush2.msra.mxu0 0.0
        %1021 = vmatprep.subr.mxu0 0.0
        %1022 = vmatpush2.msra.mxu0 0.0
        %1023 = vmatprep.subr.mxu0 0.0
        %1024 = vmatpush2.msra.mxu0 0.0
        %1025 = vmatprep.subr.mxu0 0.0
        %1026 = vmatpush2.msra.mxu0 0.0
        %1027 = vmatprep.subr.mxu0 0.0
        %1028 = vmatpush2.msra.mxu0 0.0
        %1029 = vmatprep.subr.mxu0 0.0
        %1030 = vmatpush2.msra.mxu0 0.0
        %1031 = vmatprep.subr.mxu0 0.0
        %1032 = vmatpush2.msra.mxu0 0.0
        %1033 = vmatprep.subr.mxu0 0.0
        %1034 = vmatpush2.msra.mxu0 0.0
        %1035 = vmatprep.subr.mxu0 0.0
        %1036 = vmatpush2.msra.mxu0 0.0
        %1037 = vmatprep.mubr.f32.mxu0 0.0
        %1038 = vmatmul.mubr.f32.gmra.mxu0 %v880
        %v1039 = vpop.f32.mrf.mxu0
        %v1040 = vadd.f32 %v971, %v1039
        %v1041 = vpop.f32.mrf.mxu0
        %1042 = vmatprep.mubr.f32.mxu0 0.0
        %1043 = vmatmul.mubr.f32.gmra.mxu0 %v883
        %v1044 = vpop.f32.mrf.mxu0
        %v1045 = vadd.f32 %v971, %v1044
        %v1046 = vpop.f32.mrf.mxu0
        %1047 = vdwg.mxu0
        %s1048 = scalar_lea.vmem %s6, 64
        %v1049 = vld [vmem:[%s1048] sm:$0xff]
        %v1050 = vld [vmem:[%s1048 + $0x8] sm:$0xff]
        %v1051 = vld [vmem:[%s1048 + $0x10] sm:$0xff]
        %v1052 = vld [vmem:[%s1048 + $0x18] sm:$0xff]
        %s1053 = scalar_lea.vmem %s7, 2
        %v1054 = vld [vmem:[%s1053] sm:$0x1]
        %v1056 = vlaneseq
        %v1057 = vshrl.u32 %v1056, 7
        %v1058 = vsub.s32 0, %v1057
        %v1059 = vrot.slane %v1054, %v1058
        %1061 = vmatprep.subr.mxu0 0.0
        %1062 = vmatpush1.msra.mxu0 0.0
        %1063 = vmatprep.subr.mxu0 0.0
        %1064 = vmatpush1.msra.mxu0 0.0
        %1065 = vmatprep.subr.mxu0 0.0
        %1066 = vmatpush1.msra.mxu0 0.0
        %1067 = vmatprep.subr.mxu0 0.0
        %1068 = vmatpush1.msra.mxu0 0.0
        %1069 = vmatprep.subr.mxu0 0.0
        %1070 = vmatpush1.msra.mxu0 0.0
        %1071 = vmatprep.subr.mxu0 0.0
        %1072 = vmatpush1.msra.mxu0 0.0
        %1073 = vmatprep.subr.mxu0 0.0
        %1074 = vmatpush1.msra.mxu0 0.0
        %1075 = vmatprep.subr.mxu0 0.0
        %1076 = vmatpush1.msra.mxu0 0.0
        %1077 = vmatprep.subr.mxu0 0.0
        %1078 = vmatpush1.msra.mxu0 0.0
        %1079 = vmatprep.subr.mxu0 0.0
        %1080 = vmatpush1.msra.mxu0 0.0
        %1081 = vmatprep.subr.mxu0 0.0
        %1082 = vmatpush1.msra.mxu0 0.0
        %1083 = vmatprep.subr.mxu0 0.0
        %1084 = vmatpush1.msra.mxu0 0.0
        %1085 = vmatprep.subr.mxu0 0.0
        %1086 = vmatpush1.msra.mxu0 %v1052
        %1087 = vmatprep.subr.mxu0 0.0
        %1088 = vmatpush1.msra.mxu0 %v1051
        %1089 = vmatprep.subr.mxu0 0.0
        %1090 = vmatpush1.msra.mxu0 %v1050
        %1091 = vmatprep.subr.mxu0 0.0
        %1092 = vmatpush1.msra.mxu0 %v1049
        %1093 = vmatprep.subr.mxu0 0.0
        %1094 = vmatpush2.msra.mxu0 0.0
        %1095 = vmatprep.subr.mxu0 0.0
        %1096 = vmatpush2.msra.mxu0 0.0
        %1097 = vmatprep.subr.mxu0 0.0
        %1098 = vmatpush2.msra.mxu0 0.0
        %1099 = vmatprep.subr.mxu0 0.0
        %1100 = vmatpush2.msra.mxu0 0.0
        %1101 = vmatprep.subr.mxu0 0.0
        %1102 = vmatpush2.msra.mxu0 0.0
        %1103 = vmatprep.subr.mxu0 0.0
        %1104 = vmatpush2.msra.mxu0 0.0
        %1105 = vmatprep.subr.mxu0 0.0
        %1106 = vmatpush2.msra.mxu0 0.0
        %1107 = vmatprep.subr.mxu0 0.0
        %1108 = vmatpush2.msra.mxu0 0.0
        %1109 = vmatprep.subr.mxu0 0.0
        %1110 = vmatpush2.msra.mxu0 0.0
        %1111 = vmatprep.subr.mxu0 0.0
        %1112 = vmatpush2.msra.mxu0 0.0
        %1113 = vmatprep.subr.mxu0 0.0
        %1114 = vmatpush2.msra.mxu0 0.0
        %1115 = vmatprep.subr.mxu0 0.0
        %1116 = vmatpush2.msra.mxu0 0.0
        %1117 = vmatprep.subr.mxu0 0.0
        %1118 = vmatpush2.msra.mxu0 0.0
        %1119 = vmatprep.subr.mxu0 0.0
        %1120 = vmatpush2.msra.mxu0 0.0
        %1121 = vmatprep.subr.mxu0 0.0
        %1122 = vmatpush2.msra.mxu0 0.0
        %1123 = vmatprep.subr.mxu0 0.0
        %1124 = vmatpush2.msra.mxu0 0.0
        %1125 = vmatprep.mubr.f32.mxu0 0.0
        %1126 = vmatmul.mubr.f32.gmra.mxu0 %v880
        %v1127 = vpop.f32.mrf.mxu0
        %v1128 = vadd.f32 %v1059, %v1127
        %v1129 = vpop.f32.mrf.mxu0
        %1130 = vmatprep.mubr.f32.mxu0 0.0
        %1131 = vmatmul.mubr.f32.gmra.mxu0 %v883
        %v1132 = vpop.f32.mrf.mxu0
        %v1133 = vadd.f32 %v1059, %v1132
        %v1134 = vpop.f32.mrf.mxu0
        %1135 = vdwg.mxu0
        %v1136 = vsel %vm814, 1, 0
        %vm1137 = vcmp.eq.s32.totalorder %v1136, 1
        %v1138 = vsel %vm1137, %v952, 0.0
        %v1139 = vsel %vm1137, %v957, 0.0
        %v1140 = vsel %vm1137, %v1128, 0.0
        %v1141 = vsel %vm1137, %v1133, 0.0
        %v1143 = vsel %vm823, %v1138, 0
        %v1146 = vsel %vm823, %v1139, 0
        %v1149 = vsel %vm823, %v1040, 0
        %v1152 = vsel %vm823, %v1045, 0
        %1154 = vmatprep.subr.mxu0 0.0
        %1155 = vmatpush1.xpose.msra.mxu0 0.0
        %1156 = vmatprep.subr.mxu0 0.0
        %1157 = vmatpush1.xpose.msra.mxu0 0.0
        %1158 = vmatprep.subr.mxu0 0.0
        %1159 = vmatpush1.xpose.msra.mxu0 0.0
        %1160 = vmatprep.subr.mxu0 0.0
        %1161 = vmatpush1.xpose.msra.mxu0 0.0
        %1162 = vmatprep.subr.mxu0 0.0
        %1163 = vmatpush1.xpose.msra.mxu0 0.0
        %1164 = vmatprep.subr.mxu0 0.0
        %1165 = vmatpush1.xpose.msra.mxu0 0.0
        %1166 = vmatprep.subr.mxu0 0.0
        %1167 = vmatpush1.xpose.msra.mxu0 0.0
        %1168 = vmatprep.subr.mxu0 0.0
        %1169 = vmatpush1.xpose.msra.mxu0 0.0
        %1170 = vmatprep.subr.mxu0 0.0
        %1171 = vmatpush1.xpose.msra.mxu0 0.0
        %1172 = vmatprep.subr.mxu0 0.0
        %1173 = vmatpush1.xpose.msra.mxu0 0.0
        %1174 = vmatprep.subr.mxu0 0.0
        %1175 = vmatpush1.xpose.msra.mxu0 0.0
        %1176 = vmatprep.subr.mxu0 0.0
        %1177 = vmatpush1.xpose.msra.mxu0 0.0
        %1178 = vmatprep.subr.mxu0 0.0
        %1179 = vmatpush1.xpose.msra.mxu0 0.0
        %1180 = vmatprep.subr.mxu0 0.0
        %1181 = vmatpush1.xpose.msra.mxu0 0.0
        %1182 = vmatprep.subr.mxu0 0.0
        %1183 = vmatpush1.xpose.msra.mxu0 %v1152
        %1184 = vmatprep.subr.mxu0 0.0
        %1185 = vmatpush1.xpose.msra.mxu0 %v1149
        %1186 = vmatprep.subr.mxu0 0.0
        %1187 = vmatpush2.xpose.msra.mxu0 0.0
        %1188 = vmatprep.subr.mxu0 0.0
        %1189 = vmatpush2.xpose.msra.mxu0 0.0
        %1190 = vmatprep.subr.mxu0 0.0
        %1191 = vmatpush2.xpose.msra.mxu0 0.0
        %1192 = vmatprep.subr.mxu0 0.0
        %1193 = vmatpush2.xpose.msra.mxu0 0.0
        %1194 = vmatprep.subr.mxu0 0.0
        %1195 = vmatpush2.xpose.msra.mxu0 0.0
        %1196 = vmatprep.subr.mxu0 0.0
        %1197 = vmatpush2.xpose.msra.mxu0 0.0
        %1198 = vmatprep.subr.mxu0 0.0
        %1199 = vmatpush2.xpose.msra.mxu0 0.0
        %1200 = vmatprep.subr.mxu0 0.0
        %1201 = vmatpush2.xpose.msra.mxu0 0.0
        %1202 = vmatprep.subr.mxu0 0.0
        %1203 = vmatpush2.xpose.msra.mxu0 0.0
        %1204 = vmatprep.subr.mxu0 0.0
        %1205 = vmatpush2.xpose.msra.mxu0 0.0
        %1206 = vmatprep.subr.mxu0 0.0
        %1207 = vmatpush2.xpose.msra.mxu0 0.0
        %1208 = vmatprep.subr.mxu0 0.0
        %1209 = vmatpush2.xpose.msra.mxu0 0.0
        %1210 = vmatprep.subr.mxu0 0.0
        %1211 = vmatpush2.xpose.msra.mxu0 0.0
        %1212 = vmatprep.subr.mxu0 0.0
        %1213 = vmatpush2.xpose.msra.mxu0 0.0
        %1214 = vmatprep.subr.mxu0 0.0
        %1215 = vmatpush2.xpose.msra.mxu0 0.0
        %1216 = vmatprep.subr.mxu0 0.0
        %1217 = vmatpush2.xpose.msra.mxu0 0.0
        %1218 = vmatprep.mubr.f32.mxu0 0.0
        %1219 = vmatmul.mubr.f32.gmra.mxu0 %v1143
        %v1220 = vpop.f32.mrf.mxu0
        %v1221 = vadd.f32 0.0, %v1220
        %v1222 = vpop.f32.mrf.mxu0
        %1223 = vmatprep.mubr.f32.mxu0 0.0
        %1224 = vmatmul.mubr.f32.gmra.mxu0 %v1146
        %v1225 = vpop.f32.mrf.mxu0
        %v1226 = vadd.f32 0.0, %v1225
        %v1227 = vpop.f32.mrf.mxu0
        %1228 = vdwg.mxu0
        %v1229 = vmul.f32 %v1221, 0.25
        %v1230 = vmul.f32 %v1226, 0.25
        %v1231 = vadd.f32 %v1229, %v818
        %v1232 = vadd.f32 %v1230, %v819
        %vm1233 = vcmask 121856
        %v1234 = vsel %vm1233, %v1231, -inf
        %1235 = vmax.xlane.f32.xlu0 %v1234
        %v1236 = vpop.xlane.xlu0 %1235
        %vm1237 = vcmask 120832
        %v1238 = vsel %vm1237, %v1232, -inf
        %1239 = vmax.xlane.f32.xlu0 %v1238
        %v1240 = vpop.xlane.xlu0 %1239
        %v1241 = vsub.f32 %v1231, %v1236
        %v1242 = vsub.f32 %v1232, %v1240
        %v1243 = vmul.f32 %v1241, 1.442695
        %v1244 = vpow.pop %v1243
        %v1245 = vmul.f32 %v1242, 1.442695
        %v1246 = vpow.pop %v1245
        %v1247 = vsel %vm1233, %v1244, 0.0
        %1248 = vadd.xlane.f32.xlu0 %v1247
        %v1249 = vpop.xlane.xlu0 %1248
        %v1250 = vsel %vm1237, %v1246, 0.0
        %1251 = vadd.xlane.f32.xlu0 %v1250
        %v1252 = vpop.xlane.xlu0 %1251
        %v1253 = vrcp.pop %v1249
        %v1254 = vrcp.pop %v1252
        %v1255 = vmul.f32 %v1244, %v1253
        %v1256 = vmul.f32 %v1246, %v1254
        %v1257 = vsel %vm817, 1, 0
        %vm1258 = vcmp.eq.s32.totalorder %v1257, 1
        %v1259 = vsel %vm1258, %v952, 0.0
        %v1260 = vsel %vm1258, %v957, 0.0
        %v1261 = vsel %vm1258, %v1128, 0.0
        %v1262 = vsel %vm1258, %v1133, 0.0
        %v1264 = vsel %vm823, %v1259, 0
        %v1267 = vsel %vm823, %v1260, 0
        %1269 = vmatprep.subr.mxu0 0.0
        %1270 = vmatpush1.xpose.msra.mxu0 0.0
        %1271 = vmatprep.subr.mxu0 0.0
        %1272 = vmatpush1.xpose.msra.mxu0 0.0
        %1273 = vmatprep.subr.mxu0 0.0
        %1274 = vmatpush1.xpose.msra.mxu0 0.0
        %1275 = vmatprep.subr.mxu0 0.0
        %1276 = vmatpush1.xpose.msra.mxu0 0.0
        %1277 = vmatprep.subr.mxu0 0.0
        %1278 = vmatpush1.xpose.msra.mxu0 0.0
        %1279 = vmatprep.subr.mxu0 0.0
        %1280 = vmatpush1.xpose.msra.mxu0 0.0
        %1281 = vmatprep.subr.mxu0 0.0
        %1282 = vmatpush1.xpose.msra.mxu0 0.0
        %1283 = vmatprep.subr.mxu0 0.0
        %1284 = vmatpush1.xpose.msra.mxu0 0.0
        %1285 = vmatprep.subr.mxu0 0.0
        %1286 = vmatpush1.xpose.msra.mxu0 0.0
        %1287 = vmatprep.subr.mxu0 0.0
        %1288 = vmatpush1.xpose.msra.mxu0 0.0
        %1289 = vmatprep.subr.mxu0 0.0
        %1290 = vmatpush1.xpose.msra.mxu0 0.0
        %1291 = vmatprep.subr.mxu0 0.0
        %1292 = vmatpush1.xpose.msra.mxu0 0.0
        %1293 = vmatprep.subr.mxu0 0.0
        %1294 = vmatpush1.xpose.msra.mxu0 0.0
        %1295 = vmatprep.subr.mxu0 0.0
        %1296 = vmatpush1.xpose.msra.mxu0 0.0
        %1297 = vmatprep.subr.mxu0 0.0
        %1298 = vmatpush1.xpose.msra.mxu0 %v1152
        %1299 = vmatprep.subr.mxu0 0.0
        %1300 = vmatpush1.xpose.msra.mxu0 %v1149
        %1301 = vmatprep.subr.mxu0 0.0
        %1302 = vmatpush2.xpose.msra.mxu0 0.0
        %1303 = vmatprep.subr.mxu0 0.0
        %1304 = vmatpush2.xpose.msra.mxu0 0.0
        %1305 = vmatprep.subr.mxu0 0.0
        %1306 = vmatpush2.xpose.msra.mxu0 0.0
        %1307 = vmatprep.subr.mxu0 0.0
        %1308 = vmatpush2.xpose.msra.mxu0 0.0
        %1309 = vmatprep.subr.mxu0 0.0
        %1310 = vmatpush2.xpose.msra.mxu0 0.0
        %1311 = vmatprep.subr.mxu0 0.0
        %1312 = vmatpush2.xpose.msra.mxu0 0.0
        %1313 = vmatprep.subr.mxu0 0.0
        %1314 = vmatpush2.xpose.msra.mxu0 0.0
        %1315 = vmatprep.subr.mxu0 0.0
        %1316 = vmatpush2.xpose.msra.mxu0 0.0
        %1317 = vmatprep.subr.mxu0 0.0
        %1318 = vmatpush2.xpose.msra.mxu0 0.0
        %1319 = vmatprep.subr.mxu0 0.0
        %1320 = vmatpush2.xpose.msra.mxu0 0.0
        %1321 = vmatprep.subr.mxu0 0.0
        %1322 = vmatpush2.xpose.msra.mxu0 0.0
        %1323 = vmatprep.subr.mxu0 0.0
        %1324 = vmatpush2.xpose.msra.mxu0 0.0
        %1325 = vmatprep.subr.mxu0 0.0
        %1326 = vmatpush2.xpose.msra.mxu0 0.0
        %1327 = vmatprep.subr.mxu0 0.0
        %1328 = vmatpush2.xpose.msra.mxu0 0.0
        %1329 = vmatprep.subr.mxu0 0.0
        %1330 = vmatpush2.xpose.msra.mxu0 0.0
        %1331 = vmatprep.subr.mxu0 0.0
        %1332 = vmatpush2.xpose.msra.mxu0 0.0
        %1333 = vmatprep.mubr.f32.mxu0 0.0
        %1334 = vmatmul.mubr.f32.gmra.mxu0 %v1264
        %v1335 = vpop.f32.mrf.mxu0
        %v1336 = vadd.f32 0.0, %v1335
        %v1337 = vpop.f32.mrf.mxu0
        %1338 = vmatprep.mubr.f32.mxu0 0.0
        %1339 = vmatmul.mubr.f32.gmra.mxu0 %v1267
        %v1340 = vpop.f32.mrf.mxu0
        %v1341 = vadd.f32 0.0, %v1340
        %v1342 = vpop.f32.mrf.mxu0
        %1343 = vdwg.mxu0
        %v1344 = vmul.f32 %v1336, 0.25
        %v1345 = vmul.f32 %v1341, 0.25
        %v1346 = vadd.f32 %v1344, %v818
        %v1347 = vadd.f32 %v1345, %v819
        %v1348 = vsel %vm1233, %v1346, -inf
        %1349 = vmax.xlane.f32.xlu0 %v1348
        %v1350 = vpop.xlane.xlu0 %1349
        %v1351 = vsel %vm1237, %v1347, -inf
        %1352 = vmax.xlane.f32.xlu0 %v1351
        %v1353 = vpop.xlane.xlu0 %1352
        %v1354 = vsub.f32 %v1346, %v1350
        %v1355 = vsub.f32 %v1347, %v1353
        %v1356 = vmul.f32 %v1354, 1.442695
        %v1357 = vpow.pop %v1356
        %v1358 = vmul.f32 %v1355, 1.442695
        %v1359 = vpow.pop %v1358
        %v1360 = vsel %vm1233, %v1357, 0.0
        %1361 = vadd.xlane.f32.xlu0 %v1360
        %v1362 = vpop.xlane.xlu0 %1361
        %v1363 = vsel %vm1237, %v1359, 0.0
        %1364 = vadd.xlane.f32.xlu0 %v1363
        %v1365 = vpop.xlane.xlu0 %1364
        %v1366 = vrcp.pop %v1362
        %v1367 = vrcp.pop %v1365
        %v1368 = vmul.f32 %v1357, %v1366
        %v1369 = vmul.f32 %v1359, %v1367
        %v1371 = vsel %vm1233, %v1368, 0
        %v1374 = vsel %vm1233, %v1369, 0
        %vm1376 = vcmask 1046528
        %v1378 = vsel %vm1376, %v1262, 0
        %1380 = vmatprep.subr.mxu0 0.0
        %1381 = vmatpush1.msra.mxu0 0.0
        %1382 = vmatprep.subr.mxu0 0.0
        %1383 = vmatpush1.msra.mxu0 0.0
        %1384 = vmatprep.subr.mxu0 0.0
        %1385 = vmatpush1.msra.mxu0 0.0
        %1386 = vmatprep.subr.mxu0 0.0
        %1387 = vmatpush1.msra.mxu0 0.0
        %1388 = vmatprep.subr.mxu0 0.0
        %1389 = vmatpush1.msra.mxu0 0.0
        %1390 = vmatprep.subr.mxu0 0.0
        %1391 = vmatpush1.msra.mxu0 0.0
        %1392 = vmatprep.subr.mxu0 0.0
        %1393 = vmatpush1.msra.mxu0 0.0
        %1394 = vmatprep.subr.mxu0 0.0
        %1395 = vmatpush1.msra.mxu0 0.0
        %1396 = vmatprep.subr.mxu0 0.0
        %1397 = vmatpush1.msra.mxu0 0.0
        %1398 = vmatprep.subr.mxu0 0.0
        %1399 = vmatpush1.msra.mxu0 0.0
        %1400 = vmatprep.subr.mxu0 0.0
        %1401 = vmatpush1.msra.mxu0 0.0
        %1402 = vmatprep.subr.mxu0 0.0
        %1403 = vmatpush1.msra.mxu0 0.0
        %1404 = vmatprep.subr.mxu0 0.0
        %1405 = vmatpush1.msra.mxu0 0.0
        %1406 = vmatprep.subr.mxu0 0.0
        %1407 = vmatpush1.msra.mxu0 0.0
        %1408 = vmatprep.subr.mxu0 0.0
        %1409 = vmatpush1.msra.mxu0 %v1378
        %1410 = vmatprep.subr.mxu0 0.0
        %1411 = vmatpush1.msra.mxu0 %v1261
        %1412 = vmatprep.subr.mxu0 0.0
        %1413 = vmatpush2.msra.mxu0 0.0
        %1414 = vmatprep.subr.mxu0 0.0
        %1415 = vmatpush2.msra.mxu0 0.0
        %1416 = vmatprep.subr.mxu0 0.0
        %1417 = vmatpush2.msra.mxu0 0.0
        %1418 = vmatprep.subr.mxu0 0.0
        %1419 = vmatpush2.msra.mxu0 0.0
        %1420 = vmatprep.subr.mxu0 0.0
        %1421 = vmatpush2.msra.mxu0 0.0
        %1422 = vmatprep.subr.mxu0 0.0
        %1423 = vmatpush2.msra.mxu0 0.0
        %1424 = vmatprep.subr.mxu0 0.0
        %1425 = vmatpush2.msra.mxu0 0.0
        %1426 = vmatprep.subr.mxu0 0.0
        %1427 = vmatpush2.msra.mxu0 0.0
        %1428 = vmatprep.subr.mxu0 0.0
        %1429 = vmatpush2.msra.mxu0 0.0
        %1430 = vmatprep.subr.mxu0 0.0
        %1431 = vmatpush2.msra.mxu0 0.0
        %1432 = vmatprep.subr.mxu0 0.0
        %1433 = vmatpush2.msra.mxu0 0.0
        %1434 = vmatprep.subr.mxu0 0.0
        %1435 = vmatpush2.msra.mxu0 0.0
        %1436 = vmatprep.subr.mxu0 0.0
        %1437 = vmatpush2.msra.mxu0 0.0
        %1438 = vmatprep.subr.mxu0 0.0
        %1439 = vmatpush2.msra.mxu0 0.0
        %1440 = vmatprep.subr.mxu0 0.0
        %1441 = vmatpush2.msra.mxu0 0.0
        %1442 = vmatprep.subr.mxu0 0.0
        %1443 = vmatpush2.msra.mxu0 0.0
        %1444 = vmatprep.mubr.f32.mxu0 0.0
        %1445 = vmatmul.mubr.f32.gmra.mxu0 %v1371
        %v1446 = vpop.f32.mrf.mxu0
        %v1447 = vadd.f32 0.0, %v1446
        %v1448 = vpop.f32.mrf.mxu0
        %1449 = vmatprep.mubr.f32.mxu0 0.0
        %1450 = vmatmul.mubr.f32.gmra.mxu0 %v1374
        %v1451 = vpop.f32.mrf.mxu0
        %v1452 = vadd.f32 0.0, %v1451
        %v1453 = vpop.f32.mrf.mxu0
        %1454 = vdwg.mxu0
        %v1456 = vsel %vm1233, %v1255, 0
        %v1459 = vsel %vm1233, %v1256, 0
        %v1462 = vsel %vm1376, %v1141, 0
        %1464 = vmatprep.subr.mxu0 0.0
        %1465 = vmatpush1.msra.mxu0 0.0
        %1466 = vmatprep.subr.mxu0 0.0
        %1467 = vmatpush1.msra.mxu0 0.0
        %1468 = vmatprep.subr.mxu0 0.0
        %1469 = vmatpush1.msra.mxu0 0.0
        %1470 = vmatprep.subr.mxu0 0.0
        %1471 = vmatpush1.msra.mxu0 0.0
        %1472 = vmatprep.subr.mxu0 0.0
        %1473 = vmatpush1.msra.mxu0 0.0
        %1474 = vmatprep.subr.mxu0 0.0
        %1475 = vmatpush1.msra.mxu0 0.0
        %1476 = vmatprep.subr.mxu0 0.0
        %1477 = vmatpush1.msra.mxu0 0.0
        %1478 = vmatprep.subr.mxu0 0.0
        %1479 = vmatpush1.msra.mxu0 0.0
        %1480 = vmatprep.subr.mxu0 0.0
        %1481 = vmatpush1.msra.mxu0 0.0
        %1482 = vmatprep.subr.mxu0 0.0
        %1483 = vmatpush1.msra.mxu0 0.0
        %1484 = vmatprep.subr.mxu0 0.0
        %1485 = vmatpush1.msra.mxu0 0.0
        %1486 = vmatprep.subr.mxu0 0.0
        %1487 = vmatpush1.msra.mxu0 0.0
        %1488 = vmatprep.subr.mxu0 0.0
        %1489 = vmatpush1.msra.mxu0 0.0
        %1490 = vmatprep.subr.mxu0 0.0
        %1491 = vmatpush1.msra.mxu0 0.0
        %1492 = vmatprep.subr.mxu0 0.0
        %1493 = vmatpush1.msra.mxu0 %v1462
        %1494 = vmatprep.subr.mxu0 0.0
        %1495 = vmatpush1.msra.mxu0 %v1140
        %1496 = vmatprep.subr.mxu0 0.0
        %1497 = vmatpush2.msra.mxu0 0.0
        %1498 = vmatprep.subr.mxu0 0.0
        %1499 = vmatpush2.msra.mxu0 0.0
        %1500 = vmatprep.subr.mxu0 0.0
        %1501 = vmatpush2.msra.mxu0 0.0
        %1502 = vmatprep.subr.mxu0 0.0
        %1503 = vmatpush2.msra.mxu0 0.0
        %1504 = vmatprep.subr.mxu0 0.0
        %1505 = vmatpush2.msra.mxu0 0.0
        %1506 = vmatprep.subr.mxu0 0.0
        %1507 = vmatpush2.msra.mxu0 0.0
        %1508 = vmatprep.subr.mxu0 0.0
        %1509 = vmatpush2.msra.mxu0 0.0
        %1510 = vmatprep.subr.mxu0 0.0
        %1511 = vmatpush2.msra.mxu0 0.0
        %1512 = vmatprep.subr.mxu0 0.0
        %1513 = vmatpush2.msra.mxu0 0.0
        %1514 = vmatprep.subr.mxu0 0.0
        %1515 = vmatpush2.msra.mxu0 0.0
        %1516 = vmatprep.subr.mxu0 0.0
        %1517 = vmatpush2.msra.mxu0 0.0
        %1518 = vmatprep.subr.mxu0 0.0
        %1519 = vmatpush2.msra.mxu0 0.0
        %1520 = vmatprep.subr.mxu0 0.0
        %1521 = vmatpush2.msra.mxu0 0.0
        %1522 = vmatprep.subr.mxu0 0.0
        %1523 = vmatpush2.msra.mxu0 0.0
        %1524 = vmatprep.subr.mxu0 0.0
        %1525 = vmatpush2.msra.mxu0 0.0
        %1526 = vmatprep.subr.mxu0 0.0
        %1527 = vmatpush2.msra.mxu0 0.0
        %1528 = vmatprep.mubr.f32.mxu0 0.0
        %1529 = vmatmul.mubr.f32.gmra.mxu0 %v1456
        %v1530 = vpop.f32.mrf.mxu0
        %v1531 = vadd.f32 %v1447, %v1530
        %v1532 = vpop.f32.mrf.mxu0
        %1533 = vmatprep.mubr.f32.mxu0 0.0
        %1534 = vmatmul.mubr.f32.gmra.mxu0 %v1459
        %v1535 = vpop.f32.mrf.mxu0
        %v1536 = vadd.f32 %v1452, %v1535
        %v1537 = vpop.f32.mrf.mxu0
        %1538 = vdwg.mxu0
        %v1539 = vld [vmem:[%s8] sm:$0xff]
        %v1540 = vld [vmem:[%s8 + $0x8] sm:$0xff]
        %v1541 = vld [vmem:[%s8 + $0x10] sm:$0xff]
        %v1542 = vld [vmem:[%s8 + $0x18] sm:$0xff]
        %v1544 = vsel %vm823, %v1531, 0
        %v1547 = vsel %vm823, %v1536, 0
        %1549 = vmatprep.subr.mxu0 0.0
        %1550 = vmatpush1.msra.mxu0 0.0
        %1551 = vmatprep.subr.mxu0 0.0
        %1552 = vmatpush1.msra.mxu0 0.0
        %1553 = vmatprep.subr.mxu0 0.0
        %1554 = vmatpush1.msra.mxu0 0.0
        %1555 = vmatprep.subr.mxu0 0.0
        %1556 = vmatpush1.msra.mxu0 0.0
        %1557 = vmatprep.subr.mxu0 0.0
        %1558 = vmatpush1.msra.mxu0 0.0
        %1559 = vmatprep.subr.mxu0 0.0
        %1560 = vmatpush1.msra.mxu0 0.0
        %1561 = vmatprep.subr.mxu0 0.0
        %1562 = vmatpush1.msra.mxu0 0.0
        %1563 = vmatprep.subr.mxu0 0.0
        %1564 = vmatpush1.msra.mxu0 0.0
        %1565 = vmatprep.subr.mxu0 0.0
        %1566 = vmatpush1.msra.mxu0 0.0
        %1567 = vmatprep.subr.mxu0 0.0
        %1568 = vmatpush1.msra.mxu0 0.0
        %1569 = vmatprep.subr.mxu0 0.0
        %1570 = vmatpush1.msra.mxu0 0.0
        %1571 = vmatprep.subr.mxu0 0.0
        %1572 = vmatpush1.msra.mxu0 0.0
        %1573 = vmatprep.subr.mxu0 0.0
        %1574 = vmatpush1.msra.mxu0 %v1542
        %1575 = vmatprep.subr.mxu0 0.0
        %1576 = vmatpush1.msra.mxu0 %v1541
        %1577 = vmatprep.subr.mxu0 0.0
        %1578 = vmatpush1.msra.mxu0 %v1540
        %1579 = vmatprep.subr.mxu0 0.0
        %1580 = vmatpush1.msra.mxu0 %v1539
        %1581 = vmatprep.subr.mxu0 0.0
        %1582 = vmatpush2.msra.mxu0 0.0
        %1583 = vmatprep.subr.mxu0 0.0
        %1584 = vmatpush2.msra.mxu0 0.0
        %1585 = vmatprep.subr.mxu0 0.0
        %1586 = vmatpush2.msra.mxu0 0.0
        %1587 = vmatprep.subr.mxu0 0.0
        %1588 = vmatpush2.msra.mxu0 0.0
        %1589 = vmatprep.subr.mxu0 0.0
        %1590 = vmatpush2.msra.mxu0 0.0
        %1591 = vmatprep.subr.mxu0 0.0
        %1592 = vmatpush2.msra.mxu0 0.0
        %1593 = vmatprep.subr.mxu0 0.0
        %1594 = vmatpush2.msra.mxu0 0.0
        %1595 = vmatprep.subr.mxu0 0.0
        %1596 = vmatpush2.msra.mxu0 0.0
        %1597 = vmatprep.subr.mxu0 0.0
        %1598 = vmatpush2.msra.mxu0 0.0
        %1599 = vmatprep.subr.mxu0 0.0
        %1600 = vmatpush2.msra.mxu0 0.0
        %1601 = vmatprep.subr.mxu0 0.0
        %1602 = vmatpush2.msra.mxu0 0.0
        %1603 = vmatprep.subr.mxu0 0.0
        %1604 = vmatpush2.msra.mxu0 0.0
        %1605 = vmatprep.subr.mxu0 0.0
        %1606 = vmatpush2.msra.mxu0 0.0
        %1607 = vmatprep.subr.mxu0 0.0
        %1608 = vmatpush2.msra.mxu0 0.0
        %1609 = vmatprep.subr.mxu0 0.0
        %1610 = vmatpush2.msra.mxu0 0.0
        %1611 = vmatprep.subr.mxu0 0.0
        %1612 = vmatpush2.msra.mxu0 0.0
        %1613 = vmatprep.mubr.f32.mxu0 0.0
        %1614 = vmatmul.mubr.f32.gmra.mxu0 %v1544
        %v1615 = vpop.f32.mrf.mxu0
        %v1616 = vadd.f32 0.0, %v1615
        %v1617 = vpop.f32.mrf.mxu0
        %1618 = vmatprep.mubr.f32.mxu0 0.0
        %1619 = vmatmul.mubr.f32.gmra.mxu0 %v1547
        %v1620 = vpop.f32.mrf.mxu0
        %v1621 = vadd.f32 0.0, %v1620
        %v1622 = vpop.f32.mrf.mxu0
        %1623 = vdwg.mxu0
        %v1624 = vadd.f32 %v802, %v1616
        %v1625 = vadd.f32 %v807, %v1621
        %s1626 = scalar_lea.vmem %s12, 2
        %v1627 = vld [vmem:[%s1626] sm:$0x1]
        %v1629 = vlaneseq
        %v1630 = vshrl.u32 %v1629, 7
        %v1631 = vsub.s32 0, %v1630
        %v1632 = vrot.slane %v1627, %v1631
        %v1634 = vadd.f32 %v1624, %v1632
        %v1635 = vadd.f32 %v1625, %v1632
        %s1636 = scalar_lea.vmem %s12, 3
        %v1637 = vld [vmem:[%s1636] sm:$0x1]
        %s1638 = scalar_lea.vmem %s12, 4
        %v1639 = vld [vmem:[%s1638] sm:$0x1]
        %v1640 = vsel %vm823, %v1634, 0.0
        %1641 = vadd.xlane.f32.xlu0 %v1640
        %v1642 = vpop.xlane.xlu0 %1641
        %v1643 = vsel %vm827, %v1635, 0.0
        %1644 = vadd.xlane.f32.xlu0 %v1643
        %v1645 = vpop.xlane.xlu0 %1644
        %v1646 = vmul.f32 %v1642, %v831
        %v1647 = vmul.f32 %v1645, %v831
        %v1648 = vsub.f32 %v1634, %v1646
        %v1649 = vsub.f32 %v1635, %v1647
        %v1650 = vmul.f32 %v1648, %v1648
        %v1651 = vmul.f32 %v1649, %v1649
        %v1652 = vsel %vm823, %v1650, 0.0
        %1653 = vadd.xlane.f32.xlu0 %v1652
        %v1654 = vpop.xlane.xlu0 %1653
        %v1655 = vsel %vm827, %v1651, 0.0
        %1656 = vadd.xlane.f32.xlu0 %v1655
        %v1657 = vpop.xlane.xlu0 %1656
        %v1658 = vmul.f32 %v1654, %v831
        %v1659 = vmul.f32 %v1657, %v831
        %v1660 = vadd.f32 %v1658, 1e-06
        %v1661 = vadd.f32 %v1659, 1e-06
        %v1662 = vrsqrt.pop %v1660
        %v1663 = vrsqrt.pop %v1661
        %v1664 = vmul.f32 %v1648, %v1662
        %v1665 = vmul.f32 %v1649, %v1663
        %v1667 = vlaneseq
        %v1668 = vshrl.u32 %v1667, 7
        %v1669 = vsub.s32 0, %v1668
        %v1670 = vrot.slane %v1637, %v1669
        %v1672 = vmul.f32 %v1664, %v1670
        %v1673 = vmul.f32 %v1665, %v1670
        %v1675 = vlaneseq
        %v1676 = vshrl.u32 %v1675, 7
        %v1677 = vsub.s32 0, %v1676
        %v1678 = vrot.slane %v1639, %v1677
        %v1680 = vadd.f32 %v1672, %v1678
        %v1681 = vadd.f32 %v1673, %v1678
        %v1682 = vld [vmem:[%s9] sm:$0xff]
        %v1683 = vld [vmem:[%s9 + $0x8] sm:$0xff]
        %v1684 = vld [vmem:[%s9 + $0x10] sm:$0xff]
        %v1685 = vld [vmem:[%s9 + $0x18] sm:$0xff]
        %v1686 = vld [vmem:[%s10] sm:$0x1]
        %v1688 = vlaneseq
        %v1689 = vshrl.u32 %v1688, 7
        %v1690 = vsub.s32 0, %v1689
        %v1691 = vrot.slane %v1686, %v1690
        %v1694 = vsel %vm823, %v1680, 0
        %v1697 = vsel %vm823, %v1681, 0
        %1699 = vmatprep.subr.mxu0 0.0
        %1700 = vmatpush1.msra.mxu0 0.0
        %1701 = vmatprep.subr.mxu0 0.0
        %1702 = vmatpush1.msra.mxu0 0.0
        %1703 = vmatprep.subr.mxu0 0.0
        %1704 = vmatpush1.msra.mxu0 0.0
        %1705 = vmatprep.subr.mxu0 0.0
        %1706 = vmatpush1.msra.mxu0 0.0
        %1707 = vmatprep.subr.mxu0 0.0
        %1708 = vmatpush1.msra.mxu0 0.0
        %1709 = vmatprep.subr.mxu0 0.0
        %1710 = vmatpush1.msra.mxu0 0.0
        %1711 = vmatprep.subr.mxu0 0.0
        %1712 = vmatpush1.msra.mxu0 0.0
        %1713 = vmatprep.subr.mxu0 0.0
        %1714 = vmatpush1.msra.mxu0 0.0
        %1715 = vmatprep.subr.mxu0 0.0
        %1716 = vmatpush1.msra.mxu0 0.0
        %1717 = vmatprep.subr.mxu0 0.0
        %1718 = vmatpush1.msra.mxu0 0.0
        %1719 = vmatprep.subr.mxu0 0.0
        %1720 = vmatpush1.msra.mxu0 0.0
        %1721 = vmatprep.subr.mxu0 0.0
        %1722 = vmatpush1.msra.mxu0 0.0
        %1723 = vmatprep.subr.mxu0 0.0
        %1724 = vmatpush1.msra.mxu0 %v1685
        %1725 = vmatprep.subr.mxu0 0.0
        %1726 = vmatpush1.msra.mxu0 %v1684
        %1727 = vmatprep.subr.mxu0 0.0
        %1728 = vmatpush1.msra.mxu0 %v1683
        %1729 = vmatprep.subr.mxu0 0.0
        %1730 = vmatpush1.msra.mxu0 %v1682
        %1731 = vmatprep.subr.mxu0 0.0
        %1732 = vmatpush2.msra.mxu0 0.0
        %1733 = vmatprep.subr.mxu0 0.0
        %1734 = vmatpush2.msra.mxu0 0.0
        %1735 = vmatprep.subr.mxu0 0.0
        %1736 = vmatpush2.msra.mxu0 0.0
        %1737 = vmatprep.subr.mxu0 0.0
        %1738 = vmatpush2.msra.mxu0 0.0
        %1739 = vmatprep.subr.mxu0 0.0
        %1740 = vmatpush2.msra.mxu0 0.0
        %1741 = vmatprep.subr.mxu0 0.0
        %1742 = vmatpush2.msra.mxu0 0.0
        %1743 = vmatprep.subr.mxu0 0.0
        %1744 = vmatpush2.msra.mxu0 0.0
        %1745 = vmatprep.subr.mxu0 0.0
        %1746 = vmatpush2.msra.mxu0 0.0
        %1747 = vmatprep.subr.mxu0 0.0
        %1748 = vmatpush2.msra.mxu0 0.0
        %1749 = vmatprep.subr.mxu0 0.0
        %1750 = vmatpush2.msra.mxu0 0.0
        %1751 = vmatprep.subr.mxu0 0.0
        %1752 = vmatpush2.msra.mxu0 0.0
        %1753 = vmatprep.subr.mxu0 0.0
        %1754 = vmatpush2.msra.mxu0 0.0
        %1755 = vmatprep.subr.mxu0 0.0
        %1756 = vmatpush2.msra.mxu0 0.0
        %1757 = vmatprep.subr.mxu0 0.0
        %1758 = vmatpush2.msra.mxu0 0.0
        %1759 = vmatprep.subr.mxu0 0.0
        %1760 = vmatpush2.msra.mxu0 0.0
        %1761 = vmatprep.subr.mxu0 0.0
        %1762 = vmatpush2.msra.mxu0 0.0
        %1763 = vmatprep.mubr.f32.mxu0 0.0
        %1764 = vmatmul.mubr.f32.gmra.mxu0 %v1694
        %v1765 = vpop.f32.mrf.mxu0
        %v1766 = vadd.f32 %v1691, %v1765
        %v1767 = vpop.f32.mrf.mxu0
        %1768 = vmatprep.mubr.f32.mxu0 0.0
        %1769 = vmatmul.mubr.f32.gmra.mxu0 %v1697
        %v1770 = vpop.f32.mrf.mxu0
        %v1771 = vadd.f32 %v1691, %v1770
        %v1772 = vpop.f32.mrf.mxu0
        %1773 = vdwg.mxu0
        %v1774 = vmul.f32 %v1766, 0.5
        %v1775 = vmul.f32 %v1771, 0.5
        %v1776 = vmul.f32 %v1766, 0.70710677
        %v1777 = vmul.f32 %v1771, 0.70710677
        %v1778 = vand.u32 2147483647, %v1776
        %v1779 = vand.u32 2147483647, %v1777
        %v1780 = vmul.f32 %v1778, 0.3275911
        %v1781 = vmul.f32 %v1779, 0.3275911
        %v1782 = vadd.f32 %v1780, 1.0
        %v1783 = vadd.f32 %v1781, 1.0
        %v1784 = vrcp.pop %v1782
        %v1785 = vmul.f32 1.0, %v1784
        %v1786 = vrcp.pop %v1783
        %v1787 = vmul.f32 1.0, %v1786
        %v1788 = vmul.f32 %v1785, 1.0614054
        %v1789 = vmul.f32 %v1787, 1.0614054
        %v1790 = vadd.f32 %v1788, -1.4531521
        %v1791 = vadd.f32 %v1789, -1.4531521
        %v1792 = vmul.f32 %v1790, %v1785
        %v1793 = vmul.f32 %v1791, %v1787
        %v1794 = vadd.f32 %v1792, 1.4214138
        %v1795 = vadd.f32 %v1793, 1.4214138
        %v1796 = vmul.f32 %v1794, %v1785
        %v1797 = vmul.f32 %v1795, %v1787
        %v1798 = vadd.f32 %v1796, -0.28449672
        %v1799 = vadd.f32 %v1797, -0.28449672
        %v1800 = vmul.f32 %v1798, %v1785
        %v1801 = vmul.f32 %v1799, %v1787
        %v1802 = vadd.f32 %v1800, 0.2548296
        %v1803 = vadd.f32 %v1801, 0.2548296
        %v1804 = vmul.f32 %v1802, %v1785
        %v1805 = vmul.f32 %v1803, %v1787
        %v1806 = vsub.f32 0.0, %v1778
        %v1807 = vsub.f32 0.0, %v1779
        %v1808 = vmul.f32 %v1806, %v1778
        %v1809 = vmul.f32 %v1807, %v1779
        %v1810 = vmul.f32 %v1808, 1.442695
        %v1811 = vpow.pop %v1810
        %v1812 = vmul.f32 %v1809, 1.442695
        %v1813 = vpow.pop %v1812
        %v1814 = vmul.f32 %v1804, %v1811
        %v1815 = vmul.f32 %v1805, %v1813
        %v1816 = vsub.f32 1.0, %v1814
        %v1817 = vsub.f32 1.0, %v1815
        %vm1818 = vcmp.ge.f32.partialorder %v1776, 0.0
        %vm1819 = vcmp.ge.f32.partialorder %v1777, 0.0
        %v1820 = vsub.f32 0.0, %v1816
        %v1821 = vsub.f32 0.0, %v1817
        %v1822 = vsel %vm1818, %v1816, %v1820
        %v1823 = vsel %vm1819, %v1817, %v1821
        %v1824 = vadd.f32 %v1822, 1.0
        %v1825 = vadd.f32 %v1823, 1.0
        %v1826 = vmul.f32 %v1774, %v1824
        %v1827 = vmul.f32 %v1775, %v1825
        %v1828 = vld [vmem:[%s11] sm:$0xff]
        %v1829 = vld [vmem:[%s11 + $0x8] sm:$0xff]
        %v1830 = vld [vmem:[%s11 + $0x10] sm:$0xff]
        %v1831 = vld [vmem:[%s11 + $0x18] sm:$0xff]
        %v1832 = vld [vmem:[%s11 + $0x20] sm:$0xff]
        %v1833 = vld [vmem:[%s11 + $0x28] sm:$0xff]
        %v1834 = vld [vmem:[%s11 + $0x30] sm:$0xff]
        %v1835 = vld [vmem:[%s11 + $0x38] sm:$0xff]
        %v1836 = vld [vmem:[%s11 + $0x40] sm:$0xff]
        %v1837 = vld [vmem:[%s11 + $0x48] sm:$0xff]
        %v1838 = vld [vmem:[%s11 + $0x50] sm:$0xff]
        %v1839 = vld [vmem:[%s11 + $0x58] sm:$0xff]
        %v1840 = vld [vmem:[%s11 + $0x60] sm:$0xff]
        %v1841 = vld [vmem:[%s11 + $0x68] sm:$0xff]
        %v1842 = vld [vmem:[%s11 + $0x70] sm:$0xff]
        %v1843 = vld [vmem:[%s11 + $0x78] sm:$0xff]
        %1844 = vmatprep.subr.mxu0 0.0
        %1845 = vmatpush1.msra.mxu0 %v1843
        %1846 = vmatprep.subr.mxu0 0.0
        %1847 = vmatpush1.msra.mxu0 %v1842
        %1848 = vmatprep.subr.mxu0 0.0
        %1849 = vmatpush1.msra.mxu0 %v1841
        %1850 = vmatprep.subr.mxu0 0.0
        %1851 = vmatpush1.msra.mxu0 %v1840
        %1852 = vmatprep.subr.mxu0 0.0
        %1853 = vmatpush1.msra.mxu0 %v1839
        %1854 = vmatprep.subr.mxu0 0.0
        %1855 = vmatpush1.msra.mxu0 %v1838
        %1856 = vmatprep.subr.mxu0 0.0
        %1857 = vmatpush1.msra.mxu0 %v1837
        %1858 = vmatprep.subr.mxu0 0.0
        %1859 = vmatpush1.msra.mxu0 %v1836
        %1860 = vmatprep.subr.mxu0 0.0
        %1861 = vmatpush1.msra.mxu0 %v1835
        %1862 = vmatprep.subr.mxu0 0.0
        %1863 = vmatpush1.msra.mxu0 %v1834
        %1864 = vmatprep.subr.mxu0 0.0
        %1865 = vmatpush1.msra.mxu0 %v1833
        %1866 = vmatprep.subr.mxu0 0.0
        %1867 = vmatpush1.msra.mxu0 %v1832
        %1868 = vmatprep.subr.mxu0 0.0
        %1869 = vmatpush1.msra.mxu0 %v1831
        %1870 = vmatprep.subr.mxu0 0.0
        %1871 = vmatpush1.msra.mxu0 %v1830
        %1872 = vmatprep.subr.mxu0 0.0
        %1873 = vmatpush1.msra.mxu0 %v1829
        %1874 = vmatprep.subr.mxu0 0.0
        %1875 = vmatpush1.msra.mxu0 %v1828
        %1876 = vmatprep.subr.mxu0 0.0
        %1877 = vmatpush2.msra.mxu0 0.0
        %1878 = vmatprep.subr.mxu0 0.0
        %1879 = vmatpush2.msra.mxu0 0.0
        %1880 = vmatprep.subr.mxu0 0.0
        %1881 = vmatpush2.msra.mxu0 0.0
        %1882 = vmatprep.subr.mxu0 0.0
        %1883 = vmatpush2.msra.mxu0 0.0
        %1884 = vmatprep.subr.mxu0 0.0
        %1885 = vmatpush2.msra.mxu0 0.0
        %1886 = vmatprep.subr.mxu0 0.0
        %1887 = vmatpush2.msra.mxu0 0.0
        %1888 = vmatprep.subr.mxu0 0.0
        %1889 = vmatpush2.msra.mxu0 0.0
        %1890 = vmatprep.subr.mxu0 0.0
        %1891 = vmatpush2.msra.mxu0 0.0
        %1892 = vmatprep.subr.mxu0 0.0
        %1893 = vmatpush2.msra.mxu0 0.0
        %1894 = vmatprep.subr.mxu0 0.0
        %1895 = vmatpush2.msra.mxu0 0.0
        %1896 = vmatprep.subr.mxu0 0.0
        %1897 = vmatpush2.msra.mxu0 0.0
        %1898 = vmatprep.subr.mxu0 0.0
        %1899 = vmatpush2.msra.mxu0 0.0
        %1900 = vmatprep.subr.mxu0 0.0
        %1901 = vmatpush2.msra.mxu0 0.0
        %1902 = vmatprep.subr.mxu0 0.0
        %1903 = vmatpush2.msra.mxu0 0.0
        %1904 = vmatprep.subr.mxu0 0.0
        %1905 = vmatpush2.msra.mxu0 0.0
        %1906 = vmatprep.subr.mxu0 0.0
        %1907 = vmatpush2.msra.mxu0 0.0
        %1908 = vmatprep.mubr.f32.mxu0 0.0
        %1909 = vmatmul.mubr.f32.gmra.mxu0 %v1826
        %v1910 = vpop.f32.mrf.mxu0
        %v1911 = vadd.f32 0.0, %v1910
        %v1912 = vpop.f32.mrf.mxu0
        %1913 = vmatprep.mubr.f32.mxu0 0.0
        %1914 = vmatmul.mubr.f32.gmra.mxu0 %v1827
        %v1915 = vpop.f32.mrf.mxu0
        %v1916 = vadd.f32 0.0, %v1915
        %v1917 = vpop.f32.mrf.mxu0
        %1918 = vdwg.mxu0
        %v1919 = vadd.f32 %v1634, %v1911
        %v1920 = vadd.f32 %v1635, %v1916
        %s1921 = scalar_lea.vmem %s12, 5
        %v1922 = vld [vmem:[%s1921] sm:$0x1]
        %v1924 = vlaneseq
        %v1925 = vshrl.u32 %v1924, 7
        %v1926 = vsub.s32 0, %v1925
        %v1927 = vrot.slane %v1922, %v1926
        %v1929 = vadd.f32 %v1919, %v1927
        %v1930 = vadd.f32 %v1920, %v1927
        %s1931 = scalar_lea.vmem %s12, 6
        %v1932 = vld [vmem:[%s1931] sm:$0x1]
        %s1933 = scalar_lea.vmem %s12, 7
        %v1934 = vld [vmem:[%s1933] sm:$0x1]
        %v1935 = vsel %vm823, %v1929, 0.0
        %1936 = vadd.xlane.f32.xlu0 %v1935
        %v1937 = vpop.xlane.xlu0 %1936
        %v1938 = vsel %vm827, %v1930, 0.0
        %1939 = vadd.xlane.f32.xlu0 %v1938
        %v1940 = vpop.xlane.xlu0 %1939
        %v1941 = vmul.f32 %v1937, %v831
        %v1942 = vmul.f32 %v1940, %v831
        %v1943 = vsub.f32 %v1929, %v1941
        %v1944 = vsub.f32 %v1930, %v1942
        %v1945 = vmul.f32 %v1943, %v1943
        %v1946 = vmul.f32 %v1944, %v1944
        %v1947 = vsel %vm823, %v1945, 0.0
        %1948 = vadd.xlane.f32.xlu0 %v1947
        %v1949 = vpop.xlane.xlu0 %1948
        %v1950 = vsel %vm827, %v1946, 0.0
        %1951 = vadd.xlane.f32.xlu0 %v1950
        %v1952 = vpop.xlane.xlu0 %1951
        %v1953 = vmul.f32 %v1949, %v831
        %v1954 = vmul.f32 %v1952, %v831
        %v1955 = vadd.f32 %v1953, 1e-06
        %v1956 = vadd.f32 %v1954, 1e-06
        %v1957 = vrsqrt.pop %v1955
        %v1958 = vrsqrt.pop %v1956
        %v1959 = vmul.f32 %v1943, %v1957
        %v1960 = vmul.f32 %v1944, %v1958
        %v1962 = vlaneseq
        %v1963 = vshrl.u32 %v1962, 7
        %v1964 = vsub.s32 0, %v1963
        %v1965 = vrot.slane %v1932, %v1964
        %v1967 = vmul.f32 %v1959, %v1965
        %v1968 = vmul.f32 %v1960, %v1965
        %v1970 = vlaneseq
        %v1971 = vshrl.u32 %v1970, 7
        %v1972 = vsub.s32 0, %v1971
        %v1973 = vrot.slane %v1934, %v1972
        %v1975 = vadd.f32 %v1967, %v1973
        %v1976 = vadd.f32 %v1968, %v1973
        %s1977 = scalar_lea.vmem %s6, 96
        %v1978 = vld [vmem:[%s1977] sm:$0xff]
        %v1979 = vld [vmem:[%s1977 + $0x8] sm:$0xff]
        %v1980 = vld [vmem:[%s1977 + $0x10] sm:$0xff]
        %v1981 = vld [vmem:[%s1977 + $0x18] sm:$0xff]
        %s1982 = scalar_lea.vmem %s7, 3
        %v1983 = vld [vmem:[%s1982] sm:$0x1]
        %v1985 = vlaneseq
        %v1986 = vshrl.u32 %v1985, 7
        %v1987 = vsub.s32 0, %v1986
        %v1988 = vrot.slane %v1983, %v1987
        %v1991 = vsel %vm823, %v1975, 0
        %v1994 = vsel %vm823, %v1976, 0
        %1996 = vmatprep.subr.mxu0 0.0
        %1997 = vmatpush1.msra.mxu0 0.0
        %1998 = vmatprep.subr.mxu0 0.0
        %1999 = vmatpush1.msra.mxu0 0.0
        %2000 = vmatprep.subr.mxu0 0.0
        %2001 = vmatpush1.msra.mxu0 0.0
        %2002 = vmatprep.subr.mxu0 0.0
        %2003 = vmatpush1.msra.mxu0 0.0
        %2004 = vmatprep.subr.mxu0 0.0
        %2005 = vmatpush1.msra.mxu0 0.0
        %2006 = vmatprep.subr.mxu0 0.0
        %2007 = vmatpush1.msra.mxu0 0.0
        %2008 = vmatprep.subr.mxu0 0.0
        %2009 = vmatpush1.msra.mxu0 0.0
        %2010 = vmatprep.subr.mxu0 0.0
        %2011 = vmatpush1.msra.mxu0 0.0
        %2012 = vmatprep.subr.mxu0 0.0
        %2013 = vmatpush1.msra.mxu0 0.0
        %2014 = vmatprep.subr.mxu0 0.0
        %2015 = vmatpush1.msra.mxu0 0.0
        %2016 = vmatprep.subr.mxu0 0.0
        %2017 = vmatpush1.msra.mxu0 0.0
        %2018 = vmatprep.subr.mxu0 0.0
        %2019 = vmatpush1.msra.mxu0 0.0
        %2020 = vmatprep.subr.mxu0 0.0
        %2021 = vmatpush1.msra.mxu0 %v1981
        %2022 = vmatprep.subr.mxu0 0.0
        %2023 = vmatpush1.msra.mxu0 %v1980
        %2024 = vmatprep.subr.mxu0 0.0
        %2025 = vmatpush1.msra.mxu0 %v1979
        %2026 = vmatprep.subr.mxu0 0.0
        %2027 = vmatpush1.msra.mxu0 %v1978
        %2028 = vmatprep.subr.mxu0 0.0
        %2029 = vmatpush2.msra.mxu0 0.0
        %2030 = vmatprep.subr.mxu0 0.0
        %2031 = vmatpush2.msra.mxu0 0.0
        %2032 = vmatprep.subr.mxu0 0.0
        %2033 = vmatpush2.msra.mxu0 0.0
        %2034 = vmatprep.subr.mxu0 0.0
        %2035 = vmatpush2.msra.mxu0 0.0
        %2036 = vmatprep.subr.mxu0 0.0
        %2037 = vmatpush2.msra.mxu0 0.0
        %2038 = vmatprep.subr.mxu0 0.0
        %2039 = vmatpush2.msra.mxu0 0.0
        %2040 = vmatprep.subr.mxu0 0.0
        %2041 = vmatpush2.msra.mxu0 0.0
        %2042 = vmatprep.subr.mxu0 0.0
        %2043 = vmatpush2.msra.mxu0 0.0
        %2044 = vmatprep.subr.mxu0 0.0
        %2045 = vmatpush2.msra.mxu0 0.0
        %2046 = vmatprep.subr.mxu0 0.0
        %2047 = vmatpush2.msra.mxu0 0.0
        %2048 = vmatprep.subr.mxu0 0.0
        %2049 = vmatpush2.msra.mxu0 0.0
        %2050 = vmatprep.subr.mxu0 0.0
        %2051 = vmatpush2.msra.mxu0 0.0
        %2052 = vmatprep.subr.mxu0 0.0
        %2053 = vmatpush2.msra.mxu0 0.0
        %2054 = vmatprep.subr.mxu0 0.0
        %2055 = vmatpush2.msra.mxu0 0.0
        %2056 = vmatprep.subr.mxu0 0.0
        %2057 = vmatpush2.msra.mxu0 0.0
        %2058 = vmatprep.subr.mxu0 0.0
        %2059 = vmatpush2.msra.mxu0 0.0
        %2060 = vmatprep.mubr.f32.mxu0 0.0
        %2061 = vmatmul.mubr.f32.gmra.mxu0 %v1991
        %v2062 = vpop.f32.mrf.mxu0
        %v2063 = vadd.f32 %v1988, %v2062
        %v2064 = vpop.f32.mrf.mxu0
        %2065 = vmatprep.mubr.f32.mxu0 0.0
        %2066 = vmatmul.mubr.f32.gmra.mxu0 %v1994
        %v2067 = vpop.f32.mrf.mxu0
        %v2068 = vadd.f32 %v1988, %v2067
        %v2069 = vpop.f32.mrf.mxu0
        %2070 = vdwg.mxu0
        %s2071 = scalar_lea.vmem %s6, 128
        %v2072 = vld [vmem:[%s2071] sm:$0xff]
        %v2073 = vld [vmem:[%s2071 + $0x8] sm:$0xff]
        %v2074 = vld [vmem:[%s2071 + $0x10] sm:$0xff]
        %v2075 = vld [vmem:[%s2071 + $0x18] sm:$0xff]
        %s2076 = scalar_lea.vmem %s7, 4
        %v2077 = vld [vmem:[%s2076] sm:$0x1]
        %v2079 = vlaneseq
        %v2080 = vshrl.u32 %v2079, 7
        %v2081 = vsub.s32 0, %v2080
        %v2082 = vrot.slane %v2077, %v2081
        %2084 = vmatprep.subr.mxu0 0.0
        %2085 = vmatpush1.msra.mxu0 0.0
        %2086 = vmatprep.subr.mxu0 0.0
        %2087 = vmatpush1.msra.mxu0 0.0
        %2088 = vmatprep.subr.mxu0 0.0
        %2089 = vmatpush1.msra.mxu0 0.0
        %2090 = vmatprep.subr.mxu0 0.0
        %2091 = vmatpush1.msra.mxu0 0.0
        %2092 = vmatprep.subr.mxu0 0.0
        %2093 = vmatpush1.msra.mxu0 0.0
        %2094 = vmatprep.subr.mxu0 0.0
        %2095 = vmatpush1.msra.mxu0 0.0
        %2096 = vmatprep.subr.mxu0 0.0
        %2097 = vmatpush1.msra.mxu0 0.0
        %2098 = vmatprep.subr.mxu0 0.0
        %2099 = vmatpush1.msra.mxu0 0.0
        %2100 = vmatprep.subr.mxu0 0.0
        %2101 = vmatpush1.msra.mxu0 0.0
        %2102 = vmatprep.subr.mxu0 0.0
        %2103 = vmatpush1.msra.mxu0 0.0
        %2104 = vmatprep.subr.mxu0 0.0
        %2105 = vmatpush1.msra.mxu0 0.0
        %2106 = vmatprep.subr.mxu0 0.0
        %2107 = vmatpush1.msra.mxu0 0.0
        %2108 = vmatprep.subr.mxu0 0.0
        %2109 = vmatpush1.msra.mxu0 %v2075
        %2110 = vmatprep.subr.mxu0 0.0
        %2111 = vmatpush1.msra.mxu0 %v2074
        %2112 = vmatprep.subr.mxu0 0.0
        %2113 = vmatpush1.msra.mxu0 %v2073
        %2114 = vmatprep.subr.mxu0 0.0
        %2115 = vmatpush1.msra.mxu0 %v2072
        %2116 = vmatprep.subr.mxu0 0.0
        %2117 = vmatpush2.msra.mxu0 0.0
        %2118 = vmatprep.subr.mxu0 0.0
        %2119 = vmatpush2.msra.mxu0 0.0
        %2120 = vmatprep.subr.mxu0 0.0
        %2121 = vmatpush2.msra.mxu0 0.0
        %2122 = vmatprep.subr.mxu0 0.0
        %2123 = vmatpush2.msra.mxu0 0.0
        %2124 = vmatprep.subr.mxu0 0.0
        %2125 = vmatpush2.msra.mxu0 0.0
        %2126 = vmatprep.subr.mxu0 0.0
        %2127 = vmatpush2.msra.mxu0 0.0
        %2128 = vmatprep.subr.mxu0 0.0
        %2129 = vmatpush2.msra.mxu0 0.0
        %2130 = vmatprep.subr.mxu0 0.0
        %2131 = vmatpush2.msra.mxu0 0.0
        %2132 = vmatprep.subr.mxu0 0.0
        %2133 = vmatpush2.msra.mxu0 0.0
        %2134 = vmatprep.subr.mxu0 0.0
        %2135 = vmatpush2.msra.mxu0 0.0
        %2136 = vmatprep.subr.mxu0 0.0
        %2137 = vmatpush2.msra.mxu0 0.0
        %2138 = vmatprep.subr.mxu0 0.0
        %2139 = vmatpush2.msra.mxu0 0.0
        %2140 = vmatprep.subr.mxu0 0.0
        %2141 = vmatpush2.msra.mxu0 0.0
        %2142 = vmatprep.subr.mxu0 0.0
        %2143 = vmatpush2.msra.mxu0 0.0
        %2144 = vmatprep.subr.mxu0 0.0
        %2145 = vmatpush2.msra.mxu0 0.0
        %2146 = vmatprep.subr.mxu0 0.0
        %2147 = vmatpush2.msra.mxu0 0.0
        %2148 = vmatprep.mubr.f32.mxu0 0.0
        %2149 = vmatmul.mubr.f32.gmra.mxu0 %v1991
        %v2150 = vpop.f32.mrf.mxu0
        %v2151 = vadd.f32 %v2082, %v2150
        %v2152 = vpop.f32.mrf.mxu0
        %2153 = vmatprep.mubr.f32.mxu0 0.0
        %2154 = vmatmul.mubr.f32.gmra.mxu0 %v1994
        %v2155 = vpop.f32.mrf.mxu0
        %v2156 = vadd.f32 %v2082, %v2155
        %v2157 = vpop.f32.mrf.mxu0
        %2158 = vdwg.mxu0
        %s2159 = scalar_lea.vmem %s6, 160
        %v2160 = vld [vmem:[%s2159] sm:$0xff]
        %v2161 = vld [vmem:[%s2159 + $0x8] sm:$0xff]
        %v2162 = vld [vmem:[%s2159 + $0x10] sm:$0xff]
        %v2163 = vld [vmem:[%s2159 + $0x18] sm:$0xff]
        %s2164 = scalar_lea.vmem %s7, 5
        %v2165 = vld [vmem:[%s2164] sm:$0x1]
        %v2167 = vlaneseq
        %v2168 = vshrl.u32 %v2167, 7
        %v2169 = vsub.s32 0, %v2168
        %v2170 = vrot.slane %v2165, %v2169
        %2172 = vmatprep.subr.mxu0 0.0
        %2173 = vmatpush1.msra.mxu0 0.0
        %2174 = vmatprep.subr.mxu0 0.0
        %2175 = vmatpush1.msra.mxu0 0.0
        %2176 = vmatprep.subr.mxu0 0.0
        %2177 = vmatpush1.msra.mxu0 0.0
        %2178 = vmatprep.subr.mxu0 0.0
        %2179 = vmatpush1.msra.mxu0 0.0
        %2180 = vmatprep.subr.mxu0 0.0
        %2181 = vmatpush1.msra.mxu0 0.0
        %2182 = vmatprep.subr.mxu0 0.0
        %2183 = vmatpush1.msra.mxu0 0.0
        %2184 = vmatprep.subr.mxu0 0.0
        %2185 = vmatpush1.msra.mxu0 0.0
        %2186 = vmatprep.subr.mxu0 0.0
        %2187 = vmatpush1.msra.mxu0 0.0
        %2188 = vmatprep.subr.mxu0 0.0
        %2189 = vmatpush1.msra.mxu0 0.0
        %2190 = vmatprep.subr.mxu0 0.0
        %2191 = vmatpush1.msra.mxu0 0.0
        %2192 = vmatprep.subr.mxu0 0.0
        %2193 = vmatpush1.msra.mxu0 0.0
        %2194 = vmatprep.subr.mxu0 0.0
        %2195 = vmatpush1.msra.mxu0 0.0
        %2196 = vmatprep.subr.mxu0 0.0
        %2197 = vmatpush1.msra.mxu0 %v2163
        %2198 = vmatprep.subr.mxu0 0.0
        %2199 = vmatpush1.msra.mxu0 %v2162
        %2200 = vmatprep.subr.mxu0 0.0
        %2201 = vmatpush1.msra.mxu0 %v2161
        %2202 = vmatprep.subr.mxu0 0.0
        %2203 = vmatpush1.msra.mxu0 %v2160
        %2204 = vmatprep.subr.mxu0 0.0
        %2205 = vmatpush2.msra.mxu0 0.0
        %2206 = vmatprep.subr.mxu0 0.0
        %2207 = vmatpush2.msra.mxu0 0.0
        %2208 = vmatprep.subr.mxu0 0.0
        %2209 = vmatpush2.msra.mxu0 0.0
        %2210 = vmatprep.subr.mxu0 0.0
        %2211 = vmatpush2.msra.mxu0 0.0
        %2212 = vmatprep.subr.mxu0 0.0
        %2213 = vmatpush2.msra.mxu0 0.0
        %2214 = vmatprep.subr.mxu0 0.0
        %2215 = vmatpush2.msra.mxu0 0.0
        %2216 = vmatprep.subr.mxu0 0.0
        %2217 = vmatpush2.msra.mxu0 0.0
        %2218 = vmatprep.subr.mxu0 0.0
        %2219 = vmatpush2.msra.mxu0 0.0
        %2220 = vmatprep.subr.mxu0 0.0
        %2221 = vmatpush2.msra.mxu0 0.0
        %2222 = vmatprep.subr.mxu0 0.0
        %2223 = vmatpush2.msra.mxu0 0.0
        %2224 = vmatprep.subr.mxu0 0.0
        %2225 = vmatpush2.msra.mxu0 0.0
        %2226 = vmatprep.subr.mxu0 0.0
        %2227 = vmatpush2.msra.mxu0 0.0
        %2228 = vmatprep.subr.mxu0 0.0
        %2229 = vmatpush2.msra.mxu0 0.0
        %2230 = vmatprep.subr.mxu0 0.0
        %2231 = vmatpush2.msra.mxu0 0.0
        %2232 = vmatprep.subr.mxu0 0.0
        %2233 = vmatpush2.msra.mxu0 0.0
        %2234 = vmatprep.subr.mxu0 0.0
        %2235 = vmatpush2.msra.mxu0 0.0
        %2236 = vmatprep.mubr.f32.mxu0 0.0
        %2237 = vmatmul.mubr.f32.gmra.mxu0 %v1991
        %v2238 = vpop.f32.mrf.mxu0
        %v2239 = vadd.f32 %v2170, %v2238
        %v2240 = vpop.f32.mrf.mxu0
        %2241 = vmatprep.mubr.f32.mxu0 0.0
        %2242 = vmatmul.mubr.f32.gmra.mxu0 %v1994
        %v2243 = vpop.f32.mrf.mxu0
        %v2244 = vadd.f32 %v2170, %v2243
        %v2245 = vpop.f32.mrf.mxu0
        %2246 = vdwg.mxu0
        %v2247 = vsel %vm1137, %v2063, 0.0
        %v2248 = vsel %vm1137, %v2068, 0.0
        %v2249 = vsel %vm1137, %v2239, 0.0
        %v2250 = vsel %vm1137, %v2244, 0.0
        %v2252 = vsel %vm823, %v2247, 0
        %v2255 = vsel %vm823, %v2248, 0
        %v2258 = vsel %vm823, %v2151, 0
        %v2261 = vsel %vm823, %v2156, 0
        %2263 = vmatprep.subr.mxu0 0.0
        %2264 = vmatpush1.xpose.msra.mxu0 0.0
        %2265 = vmatprep.subr.mxu0 0.0
        %2266 = vmatpush1.xpose.msra.mxu0 0.0
        %2267 = vmatprep.subr.mxu0 0.0
        %2268 = vmatpush1.xpose.msra.mxu0 0.0
        %2269 = vmatprep.subr.mxu0 0.0
        %2270 = vmatpush1.xpose.msra.mxu0 0.0
        %2271 = vmatprep.subr.mxu0 0.0
        %2272 = vmatpush1.xpose.msra.mxu0 0.0
        %2273 = vmatprep.subr.mxu0 0.0
        %2274 = vmatpush1.xpose.msra.mxu0 0.0
        %2275 = vmatprep.subr.mxu0 0.0
        %2276 = vmatpush1.xpose.msra.mxu0 0.0
        %2277 = vmatprep.subr.mxu0 0.0
        %2278 = vmatpush1.xpose.msra.mxu0 0.0
        %2279 = vmatprep.subr.mxu0 0.0
        %2280 = vmatpush1.xpose.msra.mxu0 0.0
        %2281 = vmatprep.subr.mxu0 0.0
        %2282 = vmatpush1.xpose.msra.mxu0 0.0
        %2283 = vmatprep.subr.mxu0 0.0
        %2284 = vmatpush1.xpose.msra.mxu0 0.0
        %2285 = vmatprep.subr.mxu0 0.0
        %2286 = vmatpush1.xpose.msra.mxu0 0.0
        %2287 = vmatprep.subr.mxu0 0.0
        %2288 = vmatpush1.xpose.msra.mxu0 0.0
        %2289 = vmatprep.subr.mxu0 0.0
        %2290 = vmatpush1.xpose.msra.mxu0 0.0
        %2291 = vmatprep.subr.mxu0 0.0
        %2292 = vmatpush1.xpose.msra.mxu0 %v2261
        %2293 = vmatprep.subr.mxu0 0.0
        %2294 = vmatpush1.xpose.msra.mxu0 %v2258
        %2295 = vmatprep.subr.mxu0 0.0
        %2296 = vmatpush2.xpose.msra.mxu0 0.0
        %2297 = vmatprep.subr.mxu0 0.0
        %2298 = vmatpush2.xpose.msra.mxu0 0.0
        %2299 = vmatprep.subr.mxu0 0.0
        %2300 = vmatpush2.xpose.msra.mxu0 0.0
        %2301 = vmatprep.subr.mxu0 0.0
        %2302 = vmatpush2.xpose.msra.mxu0 0.0
        %2303 = vmatprep.subr.mxu0 0.0
        %2304 = vmatpush2.xpose.msra.mxu0 0.0
        %2305 = vmatprep.subr.mxu0 0.0
        %2306 = vmatpush2.xpose.msra.mxu0 0.0
        %2307 = vmatprep.subr.mxu0 0.0
        %2308 = vmatpush2.xpose.msra.mxu0 0.0
        %2309 = vmatprep.subr.mxu0 0.0
        %2310 = vmatpush2.xpose.msra.mxu0 0.0
        %2311 = vmatprep.subr.mxu0 0.0
        %2312 = vmatpush2.xpose.msra.mxu0 0.0
        %2313 = vmatprep.subr.mxu0 0.0
        %2314 = vmatpush2.xpose.msra.mxu0 0.0
        %2315 = vmatprep.subr.mxu0 0.0
        %2316 = vmatpush2.xpose.msra.mxu0 0.0
        %2317 = vmatprep.subr.mxu0 0.0
        %2318 = vmatpush2.xpose.msra.mxu0 0.0
        %2319 = vmatprep.subr.mxu0 0.0
        %2320 = vmatpush2.xpose.msra.mxu0 0.0
        %2321 = vmatprep.subr.mxu0 0.0
        %2322 = vmatpush2.xpose.msra.mxu0 0.0
        %2323 = vmatprep.subr.mxu0 0.0
        %2324 = vmatpush2.xpose.msra.mxu0 0.0
        %2325 = vmatprep.subr.mxu0 0.0
        %2326 = vmatpush2.xpose.msra.mxu0 0.0
        %2327 = vmatprep.mubr.f32.mxu0 0.0
        %2328 = vmatmul.mubr.f32.gmra.mxu0 %v2252
        %v2329 = vpop.f32.mrf.mxu0
        %v2330 = vadd.f32 0.0, %v2329
        %v2331 = vpop.f32.mrf.mxu0
        %2332 = vmatprep.mubr.f32.mxu0 0.0
        %2333 = vmatmul.mubr.f32.gmra.mxu0 %v2255
        %v2334 = vpop.f32.mrf.mxu0
        %v2335 = vadd.f32 0.0, %v2334
        %v2336 = vpop.f32.mrf.mxu0
        %2337 = vdwg.mxu0
        %v2338 = vmul.f32 %v2330, 0.25
        %v2339 = vmul.f32 %v2335, 0.25
        %v2340 = vadd.f32 %v2338, %v818
        %v2341 = vadd.f32 %v2339, %v819
        %v2342 = vsel %vm1233, %v2340, -inf
        %2343 = vmax.xlane.f32.xlu0 %v2342
        %v2344 = vpop.xlane.xlu0 %2343
        %v2345 = vsel %vm1237, %v2341, -inf
        %2346 = vmax.xlane.f32.xlu0 %v2345
        %v2347 = vpop.xlane.xlu0 %2346
        %v2348 = vsub.f32 %v2340, %v2344
        %v2349 = vsub.f32 %v2341, %v2347
        %v2350 = vmul.f32 %v2348, 1.442695
        %v2351 = vpow.pop %v2350
        %v2352 = vmul.f32 %v2349, 1.442695
        %v2353 = vpow.pop %v2352
        %v2354 = vsel %vm1233, %v2351, 0.0
        %2355 = vadd.xlane.f32.xlu0 %v2354
        %v2356 = vpop.xlane.xlu0 %2355
        %v2357 = vsel %vm1237, %v2353, 0.0
        %2358 = vadd.xlane.f32.xlu0 %v2357
        %v2359 = vpop.xlane.xlu0 %2358
        %v2360 = vrcp.pop %v2356
        %v2361 = vrcp.pop %v2359
        %v2362 = vmul.f32 %v2351, %v2360
        %v2363 = vmul.f32 %v2353, %v2361
        %v2364 = vsel %vm1258, %v2063, 0.0
        %v2365 = vsel %vm1258, %v2068, 0.0
        %v2366 = vsel %vm1258, %v2239, 0.0
        %v2367 = vsel %vm1258, %v2244, 0.0
        %v2369 = vsel %vm823, %v2364, 0
        %v2372 = vsel %vm823, %v2365, 0
        %2374 = vmatprep.subr.mxu0 0.0
        %2375 = vmatpush1.xpose.msra.mxu0 0.0
        %2376 = vmatprep.subr.mxu0 0.0
        %2377 = vmatpush1.xpose.msra.mxu0 0.0
        %2378 = vmatprep.subr.mxu0 0.0
        %2379 = vmatpush1.xpose.msra.mxu0 0.0
        %2380 = vmatprep.subr.mxu0 0.0
        %2381 = vmatpush1.xpose.msra.mxu0 0.0
        %2382 = vmatprep.subr.mxu0 0.0
        %2383 = vmatpush1.xpose.msra.mxu0 0.0
        %2384 = vmatprep.subr.mxu0 0.0
        %2385 = vmatpush1.xpose.msra.mxu0 0.0
        %2386 = vmatprep.subr.mxu0 0.0
        %2387 = vmatpush1.xpose.msra.mxu0 0.0
        %2388 = vmatprep.subr.mxu0 0.0
        %2389 = vmatpush1.xpose.msra.mxu0 0.0
        %2390 = vmatprep.subr.mxu0 0.0
        %2391 = vmatpush1.xpose.msra.mxu0 0.0
        %2392 = vmatprep.subr.mxu0 0.0
        %2393 = vmatpush1.xpose.msra.mxu0 0.0
        %2394 = vmatprep.subr.mxu0 0.0
        %2395 = vmatpush1.xpose.msra.mxu0 0.0
        %2396 = vmatprep.subr.mxu0 0.0
        %2397 = vmatpush1.xpose.msra.mxu0 0.0
        %2398 = vmatprep.subr.mxu0 0.0
        %2399 = vmatpush1.xpose.msra.mxu0 0.0
        %2400 = vmatprep.subr.mxu0 0.0
        %2401 = vmatpush1.xpose.msra.mxu0 0.0
        %2402 = vmatprep.subr.mxu0 0.0
        %2403 = vmatpush1.xpose.msra.mxu0 %v2261
        %2404 = vmatprep.subr.mxu0 0.0
        %2405 = vmatpush1.xpose.msra.mxu0 %v2258
        %2406 = vmatprep.subr.mxu0 0.0
        %2407 = vmatpush2.xpose.msra.mxu0 0.0
        %2408 = vmatprep.subr.mxu0 0.0
        %2409 = vmatpush2.xpose.msra.mxu0 0.0
        %2410 = vmatprep.subr.mxu0 0.0
        %2411 = vmatpush2.xpose.msra.mxu0 0.0
        %2412 = vmatprep.subr.mxu0 0.0
        %2413 = vmatpush2.xpose.msra.mxu0 0.0
        %2414 = vmatprep.subr.mxu0 0.0
        %2415 = vmatpush2.xpose.msra.mxu0 0.0
        %2416 = vmatprep.subr.mxu0 0.0
        %2417 = vmatpush2.xpose.msra.mxu0 0.0
        %2418 = vmatprep.subr.mxu0 0.0
        %2419 = vmatpush2.xpose.msra.mxu0 0.0
        %2420 = vmatprep.subr.mxu0 0.0
        %2421 = vmatpush2.xpose.msra.mxu0 0.0
        %2422 = vmatprep.subr.mxu0 0.0
        %2423 = vmatpush2.xpose.msra.mxu0 0.0
        %2424 = vmatprep.subr.mxu0 0.0
        %2425 = vmatpush2.xpose.msra.mxu0 0.0
        %2426 = vmatprep.subr.mxu0 0.0
        %2427 = vmatpush2.xpose.msra.mxu0 0.0
        %2428 = vmatprep.subr.mxu0 0.0
        %2429 = vmatpush2.xpose.msra.mxu0 0.0
        %2430 = vmatprep.subr.mxu0 0.0
        %2431 = vmatpush2.xpose.msra.mxu0 0.0
        %2432 = vmatprep.subr.mxu0 0.0
        %2433 = vmatpush2.xpose.msra.mxu0 0.0
        %2434 = vmatprep.subr.mxu0 0.0
        %2435 = vmatpush2.xpose.msra.mxu0 0.0
        %2436 = vmatprep.subr.mxu0 0.0
        %2437 = vmatpush2.xpose.msra.mxu0 0.0
        %2438 = vmatprep.mubr.f32.mxu0 0.0
        %2439 = vmatmul.mubr.f32.gmra.mxu0 %v2369
        %v2440 = vpop.f32.mrf.mxu0
        %v2441 = vadd.f32 0.0, %v2440
        %v2442 = vpop.f32.mrf.mxu0
        %2443 = vmatprep.mubr.f32.mxu0 0.0
        %2444 = vmatmul.mubr.f32.gmra.mxu0 %v2372
        %v2445 = vpop.f32.mrf.mxu0
        %v2446 = vadd.f32 0.0, %v2445
        %v2447 = vpop.f32.mrf.mxu0
        %2448 = vdwg.mxu0
        %v2449 = vmul.f32 %v2441, 0.25
        %v2450 = vmul.f32 %v2446, 0.25
        %v2451 = vadd.f32 %v2449, %v818
        %v2452 = vadd.f32 %v2450, %v819
        %v2453 = vsel %vm1233, %v2451, -inf
        %2454 = vmax.xlane.f32.xlu0 %v2453
        %v2455 = vpop.xlane.xlu0 %2454
        %v2456 = vsel %vm1237, %v2452, -inf
        %2457 = vmax.xlane.f32.xlu0 %v2456
        %v2458 = vpop.xlane.xlu0 %2457
        %v2459 = vsub.f32 %v2451, %v2455
        %v2460 = vsub.f32 %v2452, %v2458
        %v2461 = vmul.f32 %v2459, 1.442695
        %v2462 = vpow.pop %v2461
        %v2463 = vmul.f32 %v2460, 1.442695
        %v2464 = vpow.pop %v2463
        %v2465 = vsel %vm1233, %v2462, 0.0
        %2466 = vadd.xlane.f32.xlu0 %v2465
        %v2467 = vpop.xlane.xlu0 %2466
        %v2468 = vsel %vm1237, %v2464, 0.0
        %2469 = vadd.xlane.f32.xlu0 %v2468
        %v2470 = vpop.xlane.xlu0 %2469
        %v2471 = vrcp.pop %v2467
        %v2472 = vrcp.pop %v2470
        %v2473 = vmul.f32 %v2462, %v2471
        %v2474 = vmul.f32 %v2464, %v2472
        %v2476 = vsel %vm1233, %v2473, 0
        %v2479 = vsel %vm1233, %v2474, 0
        %v2482 = vsel %vm1376, %v2367, 0
        %2484 = vmatprep.subr.mxu0 0.0
        %2485 = vmatpush1.msra.mxu0 0.0
        %2486 = vmatprep.subr.mxu0 0.0
        %2487 = vmatpush1.msra.mxu0 0.0
        %2488 = vmatprep.subr.mxu0 0.0
        %2489 = vmatpush1.msra.mxu0 0.0
        %2490 = vmatprep.subr.mxu0 0.0
        %2491 = vmatpush1.msra.mxu0 0.0
        %2492 = vmatprep.subr.mxu0 0.0
        %2493 = vmatpush1.msra.mxu0 0.0
        %2494 = vmatprep.subr.mxu0 0.0
        %2495 = vmatpush1.msra.mxu0 0.0
        %2496 = vmatprep.subr.mxu0 0.0
        %2497 = vmatpush1.msra.mxu0 0.0
        %2498 = vmatprep.subr.mxu0 0.0
        %2499 = vmatpush1.msra.mxu0 0.0
        %2500 = vmatprep.subr.mxu0 0.0
        %2501 = vmatpush1.msra.mxu0 0.0
        %2502 = vmatprep.subr.mxu0 0.0
        %2503 = vmatpush1.msra.mxu0 0.0
        %2504 = vmatprep.subr.mxu0 0.0
        %2505 = vmatpush1.msra.mxu0 0.0
        %2506 = vmatprep.subr.mxu0 0.0
        %2507 = vmatpush1.msra.mxu0 0.0
        %2508 = vmatprep.subr.mxu0 0.0
        %2509 = vmatpush1.msra.mxu0 0.0
        %2510 = vmatprep.subr.mxu0 0.0
        %2511 = vmatpush1.msra.mxu0 0.0
        %2512 = vmatprep.subr.mxu0 0.0
        %2513 = vmatpush1.msra.mxu0 %v2482
        %2514 = vmatprep.subr.mxu0 0.0
        %2515 = vmatpush1.msra.mxu0 %v2366
        %2516 = vmatprep.subr.mxu0 0.0
        %2517 = vmatpush2.msra.mxu0 0.0
        %2518 = vmatprep.subr.mxu0 0.0
        %2519 = vmatpush2.msra.mxu0 0.0
        %2520 = vmatprep.subr.mxu0 0.0
        %2521 = vmatpush2.msra.mxu0 0.0
        %2522 = vmatprep.subr.mxu0 0.0
        %2523 = vmatpush2.msra.mxu0 0.0
        %2524 = vmatprep.subr.mxu0 0.0
        %2525 = vmatpush2.msra.mxu0 0.0
        %2526 = vmatprep.subr.mxu0 0.0
        %2527 = vmatpush2.msra.mxu0 0.0
        %2528 = vmatprep.subr.mxu0 0.0
        %2529 = vmatpush2.msra.mxu0 0.0
        %2530 = vmatprep.subr.mxu0 0.0
        %2531 = vmatpush2.msra.mxu0 0.0
        %2532 = vmatprep.subr.mxu0 0.0
        %2533 = vmatpush2.msra.mxu0 0.0
        %2534 = vmatprep.subr.mxu0 0.0
        %2535 = vmatpush2.msra.mxu0 0.0
        %2536 = vmatprep.subr.mxu0 0.0
        %2537 = vmatpush2.msra.mxu0 0.0
        %2538 = vmatprep.subr.mxu0 0.0
        %2539 = vmatpush2.msra.mxu0 0.0
        %2540 = vmatprep.subr.mxu0 0.0
        %2541 = vmatpush2.msra.mxu0 0.0
        %2542 = vmatprep.subr.mxu0 0.0
        %2543 = vmatpush2.msra.mxu0 0.0
        %2544 = vmatprep.subr.mxu0 0.0
        %2545 = vmatpush2.msra.mxu0 0.0
        %2546 = vmatprep.subr.mxu0 0.0
        %2547 = vmatpush2.msra.mxu0 0.0
        %2548 = vmatprep.mubr.f32.mxu0 0.0
        %2549 = vmatmul.mubr.f32.gmra.mxu0 %v2476
        %v2550 = vpop.f32.mrf.mxu0
        %v2551 = vadd.f32 0.0, %v2550
        %v2552 = vpop.f32.mrf.mxu0
        %2553 = vmatprep.mubr.f32.mxu0 0.0
        %2554 = vmatmul.mubr.f32.gmra.mxu0 %v2479
        %v2555 = vpop.f32.mrf.mxu0
        %v2556 = vadd.f32 0.0, %v2555
        %v2557 = vpop.f32.mrf.mxu0
        %2558 = vdwg.mxu0
        %v2560 = vsel %vm1233, %v2362, 0
        %v2563 = vsel %vm1233, %v2363, 0
        %v2566 = vsel %vm1376, %v2250, 0
        %2568 = vmatprep.subr.mxu0 0.0
        %2569 = vmatpush1.msra.mxu0 0.0
        %2570 = vmatprep.subr.mxu0 0.0
        %2571 = vmatpush1.msra.mxu0 0.0
        %2572 = vmatprep.subr.mxu0 0.0
        %2573 = vmatpush1.msra.mxu0 0.0
        %2574 = vmatprep.subr.mxu0 0.0
        %2575 = vmatpush1.msra.mxu0 0.0
        %2576 = vmatprep.subr.mxu0 0.0
        %2577 = vmatpush1.msra.mxu0 0.0
        %2578 = vmatprep.subr.mxu0 0.0
        %2579 = vmatpush1.msra.mxu0 0.0
        %2580 = vmatprep.subr.mxu0 0.0
        %2581 = vmatpush1.msra.mxu0 0.0
        %2582 = vmatprep.subr.mxu0 0.0
        %2583 = vmatpush1.msra.mxu0 0.0
        %2584 = vmatprep.subr.mxu0 0.0
        %2585 = vmatpush1.msra.mxu0 0.0
        %2586 = vmatprep.subr.mxu0 0.0
        %2587 = vmatpush1.msra.mxu0 0.0
        %2588 = vmatprep.subr.mxu0 0.0
        %2589 = vmatpush1.msra.mxu0 0.0
        %2590 = vmatprep.subr.mxu0 0.0
        %2591 = vmatpush1.msra.mxu0 0.0
        %2592 = vmatprep.subr.mxu0 0.0
        %2593 = vmatpush1.msra.mxu0 0.0
        %2594 = vmatprep.subr.mxu0 0.0
        %2595 = vmatpush1.msra.mxu0 0.0
        %2596 = vmatprep.subr.mxu0 0.0
        %2597 = vmatpush1.msra.mxu0 %v2566
        %2598 = vmatprep.subr.mxu0 0.0
        %2599 = vmatpush1.msra.mxu0 %v2249
        %2600 = vmatprep.subr.mxu0 0.0
        %2601 = vmatpush2.msra.mxu0 0.0
        %2602 = vmatprep.subr.mxu0 0.0
        %2603 = vmatpush2.msra.mxu0 0.0
        %2604 = vmatprep.subr.mxu0 0.0
        %2605 = vmatpush2.msra.mxu0 0.0
        %2606 = vmatprep.subr.mxu0 0.0
        %2607 = vmatpush2.msra.mxu0 0.0
        %2608 = vmatprep.subr.mxu0 0.0
        %2609 = vmatpush2.msra.mxu0 0.0
        %2610 = vmatprep.subr.mxu0 0.0
        %2611 = vmatpush2.msra.mxu0 0.0
        %2612 = vmatprep.subr.mxu0 0.0
        %2613 = vmatpush2.msra.mxu0 0.0
        %2614 = vmatprep.subr.mxu0 0.0
        %2615 = vmatpush2.msra.mxu0 0.0
        %2616 = vmatprep.subr.mxu0 0.0
        %2617 = vmatpush2.msra.mxu0 0.0
        %2618 = vmatprep.subr.mxu0 0.0
        %2619 = vmatpush2.msra.mxu0 0.0
        %2620 = vmatprep.subr.mxu0 0.0
        %2621 = vmatpush2.msra.mxu0 0.0
        %2622 = vmatprep.subr.mxu0 0.0
        %2623 = vmatpush2.msra.mxu0 0.0
        %2624 = vmatprep.subr.mxu0 0.0
        %2625 = vmatpush2.msra.mxu0 0.0
        %2626 = vmatprep.subr.mxu0 0.0
        %2627 = vmatpush2.msra.mxu0 0.0
        %2628 = vmatprep.subr.mxu0 0.0
        %2629 = vmatpush2.msra.mxu0 0.0
        %2630 = vmatprep.subr.mxu0 0.0
        %2631 = vmatpush2.msra.mxu0 0.0
        %2632 = vmatprep.mubr.f32.mxu0 0.0
        %2633 = vmatmul.mubr.f32.gmra.mxu0 %v2560
        %v2634 = vpop.f32.mrf.mxu0
        %v2635 = vadd.f32 %v2551, %v2634
        %v2636 = vpop.f32.mrf.mxu0
        %2637 = vmatprep.mubr.f32.mxu0 0.0
        %2638 = vmatmul.mubr.f32.gmra.mxu0 %v2563
        %v2639 = vpop.f32.mrf.mxu0
        %v2640 = vadd.f32 %v2556, %v2639
        %v2641 = vpop.f32.mrf.mxu0
        %2642 = vdwg.mxu0
        %s2643 = scalar_lea.vmem %s8, 32
        %v2644 = vld [vmem:[%s2643] sm:$0xff]
        %v2645 = vld [vmem:[%s2643 + $0x8] sm:$0xff]
        %v2646 = vld [vmem:[%s2643 + $0x10] sm:$0xff]
        %v2647 = vld [vmem:[%s2643 + $0x18] sm:$0xff]
        %v2649 = vsel %vm823, %v2635, 0
        %v2652 = vsel %vm823, %v2640, 0
        %2654 = vmatprep.subr.mxu0 0.0
        %2655 = vmatpush1.msra.mxu0 0.0
        %2656 = vmatprep.subr.mxu0 0.0
        %2657 = vmatpush1.msra.mxu0 0.0
        %2658 = vmatprep.subr.mxu0 0.0
        %2659 = vmatpush1.msra.mxu0 0.0
        %2660 = vmatprep.subr.mxu0 0.0
        %2661 = vmatpush1.msra.mxu0 0.0
        %2662 = vmatprep.subr.mxu0 0.0
        %2663 = vmatpush1.msra.mxu0 0.0
        %2664 = vmatprep.subr.mxu0 0.0
        %2665 = vmatpush1.msra.mxu0 0.0
        %2666 = vmatprep.subr.mxu0 0.0
        %2667 = vmatpush1.msra.mxu0 0.0
        %2668 = vmatprep.subr.mxu0 0.0
        %2669 = vmatpush1.msra.mxu0 0.0
        %2670 = vmatprep.subr.mxu0 0.0
        %2671 = vmatpush1.msra.mxu0 0.0
        %2672 = vmatprep.subr.mxu0 0.0
        %2673 = vmatpush1.msra.mxu0 0.0
        %2674 = vmatprep.subr.mxu0 0.0
        %2675 = vmatpush1.msra.mxu0 0.0
        %2676 = vmatprep.subr.mxu0 0.0
        %2677 = vmatpush1.msra.mxu0 0.0
        %2678 = vmatprep.subr.mxu0 0.0
        %2679 = vmatpush1.msra.mxu0 %v2647
        %2680 = vmatprep.subr.mxu0 0.0
        %2681 = vmatpush1.msra.mxu0 %v2646
        %2682 = vmatprep.subr.mxu0 0.0
        %2683 = vmatpush1.msra.mxu0 %v2645
        %2684 = vmatprep.subr.mxu0 0.0
        %2685 = vmatpush1.msra.mxu0 %v2644
        %2686 = vmatprep.subr.mxu0 0.0
        %2687 = vmatpush2.msra.mxu0 0.0
        %2688 = vmatprep.subr.mxu0 0.0
        %2689 = vmatpush2.msra.mxu0 0.0
        %2690 = vmatprep.subr.mxu0 0.0
        %2691 = vmatpush2.msra.mxu0 0.0
        %2692 = vmatprep.subr.mxu0 0.0
        %2693 = vmatpush2.msra.mxu0 0.0
        %2694 = vmatprep.subr.mxu0 0.0
        %2695 = vmatpush2.msra.mxu0 0.0
        %2696 = vmatprep.subr.mxu0 0.0
        %2697 = vmatpush2.msra.mxu0 0.0
        %2698 = vmatprep.subr.mxu0 0.0
        %2699 = vmatpush2.msra.mxu0 0.0
        %2700 = vmatprep.subr.mxu0 0.0
        %2701 = vmatpush2.msra.mxu0 0.0
        %2702 = vmatprep.subr.mxu0 0.0
        %2703 = vmatpush2.msra.mxu0 0.0
        %2704 = vmatprep.subr.mxu0 0.0
        %2705 = vmatpush2.msra.mxu0 0.0
        %2706 = vmatprep.subr.mxu0 0.0
        %2707 = vmatpush2.msra.mxu0 0.0
        %2708 = vmatprep.subr.mxu0 0.0
        %2709 = vmatpush2.msra.mxu0 0.0
        %2710 = vmatprep.subr.mxu0 0.0
        %2711 = vmatpush2.msra.mxu0 0.0
        %2712 = vmatprep.subr.mxu0 0.0
        %2713 = vmatpush2.msra.mxu0 0.0
        %2714 = vmatprep.subr.mxu0 0.0
        %2715 = vmatpush2.msra.mxu0 0.0
        %2716 = vmatprep.subr.mxu0 0.0
        %2717 = vmatpush2.msra.mxu0 0.0
        %2718 = vmatprep.mubr.f32.mxu0 0.0
        %2719 = vmatmul.mubr.f32.gmra.mxu0 %v2649
        %v2720 = vpop.f32.mrf.mxu0
        %v2721 = vadd.f32 0.0, %v2720
        %v2722 = vpop.f32.mrf.mxu0
        %2723 = vmatprep.mubr.f32.mxu0 0.0
        %2724 = vmatmul.mubr.f32.gmra.mxu0 %v2652
        %v2725 = vpop.f32.mrf.mxu0
        %v2726 = vadd.f32 0.0, %v2725
        %v2727 = vpop.f32.mrf.mxu0
        %2728 = vdwg.mxu0
        %v2729 = vadd.f32 %v1929, %v2721
        %v2730 = vadd.f32 %v1930, %v2726
        %s2731 = scalar_lea.vmem %s12, 8
        %v2732 = vld [vmem:[%s2731] sm:$0x1]
        %v2734 = vlaneseq
        %v2735 = vshrl.u32 %v2734, 7
        %v2736 = vsub.s32 0, %v2735
        %v2737 = vrot.slane %v2732, %v2736
        %v2739 = vadd.f32 %v2729, %v2737
        %v2740 = vadd.f32 %v2730, %v2737
        %s2741 = scalar_lea.vmem %s12, 9
        %v2742 = vld [vmem:[%s2741] sm:$0x1]
        %s2743 = scalar_lea.vmem %s12, 10
        %v2744 = vld [vmem:[%s2743] sm:$0x1]
        %v2745 = vsel %vm823, %v2739, 0.0
        %2746 = vadd.xlane.f32.xlu0 %v2745
        %v2747 = vpop.xlane.xlu0 %2746
        %v2748 = vsel %vm827, %v2740, 0.0
        %2749 = vadd.xlane.f32.xlu0 %v2748
        %v2750 = vpop.xlane.xlu0 %2749
        %v2751 = vmul.f32 %v2747, %v831
        %v2752 = vmul.f32 %v2750, %v831
        %v2753 = vsub.f32 %v2739, %v2751
        %v2754 = vsub.f32 %v2740, %v2752
        %v2755 = vmul.f32 %v2753, %v2753
        %v2756 = vmul.f32 %v2754, %v2754
        %v2757 = vsel %vm823, %v2755, 0.0
        %2758 = vadd.xlane.f32.xlu0 %v2757
        %v2759 = vpop.xlane.xlu0 %2758
        %v2760 = vsel %vm827, %v2756, 0.0
        %2761 = vadd.xlane.f32.xlu0 %v2760
        %v2762 = vpop.xlane.xlu0 %2761
        %v2763 = vmul.f32 %v2759, %v831
        %v2764 = vmul.f32 %v2762, %v831
        %v2765 = vadd.f32 %v2763, 1e-06
        %v2766 = vadd.f32 %v2764, 1e-06
        %v2767 = vrsqrt.pop %v2765
        %v2768 = vrsqrt.pop %v2766
        %v2769 = vmul.f32 %v2753, %v2767
        %v2770 = vmul.f32 %v2754, %v2768
        %v2772 = vlaneseq
        %v2773 = vshrl.u32 %v2772, 7
        %v2774 = vsub.s32 0, %v2773
        %v2775 = vrot.slane %v2742, %v2774
        %v2777 = vmul.f32 %v2769, %v2775
        %v2778 = vmul.f32 %v2770, %v2775
        %v2780 = vlaneseq
        %v2781 = vshrl.u32 %v2780, 7
        %v2782 = vsub.s32 0, %v2781
        %v2783 = vrot.slane %v2744, %v2782
        %v2785 = vadd.f32 %v2777, %v2783
        %v2786 = vadd.f32 %v2778, %v2783
        %s2787 = scalar_lea.vmem %s9, 32
        %v2788 = vld [vmem:[%s2787] sm:$0xff]
        %v2789 = vld [vmem:[%s2787 + $0x8] sm:$0xff]
        %v2790 = vld [vmem:[%s2787 + $0x10] sm:$0xff]
        %v2791 = vld [vmem:[%s2787 + $0x18] sm:$0xff]
        %s2792 = scalar_lea.vmem %s10, 1
        %v2793 = vld [vmem:[%s2792] sm:$0x1]
        %v2795 = vlaneseq
        %v2796 = vshrl.u32 %v2795, 7
        %v2797 = vsub.s32 0, %v2796
        %v2798 = vrot.slane %v2793, %v2797
        %v2801 = vsel %vm823, %v2785, 0
        %v2804 = vsel %vm823, %v2786, 0
        %2806 = vmatprep.subr.mxu0 0.0
        %2807 = vmatpush1.msra.mxu0 0.0
        %2808 = vmatprep.subr.mxu0 0.0
        %2809 = vmatpush1.msra.mxu0 0.0
        %2810 = vmatprep.subr.mxu0 0.0
        %2811 = vmatpush1.msra.mxu0 0.0
        %2812 = vmatprep.subr.mxu0 0.0
        %2813 = vmatpush1.msra.mxu0 0.0
        %2814 = vmatprep.subr.mxu0 0.0
        %2815 = vmatpush1.msra.mxu0 0.0
        %2816 = vmatprep.subr.mxu0 0.0
        %2817 = vmatpush1.msra.mxu0 0.0
        %2818 = vmatprep.subr.mxu0 0.0
        %2819 = vmatpush1.msra.mxu0 0.0
        %2820 = vmatprep.subr.mxu0 0.0
        %2821 = vmatpush1.msra.mxu0 0.0
        %2822 = vmatprep.subr.mxu0 0.0
        %2823 = vmatpush1.msra.mxu0 0.0
        %2824 = vmatprep.subr.mxu0 0.0
        %2825 = vmatpush1.msra.mxu0 0.0
        %2826 = vmatprep.subr.mxu0 0.0
        %2827 = vmatpush1.msra.mxu0 0.0
        %2828 = vmatprep.subr.mxu0 0.0
        %2829 = vmatpush1.msra.mxu0 0.0
        %2830 = vmatprep.subr.mxu0 0.0
        %2831 = vmatpush1.msra.mxu0 %v2791
        %2832 = vmatprep.subr.mxu0 0.0
        %2833 = vmatpush1.msra.mxu0 %v2790
        %2834 = vmatprep.subr.mxu0 0.0
        %2835 = vmatpush1.msra.mxu0 %v2789
        %2836 = vmatprep.subr.mxu0 0.0
        %2837 = vmatpush1.msra.mxu0 %v2788
        %2838 = vmatprep.subr.mxu0 0.0
        %2839 = vmatpush2.msra.mxu0 0.0
        %2840 = vmatprep.subr.mxu0 0.0
        %2841 = vmatpush2.msra.mxu0 0.0
        %2842 = vmatprep.subr.mxu0 0.0
        %2843 = vmatpush2.msra.mxu0 0.0
        %2844 = vmatprep.subr.mxu0 0.0
        %2845 = vmatpush2.msra.mxu0 0.0
        %2846 = vmatprep.subr.mxu0 0.0
        %2847 = vmatpush2.msra.mxu0 0.0
        %2848 = vmatprep.subr.mxu0 0.0
        %2849 = vmatpush2.msra.mxu0 0.0
        %2850 = vmatprep.subr.mxu0 0.0
        %2851 = vmatpush2.msra.mxu0 0.0
        %2852 = vmatprep.subr.mxu0 0.0
        %2853 = vmatpush2.msra.mxu0 0.0
        %2854 = vmatprep.subr.mxu0 0.0
        %2855 = vmatpush2.msra.mxu0 0.0
        %2856 = vmatprep.subr.mxu0 0.0
        %2857 = vmatpush2.msra.mxu0 0.0
        %2858 = vmatprep.subr.mxu0 0.0
        %2859 = vmatpush2.msra.mxu0 0.0
        %2860 = vmatprep.subr.mxu0 0.0
        %2861 = vmatpush2.msra.mxu0 0.0
        %2862 = vmatprep.subr.mxu0 0.0
        %2863 = vmatpush2.msra.mxu0 0.0
        %2864 = vmatprep.subr.mxu0 0.0
        %2865 = vmatpush2.msra.mxu0 0.0
        %2866 = vmatprep.subr.mxu0 0.0
        %2867 = vmatpush2.msra.mxu0 0.0
        %2868 = vmatprep.subr.mxu0 0.0
        %2869 = vmatpush2.msra.mxu0 0.0
        %2870 = vmatprep.mubr.f32.mxu0 0.0
        %2871 = vmatmul.mubr.f32.gmra.mxu0 %v2801
        %v2872 = vpop.f32.mrf.mxu0
        %v2873 = vadd.f32 %v2798, %v2872
        %v2874 = vpop.f32.mrf.mxu0
        %2875 = vmatprep.mubr.f32.mxu0 0.0
        %2876 = vmatmul.mubr.f32.gmra.mxu0 %v2804
        %v2877 = vpop.f32.mrf.mxu0
        %v2878 = vadd.f32 %v2798, %v2877
        %v2879 = vpop.f32.mrf.mxu0
        %2880 = vdwg.mxu0
        %v2881 = vmul.f32 %v2873, 0.5
        %v2882 = vmul.f32 %v2878, 0.5
        %v2883 = vmul.f32 %v2873, 0.70710677
        %v2884 = vmul.f32 %v2878, 0.70710677
        %v2885 = vand.u32 2147483647, %v2883
        %v2886 = vand.u32 2147483647, %v2884
        %v2887 = vmul.f32 %v2885, 0.3275911
        %v2888 = vmul.f32 %v2886, 0.3275911
        %v2889 = vadd.f32 %v2887, 1.0
        %v2890 = vadd.f32 %v2888, 1.0
        %v2891 = vrcp.pop %v2889
        %v2892 = vmul.f32 1.0, %v2891
        %v2893 = vrcp.pop %v2890
        %v2894 = vmul.f32 1.0, %v2893
        %v2895 = vmul.f32 %v2892, 1.0614054
        %v2896 = vmul.f32 %v2894, 1.0614054
        %v2897 = vadd.f32 %v2895, -1.4531521
        %v2898 = vadd.f32 %v2896, -1.4531521
        %v2899 = vmul.f32 %v2897, %v2892
        %v2900 = vmul.f32 %v2898, %v2894
        %v2901 = vadd.f32 %v2899, 1.4214138
        %v2902 = vadd.f32 %v2900, 1.4214138
        %v2903 = vmul.f32 %v2901, %v2892
        %v2904 = vmul.f32 %v2902, %v2894
        %v2905 = vadd.f32 %v2903, -0.28449672
        %v2906 = vadd.f32 %v2904, -0.28449672
        %v2907 = vmul.f32 %v2905, %v2892
        %v2908 = vmul.f32 %v2906, %v2894
        %v2909 = vadd.f32 %v2907, 0.2548296
        %v2910 = vadd.f32 %v2908, 0.2548296
        %v2911 = vmul.f32 %v2909, %v2892
        %v2912 = vmul.f32 %v2910, %v2894
        %v2913 = vsub.f32 0.0, %v2885
        %v2914 = vsub.f32 0.0, %v2886
        %v2915 = vmul.f32 %v2913, %v2885
        %v2916 = vmul.f32 %v2914, %v2886
        %v2917 = vmul.f32 %v2915, 1.442695
        %v2918 = vpow.pop %v2917
        %v2919 = vmul.f32 %v2916, 1.442695
        %v2920 = vpow.pop %v2919
        %v2921 = vmul.f32 %v2911, %v2918
        %v2922 = vmul.f32 %v2912, %v2920
        %v2923 = vsub.f32 1.0, %v2921
        %v2924 = vsub.f32 1.0, %v2922
        %vm2925 = vcmp.ge.f32.partialorder %v2883, 0.0
        %vm2926 = vcmp.ge.f32.partialorder %v2884, 0.0
        %v2927 = vsub.f32 0.0, %v2923
        %v2928 = vsub.f32 0.0, %v2924
        %v2929 = vsel %vm2925, %v2923, %v2927
        %v2930 = vsel %vm2926, %v2924, %v2928
        %v2931 = vadd.f32 %v2929, 1.0
        %v2932 = vadd.f32 %v2930, 1.0
        %v2933 = vmul.f32 %v2881, %v2931
        %v2934 = vmul.f32 %v2882, %v2932
        %s2935 = scalar_lea.vmem %s11, 128
        %v2936 = vld [vmem:[%s2935] sm:$0xff]
        %v2937 = vld [vmem:[%s2935 + $0x8] sm:$0xff]
        %v2938 = vld [vmem:[%s2935 + $0x10] sm:$0xff]
        %v2939 = vld [vmem:[%s2935 + $0x18] sm:$0xff]
        %v2940 = vld [vmem:[%s2935 + $0x20] sm:$0xff]
        %v2941 = vld [vmem:[%s2935 + $0x28] sm:$0xff]
        %v2942 = vld [vmem:[%s2935 + $0x30] sm:$0xff]
        %v2943 = vld [vmem:[%s2935 + $0x38] sm:$0xff]
        %v2944 = vld [vmem:[%s2935 + $0x40] sm:$0xff]
        %v2945 = vld [vmem:[%s2935 + $0x48] sm:$0xff]
        %v2946 = vld [vmem:[%s2935 + $0x50] sm:$0xff]
        %v2947 = vld [vmem:[%s2935 + $0x58] sm:$0xff]
        %v2948 = vld [vmem:[%s2935 + $0x60] sm:$0xff]
        %v2949 = vld [vmem:[%s2935 + $0x68] sm:$0xff]
        %v2950 = vld [vmem:[%s2935 + $0x70] sm:$0xff]
        %v2951 = vld [vmem:[%s2935 + $0x78] sm:$0xff]
        %2952 = vmatprep.subr.mxu0 0.0
        %2953 = vmatpush1.msra.mxu0 %v2951
        %2954 = vmatprep.subr.mxu0 0.0
        %2955 = vmatpush1.msra.mxu0 %v2950
        %2956 = vmatprep.subr.mxu0 0.0
        %2957 = vmatpush1.msra.mxu0 %v2949
        %2958 = vmatprep.subr.mxu0 0.0
        %2959 = vmatpush1.msra.mxu0 %v2948
        %2960 = vmatprep.subr.mxu0 0.0
        %2961 = vmatpush1.msra.mxu0 %v2947
        %2962 = vmatprep.subr.mxu0 0.0
        %2963 = vmatpush1.msra.mxu0 %v2946
        %2964 = vmatprep.subr.mxu0 0.0
        %2965 = vmatpush1.msra.mxu0 %v2945
        %2966 = vmatprep.subr.mxu0 0.0
        %2967 = vmatpush1.msra.mxu0 %v2944
        %2968 = vmatprep.subr.mxu0 0.0
        %2969 = vmatpush1.msra.mxu0 %v2943
        %2970 = vmatprep.subr.mxu0 0.0
        %2971 = vmatpush1.msra.mxu0 %v2942
        %2972 = vmatprep.subr.mxu0 0.0
        %2973 = vmatpush1.msra.mxu0 %v2941
        %2974 = vmatprep.subr.mxu0 0.0
        %2975 = vmatpush1.msra.mxu0 %v2940
        %2976 = vmatprep.subr.mxu0 0.0
        %2977 = vmatpush1.msra.mxu0 %v2939
        %2978 = vmatprep.subr.mxu0 0.0
        %2979 = vmatpush1.msra.mxu0 %v2938
        %2980 = vmatprep.subr.mxu0 0.0
        %2981 = vmatpush1.msra.mxu0 %v2937
        %2982 = vmatprep.subr.mxu0 0.0
        %2983 = vmatpush1.msra.mxu0 %v2936
        %2984 = vmatprep.subr.mxu0 0.0
        %2985 = vmatpush2.msra.mxu0 0.0
        %2986 = vmatprep.subr.mxu0 0.0
        %2987 = vmatpush2.msra.mxu0 0.0
        %2988 = vmatprep.subr.mxu0 0.0
        %2989 = vmatpush2.msra.mxu0 0.0
        %2990 = vmatprep.subr.mxu0 0.0
        %2991 = vmatpush2.msra.mxu0 0.0
        %2992 = vmatprep.subr.mxu0 0.0
        %2993 = vmatpush2.msra.mxu0 0.0
        %2994 = vmatprep.subr.mxu0 0.0
        %2995 = vmatpush2.msra.mxu0 0.0
        %2996 = vmatprep.subr.mxu0 0.0
        %2997 = vmatpush2.msra.mxu0 0.0
        %2998 = vmatprep.subr.mxu0 0.0
        %2999 = vmatpush2.msra.mxu0 0.0
        %3000 = vmatprep.subr.mxu0 0.0
        %3001 = vmatpush2.msra.mxu0 0.0
        %3002 = vmatprep.subr.mxu0 0.0
        %3003 = vmatpush2.msra.mxu0 0.0
        %3004 = vmatprep.subr.mxu0 0.0
        %3005 = vmatpush2.msra.mxu0 0.0
        %3006 = vmatprep.subr.mxu0 0.0
        %3007 = vmatpush2.msra.mxu0 0.0
        %3008 = vmatprep.subr.mxu0 0.0
        %3009 = vmatpush2.msra.mxu0 0.0
        %3010 = vmatprep.subr.mxu0 0.0
        %3011 = vmatpush2.msra.mxu0 0.0
        %3012 = vmatprep.subr.mxu0 0.0
        %3013 = vmatpush2.msra.mxu0 0.0
        %3014 = vmatprep.subr.mxu0 0.0
        %3015 = vmatpush2.msra.mxu0 0.0
        %3016 = vmatprep.mubr.f32.mxu0 0.0
        %3017 = vmatmul.mubr.f32.gmra.mxu0 %v2933
        %v3018 = vpop.f32.mrf.mxu0
        %v3019 = vadd.f32 0.0, %v3018
        %v3020 = vpop.f32.mrf.mxu0
        %3021 = vmatprep.mubr.f32.mxu0 0.0
        %3022 = vmatmul.mubr.f32.gmra.mxu0 %v2934
        %v3023 = vpop.f32.mrf.mxu0
        %v3024 = vadd.f32 0.0, %v3023
        %v3025 = vpop.f32.mrf.mxu0
        %3026 = vdwg.mxu0
        %v3027 = vadd.f32 %v2739, %v3019
        %v3028 = vadd.f32 %v2740, %v3024
        %s3029 = scalar_lea.vmem %s12, 11
        %v3030 = vld [vmem:[%s3029] sm:$0x1]
        %v3032 = vlaneseq
        %v3033 = vshrl.u32 %v3032, 7
        %v3034 = vsub.s32 0, %v3033
        %v3035 = vrot.slane %v3030, %v3034
        %v3037 = vadd.f32 %v3027, %v3035
        %v3038 = vadd.f32 %v3028, %v3035
        %v3039 = vld [vmem:[%s2] sm:$0x7]
        %v3041 = vsel %vm1233, %v3039, 0
        %v3044 = vsel %vm1376, %v3038, 0
        %3046 = vmatprep.subr.mxu0 0.0
        %3047 = vmatpush1.msra.mxu0 0.0
        %3048 = vmatprep.subr.mxu0 0.0
        %3049 = vmatpush1.msra.mxu0 0.0
        %3050 = vmatprep.subr.mxu0 0.0
        %3051 = vmatpush1.msra.mxu0 0.0
        %3052 = vmatprep.subr.mxu0 0.0
        %3053 = vmatpush1.msra.mxu0 0.0
        %3054 = vmatprep.subr.mxu0 0.0
        %3055 = vmatpush1.msra.mxu0 0.0
        %3056 = vmatprep.subr.mxu0 0.0
        %3057 = vmatpush1.msra.mxu0 0.0
        %3058 = vmatprep.subr.mxu0 0.0
        %3059 = vmatpush1.msra.mxu0 0.0
        %3060 = vmatprep.subr.mxu0 0.0
        %3061 = vmatpush1.msra.mxu0 0.0
        %3062 = vmatprep.subr.mxu0 0.0
        %3063 = vmatpush1.msra.mxu0 0.0
        %3064 = vmatprep.subr.mxu0 0.0
        %3065 = vmatpush1.msra.mxu0 0.0
        %3066 = vmatprep.subr.mxu0 0.0
        %3067 = vmatpush1.msra.mxu0 0.0
        %3068 = vmatprep.subr.mxu0 0.0
        %3069 = vmatpush1.msra.mxu0 0.0
        %3070 = vmatprep.subr.mxu0 0.0
        %3071 = vmatpush1.msra.mxu0 0.0
        %3072 = vmatprep.subr.mxu0 0.0
        %3073 = vmatpush1.msra.mxu0 0.0
        %3074 = vmatprep.subr.mxu0 0.0
        %3075 = vmatpush1.msra.mxu0 %v3044
        %3076 = vmatprep.subr.mxu0 0.0
        %3077 = vmatpush1.msra.mxu0 %v3037
        %3078 = vmatprep.subr.mxu0 0.0
        %3079 = vmatpush2.msra.mxu0 0.0
        %3080 = vmatprep.subr.mxu0 0.0
        %3081 = vmatpush2.msra.mxu0 0.0
        %3082 = vmatprep.subr.mxu0 0.0
        %3083 = vmatpush2.msra.mxu0 0.0
        %3084 = vmatprep.subr.mxu0 0.0
        %3085 = vmatpush2.msra.mxu0 0.0
        %3086 = vmatprep.subr.mxu0 0.0
        %3087 = vmatpush2.msra.mxu0 0.0
        %3088 = vmatprep.subr.mxu0 0.0
        %3089 = vmatpush2.msra.mxu0 0.0
        %3090 = vmatprep.subr.mxu0 0.0
        %3091 = vmatpush2.msra.mxu0 0.0
        %3092 = vmatprep.subr.mxu0 0.0
        %3093 = vmatpush2.msra.mxu0 0.0
        %3094 = vmatprep.subr.mxu0 0.0
        %3095 = vmatpush2.msra.mxu0 0.0
        %3096 = vmatprep.subr.mxu0 0.0
        %3097 = vmatpush2.msra.mxu0 0.0
        %3098 = vmatprep.subr.mxu0 0.0
        %3099 = vmatpush2.msra.mxu0 0.0
        %3100 = vmatprep.subr.mxu0 0.0
        %3101 = vmatpush2.msra.mxu0 0.0
        %3102 = vmatprep.subr.mxu0 0.0
        %3103 = vmatpush2.msra.mxu0 0.0
        %3104 = vmatprep.subr.mxu0 0.0
        %3105 = vmatpush2.msra.mxu0 0.0
        %3106 = vmatprep.subr.mxu0 0.0
        %3107 = vmatpush2.msra.mxu0 0.0
        %3108 = vmatprep.subr.mxu0 0.0
        %3109 = vmatpush2.msra.mxu0 0.0
        %3110 = vmatprep.mubr.f32.mxu0 0.0
        %3111 = vmatmul.mubr.f32.gmra.mxu0 %v3041
        %v3112 = vpop.f32.mrf.mxu0
        %v3113 = vadd.f32 0.0, %v3112
        %v3114 = vpop.f32.mrf.mxu0
        %3115 = vdwg.mxu0
        %v3116 = vld [vmem:[%s13] sm:$0x1]
        %s3117 = scalar_lea.vmem %s13, 1
        %v3118 = vld [vmem:[%s3117] sm:$0x1]
        %vm3119 = vcmask 256000
        %v3120 = vsel %vm3119, %v3113, 0.0
        %3121 = vadd.xlane.f32.xlu0 %v3120
        %v3122 = vpop.xlane.xlu0 %3121
        %v3123 = vmul.f32 %v3122, %v831
        %v3124 = vsub.f32 %v3113, %v3123
        %v3125 = vmul.f32 %v3124, %v3124
        %v3126 = vsel %vm3119, %v3125, 0.0
        %3127 = vadd.xlane.f32.xlu0 %v3126
        %v3128 = vpop.xlane.xlu0 %3127
        %v3129 = vmul.f32 %v3128, %v831
        %v3130 = vadd.f32 %v3129, 1e-06
        %v3131 = vrsqrt.pop %v3130
        %v3132 = vmul.f32 %v3124, %v3131
        %v3134 = vlaneseq
        %v3135 = vshrl.u32 %v3134, 7
        %v3136 = vsub.s32 0, %v3135
        %v3137 = vrot.slane %v3116, %v3136
        %v3139 = vmul.f32 %v3132, %v3137
        %v3141 = vlaneseq
        %v3142 = vshrl.u32 %v3141, 7
        %v3143 = vsub.s32 0, %v3142
        %v3144 = vrot.slane %v3118, %v3143
        %v3146 = vadd.f32 %v3139, %v3144
        %v3147 = vld [vmem:[%s14] sm:$0xff]
        %v3148 = vld [vmem:[%s14 + $0x8] sm:$0xff]
        %v3149 = vld [vmem:[%s14 + $0x10] sm:$0xff]
        %v3150 = vld [vmem:[%s14 + $0x18] sm:$0xff]
        %v3151 = vld [vmem:[%s15] sm:$0x1]
        %v3153 = vsel %vm823, %v3146, 0
        %3155 = vmatprep.subr.mxu0 0.0
        %3156 = vmatpush1.msra.mxu0 0.0
        %3157 = vmatprep.subr.mxu0 0.0
        %3158 = vmatpush1.msra.mxu0 0.0
        %3159 = vmatprep.subr.mxu0 0.0
        %3160 = vmatpush1.msra.mxu0 0.0
        %3161 = vmatprep.subr.mxu0 0.0
        %3162 = vmatpush1.msra.mxu0 0.0
        %3163 = vmatprep.subr.mxu0 0.0
        %3164 = vmatpush1.msra.mxu0 0.0
        %3165 = vmatprep.subr.mxu0 0.0
        %3166 = vmatpush1.msra.mxu0 0.0
        %3167 = vmatprep.subr.mxu0 0.0
        %3168 = vmatpush1.msra.mxu0 0.0
        %3169 = vmatprep.subr.mxu0 0.0
        %3170 = vmatpush1.msra.mxu0 0.0
        %3171 = vmatprep.subr.mxu0 0.0
        %3172 = vmatpush1.msra.mxu0 0.0
        %3173 = vmatprep.subr.mxu0 0.0
        %3174 = vmatpush1.msra.mxu0 0.0
        %3175 = vmatprep.subr.mxu0 0.0
        %3176 = vmatpush1.msra.mxu0 0.0
        %3177 = vmatprep.subr.mxu0 0.0
        %3178 = vmatpush1.msra.mxu0 0.0
        %3179 = vmatprep.subr.mxu0 0.0
        %3180 = vmatpush1.msra.mxu0 %v3150
        %3181 = vmatprep.subr.mxu0 0.0
        %3182 = vmatpush1.msra.mxu0 %v3149
        %3183 = vmatprep.subr.mxu0 0.0
        %3184 = vmatpush1.msra.mxu0 %v3148
        %3185 = vmatprep.subr.mxu0 0.0
        %3186 = vmatpush1.msra.mxu0 %v3147
        %3187 = vmatprep.subr.mxu0 0.0
        %3188 = vmatpush2.msra.mxu0 0.0
        %3189 = vmatprep.subr.mxu0 0.0
        %3190 = vmatpush2.msra.mxu0 0.0
        %3191 = vmatprep.subr.mxu0 0.0
        %3192 = vmatpush2.msra.mxu0 0.0
        %3193 = vmatprep.subr.mxu0 0.0
        %3194 = vmatpush2.msra.mxu0 0.0
        %3195 = vmatprep.subr.mxu0 0.0
        %3196 = vmatpush2.msra.mxu0 0.0
        %3197 = vmatprep.subr.mxu0 0.0
        %3198 = vmatpush2.msra.mxu0 0.0
        %3199 = vmatprep.subr.mxu0 0.0
        %3200 = vmatpush2.msra.mxu0 0.0
        %3201 = vmatprep.subr.mxu0 0.0
        %3202 = vmatpush2.msra.mxu0 0.0
        %3203 = vmatprep.subr.mxu0 0.0
        %3204 = vmatpush2.msra.mxu0 0.0
        %3205 = vmatprep.subr.mxu0 0.0
        %3206 = vmatpush2.msra.mxu0 0.0
        %3207 = vmatprep.subr.mxu0 0.0
        %3208 = vmatpush2.msra.mxu0 0.0
        %3209 = vmatprep.subr.mxu0 0.0
        %3210 = vmatpush2.msra.mxu0 0.0
        %3211 = vmatprep.subr.mxu0 0.0
        %3212 = vmatpush2.msra.mxu0 0.0
        %3213 = vmatprep.subr.mxu0 0.0
        %3214 = vmatpush2.msra.mxu0 0.0
        %3215 = vmatprep.subr.mxu0 0.0
        %3216 = vmatpush2.msra.mxu0 0.0
        %3217 = vmatprep.subr.mxu0 0.0
        %3218 = vmatpush2.msra.mxu0 0.0
        %3219 = vmatprep.mubr.f32.mxu0 0.0
        %3220 = vmatmul.mubr.f32.gmra.mxu0 %v3153
        %v3221 = vpop.f32.mrf.mxu0
        %v3222 = vadd.f32 %v3151, %v3221
        %v3223 = vpop.f32.mrf.mxu0
        %3224 = vdwg.mxu0
        %s3225 = scalar_lea.vmem %s14, 32
        %v3226 = vld [vmem:[%s3225] sm:$0xff]
        %v3227 = vld [vmem:[%s3225 + $0x8] sm:$0xff]
        %v3228 = vld [vmem:[%s3225 + $0x10] sm:$0xff]
        %v3229 = vld [vmem:[%s3225 + $0x18] sm:$0xff]
        %s3230 = scalar_lea.vmem %s15, 1
        %v3231 = vld [vmem:[%s3230] sm:$0x1]
        %v3233 = vlaneseq
        %v3234 = vshrl.u32 %v3233, 7
        %v3235 = vsub.s32 0, %v3234
        %v3236 = vrot.slane %v3231, %v3235
        %3238 = vmatprep.subr.mxu0 0.0
        %3239 = vmatpush1.msra.mxu0 0.0
        %3240 = vmatprep.subr.mxu0 0.0
        %3241 = vmatpush1.msra.mxu0 0.0
        %3242 = vmatprep.subr.mxu0 0.0
        %3243 = vmatpush1.msra.mxu0 0.0
        %3244 = vmatprep.subr.mxu0 0.0
        %3245 = vmatpush1.msra.mxu0 0.0
        %3246 = vmatprep.subr.mxu0 0.0
        %3247 = vmatpush1.msra.mxu0 0.0
        %3248 = vmatprep.subr.mxu0 0.0
        %3249 = vmatpush1.msra.mxu0 0.0
        %3250 = vmatprep.subr.mxu0 0.0
        %3251 = vmatpush1.msra.mxu0 0.0
        %3252 = vmatprep.subr.mxu0 0.0
        %3253 = vmatpush1.msra.mxu0 0.0
        %3254 = vmatprep.subr.mxu0 0.0
        %3255 = vmatpush1.msra.mxu0 0.0
        %3256 = vmatprep.subr.mxu0 0.0
        %3257 = vmatpush1.msra.mxu0 0.0
        %3258 = vmatprep.subr.mxu0 0.0
        %3259 = vmatpush1.msra.mxu0 0.0
        %3260 = vmatprep.subr.mxu0 0.0
        %3261 = vmatpush1.msra.mxu0 0.0
        %3262 = vmatprep.subr.mxu0 0.0
        %3263 = vmatpush1.msra.mxu0 %v3229
        %3264 = vmatprep.subr.mxu0 0.0
        %3265 = vmatpush1.msra.mxu0 %v3228
        %3266 = vmatprep.subr.mxu0 0.0
        %3267 = vmatpush1.msra.mxu0 %v3227
        %3268 = vmatprep.subr.mxu0 0.0
        %3269 = vmatpush1.msra.mxu0 %v3226
        %3270 = vmatprep.subr.mxu0 0.0
        %3271 = vmatpush2.msra.mxu0 0.0
        %3272 = vmatprep.subr.mxu0 0.0
        %3273 = vmatpush2.msra.mxu0 0.0
        %3274 = vmatprep.subr.mxu0 0.0
        %3275 = vmatpush2.msra.mxu0 0.0
        %3276 = vmatprep.subr.mxu0 0.0
        %3277 = vmatpush2.msra.mxu0 0.0
        %3278 = vmatprep.subr.mxu0 0.0
        %3279 = vmatpush2.msra.mxu0 0.0
        %3280 = vmatprep.subr.mxu0 0.0
        %3281 = vmatpush2.msra.mxu0 0.0
        %3282 = vmatprep.subr.mxu0 0.0
        %3283 = vmatpush2.msra.mxu0 0.0
        %3284 = vmatprep.subr.mxu0 0.0
        %3285 = vmatpush2.msra.mxu0 0.0
        %3286 = vmatprep.subr.mxu0 0.0
        %3287 = vmatpush2.msra.mxu0 0.0
        %3288 = vmatprep.subr.mxu0 0.0
        %3289 = vmatpush2.msra.mxu0 0.0
        %3290 = vmatprep.subr.mxu0 0.0
        %3291 = vmatpush2.msra.mxu0 0.0
        %3292 = vmatprep.subr.mxu0 0.0
        %3293 = vmatpush2.msra.mxu0 0.0
        %3294 = vmatprep.subr.mxu0 0.0
        %3295 = vmatpush2.msra.mxu0 0.0
        %3296 = vmatprep.subr.mxu0 0.0
        %3297 = vmatpush2.msra.mxu0 0.0
        %3298 = vmatprep.subr.mxu0 0.0
        %3299 = vmatpush2.msra.mxu0 0.0
        %3300 = vmatprep.subr.mxu0 0.0
        %3301 = vmatpush2.msra.mxu0 0.0
        %3302 = vmatprep.mubr.f32.mxu0 0.0
        %3303 = vmatmul.mubr.f32.gmra.mxu0 %v3153
        %v3304 = vpop.f32.mrf.mxu0
        %v3305 = vadd.f32 %v3236, %v3304
        %v3306 = vpop.f32.mrf.mxu0
        %3307 = vdwg.mxu0
        %s3308 = scalar_lea.vmem %s14, 64
        %v3309 = vld [vmem:[%s3308] sm:$0xff]
        %v3310 = vld [vmem:[%s3308 + $0x8] sm:$0xff]
        %v3311 = vld [vmem:[%s3308 + $0x10] sm:$0xff]
        %v3312 = vld [vmem:[%s3308 + $0x18] sm:$0xff]
        %s3313 = scalar_lea.vmem %s15, 2
        %v3314 = vld [vmem:[%s3313] sm:$0x1]
        %v3316 = vlaneseq
        %v3317 = vshrl.u32 %v3316, 7
        %v3318 = vsub.s32 0, %v3317
        %v3319 = vrot.slane %v3314, %v3318
        %3321 = vmatprep.subr.mxu0 0.0
        %3322 = vmatpush1.msra.mxu0 0.0
        %3323 = vmatprep.subr.mxu0 0.0
        %3324 = vmatpush1.msra.mxu0 0.0
        %3325 = vmatprep.subr.mxu0 0.0
        %3326 = vmatpush1.msra.mxu0 0.0
        %3327 = vmatprep.subr.mxu0 0.0
        %3328 = vmatpush1.msra.mxu0 0.0
        %3329 = vmatprep.subr.mxu0 0.0
        %3330 = vmatpush1.msra.mxu0 0.0
        %3331 = vmatprep.subr.mxu0 0.0
        %3332 = vmatpush1.msra.mxu0 0.0
        %3333 = vmatprep.subr.mxu0 0.0
        %3334 = vmatpush1.msra.mxu0 0.0
        %3335 = vmatprep.subr.mxu0 0.0
        %3336 = vmatpush1.msra.mxu0 0.0
        %3337 = vmatprep.subr.mxu0 0.0
        %3338 = vmatpush1.msra.mxu0 0.0
        %3339 = vmatprep.subr.mxu0 0.0
        %3340 = vmatpush1.msra.mxu0 0.0
        %3341 = vmatprep.subr.mxu0 0.0
        %3342 = vmatpush1.msra.mxu0 0.0
        %3343 = vmatprep.subr.mxu0 0.0
        %3344 = vmatpush1.msra.mxu0 0.0
        %3345 = vmatprep.subr.mxu0 0.0
        %3346 = vmatpush1.msra.mxu0 %v3312
        %3347 = vmatprep.subr.mxu0 0.0
        %3348 = vmatpush1.msra.mxu0 %v3311
        %3349 = vmatprep.subr.mxu0 0.0
        %3350 = vmatpush1.msra.mxu0 %v3310
        %3351 = vmatprep.subr.mxu0 0.0
        %3352 = vmatpush1.msra.mxu0 %v3309
        %3353 = vmatprep.subr.mxu0 0.0
        %3354 = vmatpush2.msra.mxu0 0.0
        %3355 = vmatprep.subr.mxu0 0.0
        %3356 = vmatpush2.msra.mxu0 0.0
        %3357 = vmatprep.subr.mxu0 0.0
        %3358 = vmatpush2.msra.mxu0 0.0
        %3359 = vmatprep.subr.mxu0 0.0
        %3360 = vmatpush2.msra.mxu0 0.0
        %3361 = vmatprep.subr.mxu0 0.0
        %3362 = vmatpush2.msra.mxu0 0.0
        %3363 = vmatprep.subr.mxu0 0.0
        %3364 = vmatpush2.msra.mxu0 0.0
        %3365 = vmatprep.subr.mxu0 0.0
        %3366 = vmatpush2.msra.mxu0 0.0
        %3367 = vmatprep.subr.mxu0 0.0
        %3368 = vmatpush2.msra.mxu0 0.0
        %3369 = vmatprep.subr.mxu0 0.0
        %3370 = vmatpush2.msra.mxu0 0.0
        %3371 = vmatprep.subr.mxu0 0.0
        %3372 = vmatpush2.msra.mxu0 0.0
        %3373 = vmatprep.subr.mxu0 0.0
        %3374 = vmatpush2.msra.mxu0 0.0
        %3375 = vmatprep.subr.mxu0 0.0
        %3376 = vmatpush2.msra.mxu0 0.0
        %3377 = vmatprep.subr.mxu0 0.0
        %3378 = vmatpush2.msra.mxu0 0.0
        %3379 = vmatprep.subr.mxu0 0.0
        %3380 = vmatpush2.msra.mxu0 0.0
        %3381 = vmatprep.subr.mxu0 0.0
        %3382 = vmatpush2.msra.mxu0 0.0
        %3383 = vmatprep.subr.mxu0 0.0
        %3384 = vmatpush2.msra.mxu0 0.0
        %3385 = vmatprep.mubr.f32.mxu0 0.0
        %3386 = vmatmul.mubr.f32.gmra.mxu0 %v3153
        %v3387 = vpop.f32.mrf.mxu0
        %v3388 = vadd.f32 %v3319, %v3387
        %v3389 = vpop.f32.mrf.mxu0
        %3390 = vdwg.mxu0
        %v3392 = vsel %vm823, %v3222, 0
        %v3395 = vsel %vm823, %v3305, 0
        %3397 = vmatprep.subr.mxu0 0.0
        %3398 = vmatpush1.xpose.msra.mxu0 0.0
        %3399 = vmatprep.subr.mxu0 0.0
        %3400 = vmatpush1.xpose.msra.mxu0 0.0
        %3401 = vmatprep.subr.mxu0 0.0
        %3402 = vmatpush1.xpose.msra.mxu0 0.0
        %3403 = vmatprep.subr.mxu0 0.0
        %3404 = vmatpush1.xpose.msra.mxu0 0.0
        %3405 = vmatprep.subr.mxu0 0.0
        %3406 = vmatpush1.xpose.msra.mxu0 0.0
        %3407 = vmatprep.subr.mxu0 0.0
        %3408 = vmatpush1.xpose.msra.mxu0 0.0
        %3409 = vmatprep.subr.mxu0 0.0
        %3410 = vmatpush1.xpose.msra.mxu0 0.0
        %3411 = vmatprep.subr.mxu0 0.0
        %3412 = vmatpush1.xpose.msra.mxu0 0.0
        %3413 = vmatprep.subr.mxu0 0.0
        %3414 = vmatpush1.xpose.msra.mxu0 0.0
        %3415 = vmatprep.subr.mxu0 0.0
        %3416 = vmatpush1.xpose.msra.mxu0 0.0
        %3417 = vmatprep.subr.mxu0 0.0
        %3418 = vmatpush1.xpose.msra.mxu0 0.0
        %3419 = vmatprep.subr.mxu0 0.0
        %3420 = vmatpush1.xpose.msra.mxu0 0.0
        %3421 = vmatprep.subr.mxu0 0.0
        %3422 = vmatpush1.xpose.msra.mxu0 0.0
        %3423 = vmatprep.subr.mxu0 0.0
        %3424 = vmatpush1.xpose.msra.mxu0 0.0
        %3425 = vmatprep.subr.mxu0 0.0
        %3426 = vmatpush1.xpose.msra.mxu0 0.0
        %3427 = vmatprep.subr.mxu0 0.0
        %3428 = vmatpush1.xpose.msra.mxu0 %v3395
        %3429 = vmatprep.subr.mxu0 0.0
        %3430 = vmatpush2.xpose.msra.mxu0 0.0
        %3431 = vmatprep.subr.mxu0 0.0
        %3432 = vmatpush2.xpose.msra.mxu0 0.0
        %3433 = vmatprep.subr.mxu0 0.0
        %3434 = vmatpush2.xpose.msra.mxu0 0.0
        %3435 = vmatprep.subr.mxu0 0.0
        %3436 = vmatpush2.xpose.msra.mxu0 0.0
        %3437 = vmatprep.subr.mxu0 0.0
        %3438 = vmatpush2.xpose.msra.mxu0 0.0
        %3439 = vmatprep.subr.mxu0 0.0
        %3440 = vmatpush2.xpose.msra.mxu0 0.0
        %3441 = vmatprep.subr.mxu0 0.0
        %3442 = vmatpush2.xpose.msra.mxu0 0.0
        %3443 = vmatprep.subr.mxu0 0.0
        %3444 = vmatpush2.xpose.msra.mxu0 0.0
        %3445 = vmatprep.subr.mxu0 0.0
        %3446 = vmatpush2.xpose.msra.mxu0 0.0
        %3447 = vmatprep.subr.mxu0 0.0
        %3448 = vmatpush2.xpose.msra.mxu0 0.0
        %3449 = vmatprep.subr.mxu0 0.0
        %3450 = vmatpush2.xpose.msra.mxu0 0.0
        %3451 = vmatprep.subr.mxu0 0.0
        %3452 = vmatpush2.xpose.msra.mxu0 0.0
        %3453 = vmatprep.subr.mxu0 0.0
        %3454 = vmatpush2.xpose.msra.mxu0 0.0
        %3455 = vmatprep.subr.mxu0 0.0
        %3456 = vmatpush2.xpose.msra.mxu0 0.0
        %3457 = vmatprep.subr.mxu0 0.0
        %3458 = vmatpush2.xpose.msra.mxu0 0.0
        %3459 = vmatprep.subr.mxu0 0.0
        %3460 = vmatpush2.xpose.msra.mxu0 0.0
        %3461 = vmatprep.mubr.f32.mxu0 0.0
        %3462 = vmatmul.mubr.f32.gmra.mxu0 %v3392
        %v3463 = vpop.f32.mrf.mxu0
        %v3464 = vadd.f32 0.0, %v3463
        %v3465 = vpop.f32.mrf.mxu0
        %3466 = vdwg.mxu0
        %v3467 = vmul.f32 %v3464, 0.17677669
        %vm3468 = vcmask 16384
        %v3469 = vsel %vm3468, %v3467, -inf
        %3470 = vmax.xlane.f32.xlu0 %v3469
        %v3471 = vpop.xlane.xlu0 %3470
        %v3472 = vsub.f32 %v3467, %v3471
        %v3473 = vmul.f32 %v3472, 1.442695
        %v3474 = vpow.pop %v3473
        %v3475 = vsel %vm3468, %v3474, 0.0
        %3476 = vadd.xlane.f32.xlu0 %v3475
        %v3477 = vpop.xlane.xlu0 %3476
        %v3478 = vrcp.pop %v3477
        %v3479 = vmul.f32 %v3474, %v3478
        %vm3480 = vcmask 23552
        %v3482 = vsel %vm3480, %v3479, 0
        %vm3484 = vcmask 1042432
        %v3486 = vsel %vm3484, %v3388, 0
        %3488 = vmatprep.subr.mxu0 0.0
        %3489 = vmatpush1.msra.mxu0 0.0
        %3490 = vmatprep.subr.mxu0 0.0
        %3491 = vmatpush1.msra.mxu0 0.0
        %3492 = vmatprep.subr.mxu0 0.0
        %3493 = vmatpush1.msra.mxu0 0.0
        %3494 = vmatprep.subr.mxu0 0.0
        %3495 = vmatpush1.msra.mxu0 0.0
        %3496 = vmatprep.subr.mxu0 0.0
        %3497 = vmatpush1.msra.mxu0 0.0
        %3498 = vmatprep.subr.mxu0 0.0
        %3499 = vmatpush1.msra.mxu0 0.0
        %3500 = vmatprep.subr.mxu0 0.0
        %3501 = vmatpush1.msra.mxu0 0.0
        %3502 = vmatprep.subr.mxu0 0.0
        %3503 = vmatpush1.msra.mxu0 0.0
        %3504 = vmatprep.subr.mxu0 0.0
        %3505 = vmatpush1.msra.mxu0 0.0
        %3506 = vmatprep.subr.mxu0 0.0
        %3507 = vmatpush1.msra.mxu0 0.0
        %3508 = vmatprep.subr.mxu0 0.0
        %3509 = vmatpush1.msra.mxu0 0.0
        %3510 = vmatprep.subr.mxu0 0.0
        %3511 = vmatpush1.msra.mxu0 0.0
        %3512 = vmatprep.subr.mxu0 0.0
        %3513 = vmatpush1.msra.mxu0 0.0
        %3514 = vmatprep.subr.mxu0 0.0
        %3515 = vmatpush1.msra.mxu0 0.0
        %3516 = vmatprep.subr.mxu0 0.0
        %3517 = vmatpush1.msra.mxu0 0.0
        %3518 = vmatprep.subr.mxu0 0.0
        %3519 = vmatpush1.msra.mxu0 %v3486
        %3520 = vmatprep.subr.mxu0 0.0
        %3521 = vmatpush2.msra.mxu0 0.0
        %3522 = vmatprep.subr.mxu0 0.0
        %3523 = vmatpush2.msra.mxu0 0.0
        %3524 = vmatprep.subr.mxu0 0.0
        %3525 = vmatpush2.msra.mxu0 0.0
        %3526 = vmatprep.subr.mxu0 0.0
        %3527 = vmatpush2.msra.mxu0 0.0
        %3528 = vmatprep.subr.mxu0 0.0
        %3529 = vmatpush2.msra.mxu0 0.0
        %3530 = vmatprep.subr.mxu0 0.0
        %3531 = vmatpush2.msra.mxu0 0.0
        %3532 = vmatprep.subr.mxu0 0.0
        %3533 = vmatpush2.msra.mxu0 0.0
        %3534 = vmatprep.subr.mxu0 0.0
        %3535 = vmatpush2.msra.mxu0 0.0
        %3536 = vmatprep.subr.mxu0 0.0
        %3537 = vmatpush2.msra.mxu0 0.0
        %3538 = vmatprep.subr.mxu0 0.0
        %3539 = vmatpush2.msra.mxu0 0.0
        %3540 = vmatprep.subr.mxu0 0.0
        %3541 = vmatpush2.msra.mxu0 0.0
        %3542 = vmatprep.subr.mxu0 0.0
        %3543 = vmatpush2.msra.mxu0 0.0
        %3544 = vmatprep.subr.mxu0 0.0
        %3545 = vmatpush2.msra.mxu0 0.0
        %3546 = vmatprep.subr.mxu0 0.0
        %3547 = vmatpush2.msra.mxu0 0.0
        %3548 = vmatprep.subr.mxu0 0.0
        %3549 = vmatpush2.msra.mxu0 0.0
        %3550 = vmatprep.subr.mxu0 0.0
        %3551 = vmatpush2.msra.mxu0 0.0
        %3552 = vmatprep.mubr.f32.mxu0 0.0
        %3553 = vmatmul.mubr.f32.gmra.mxu0 %v3482
        %v3554 = vpop.f32.mrf.mxu0
        %v3555 = vadd.f32 0.0, %v3554
        %v3556 = vpop.f32.mrf.mxu0
        %3557 = vdwg.mxu0
        %s3558 = scalar_lea.vmem %s14, 96
        %v3559 = vld [vmem:[%s3558] sm:$0xff]
        %v3560 = vld [vmem:[%s3558 + $0x8] sm:$0xff]
        %v3561 = vld [vmem:[%s3558 + $0x10] sm:$0xff]
        %v3562 = vld [vmem:[%s3558 + $0x18] sm:$0xff]
        %s3563 = scalar_lea.vmem %s15, 3
        %v3564 = vld [vmem:[%s3563] sm:$0x1]
        %v3566 = vsel %vm823, %v3555, 0
        %3568 = vmatprep.subr.mxu0 0.0
        %3569 = vmatpush1.msra.mxu0 0.0
        %3570 = vmatprep.subr.mxu0 0.0
        %3571 = vmatpush1.msra.mxu0 0.0
        %3572 = vmatprep.subr.mxu0 0.0
        %3573 = vmatpush1.msra.mxu0 0.0
        %3574 = vmatprep.subr.mxu0 0.0
        %3575 = vmatpush1.msra.mxu0 0.0
        %3576 = vmatprep.subr.mxu0 0.0
        %3577 = vmatpush1.msra.mxu0 0.0
        %3578 = vmatprep.subr.mxu0 0.0
        %3579 = vmatpush1.msra.mxu0 0.0
        %3580 = vmatprep.subr.mxu0 0.0
        %3581 = vmatpush1.msra.mxu0 0.0
        %3582 = vmatprep.subr.mxu0 0.0
        %3583 = vmatpush1.msra.mxu0 0.0
        %3584 = vmatprep.subr.mxu0 0.0
        %3585 = vmatpush1.msra.mxu0 0.0
        %3586 = vmatprep.subr.mxu0 0.0
        %3587 = vmatpush1.msra.mxu0 0.0
        %3588 = vmatprep.subr.mxu0 0.0
        %3589 = vmatpush1.msra.mxu0 0.0
        %3590 = vmatprep.subr.mxu0 0.0
        %3591 = vmatpush1.msra.mxu0 0.0
        %3592 = vmatprep.subr.mxu0 0.0
        %3593 = vmatpush1.msra.mxu0 %v3562
        %3594 = vmatprep.subr.mxu0 0.0
        %3595 = vmatpush1.msra.mxu0 %v3561
        %3596 = vmatprep.subr.mxu0 0.0
        %3597 = vmatpush1.msra.mxu0 %v3560
        %3598 = vmatprep.subr.mxu0 0.0
        %3599 = vmatpush1.msra.mxu0 %v3559
        %3600 = vmatprep.subr.mxu0 0.0
        %3601 = vmatpush2.msra.mxu0 0.0
        %3602 = vmatprep.subr.mxu0 0.0
        %3603 = vmatpush2.msra.mxu0 0.0
        %3604 = vmatprep.subr.mxu0 0.0
        %3605 = vmatpush2.msra.mxu0 0.0
        %3606 = vmatprep.subr.mxu0 0.0
        %3607 = vmatpush2.msra.mxu0 0.0
        %3608 = vmatprep.subr.mxu0 0.0
        %3609 = vmatpush2.msra.mxu0 0.0
        %3610 = vmatprep.subr.mxu0 0.0
        %3611 = vmatpush2.msra.mxu0 0.0
        %3612 = vmatprep.subr.mxu0 0.0
        %3613 = vmatpush2.msra.mxu0 0.0
        %3614 = vmatprep.subr.mxu0 0.0
        %3615 = vmatpush2.msra.mxu0 0.0
        %3616 = vmatprep.subr.mxu0 0.0
        %3617 = vmatpush2.msra.mxu0 0.0
        %3618 = vmatprep.subr.mxu0 0.0
        %3619 = vmatpush2.msra.mxu0 0.0
        %3620 = vmatprep.subr.mxu0 0.0
        %3621 = vmatpush2.msra.mxu0 0.0
        %3622 = vmatprep.subr.mxu0 0.0
        %3623 = vmatpush2.msra.mxu0 0.0
        %3624 = vmatprep.subr.mxu0 0.0
        %3625 = vmatpush2.msra.mxu0 0.0
        %3626 = vmatprep.subr.mxu0 0.0
        %3627 = vmatpush2.msra.mxu0 0.0
        %3628 = vmatprep.subr.mxu0 0.0
        %3629 = vmatpush2.msra.mxu0 0.0
        %3630 = vmatprep.subr.mxu0 0.0
        %3631 = vmatpush2.msra.mxu0 0.0
        %3632 = vmatprep.mubr.f32.mxu0 0.0
        %3633 = vmatmul.mubr.f32.gmra.mxu0 %v3566
        %v3634 = vpop.f32.mrf.mxu0
        %v3635 = vadd.f32 %v3564, %v3634
        %v3636 = vpop.f32.mrf.mxu0
        %3637 = vdwg.mxu0
        %vm3638 = vcmask 253952
        %3639 = vst.msk [vmem:[%s598] sm:$0x1] %vm3638, %v3635
        %v3640 = vld [vmem:[%s16] sm:$0xff]
        %v3641 = vld [vmem:[%s16 + $0x8] sm:$0xff]
        %v3642 = vld [vmem:[%s16 + $0x10] sm:$0xff]
        %v3643 = vld [vmem:[%s16 + $0x18] sm:$0xff]
        %v3644 = vld [vmem:[%s17] sm:$0x1]
        %v3646 = vsel %vm823, %v3635, 0
        %3648 = vmatprep.subr.mxu0 0.0
        %3649 = vmatpush1.msra.mxu0 0.0
        %3650 = vmatprep.subr.mxu0 0.0
        %3651 = vmatpush1.msra.mxu0 0.0
        %3652 = vmatprep.subr.mxu0 0.0
        %3653 = vmatpush1.msra.mxu0 0.0
        %3654 = vmatprep.subr.mxu0 0.0
        %3655 = vmatpush1.msra.mxu0 0.0
        %3656 = vmatprep.subr.mxu0 0.0
        %3657 = vmatpush1.msra.mxu0 0.0
        %3658 = vmatprep.subr.mxu0 0.0
        %3659 = vmatpush1.msra.mxu0 0.0
        %3660 = vmatprep.subr.mxu0 0.0
        %3661 = vmatpush1.msra.mxu0 0.0
        %3662 = vmatprep.subr.mxu0 0.0
        %3663 = vmatpush1.msra.mxu0 0.0
        %3664 = vmatprep.subr.mxu0 0.0
        %3665 = vmatpush1.msra.mxu0 0.0
        %3666 = vmatprep.subr.mxu0 0.0
        %3667 = vmatpush1.msra.mxu0 0.0
        %3668 = vmatprep.subr.mxu0 0.0
        %3669 = vmatpush1.msra.mxu0 0.0
        %3670 = vmatprep.subr.mxu0 0.0
        %3671 = vmatpush1.msra.mxu0 0.0
        %3672 = vmatprep.subr.mxu0 0.0
        %3673 = vmatpush1.msra.mxu0 %v3643
        %3674 = vmatprep.subr.mxu0 0.0
        %3675 = vmatpush1.msra.mxu0 %v3642
        %3676 = vmatprep.subr.mxu0 0.0
        %3677 = vmatpush1.msra.mxu0 %v3641
        %3678 = vmatprep.subr.mxu0 0.0
        %3679 = vmatpush1.msra.mxu0 %v3640
        %3680 = vmatprep.subr.mxu0 0.0
        %3681 = vmatpush2.msra.mxu0 0.0
        %3682 = vmatprep.subr.mxu0 0.0
        %3683 = vmatpush2.msra.mxu0 0.0
        %3684 = vmatprep.subr.mxu0 0.0
        %3685 = vmatpush2.msra.mxu0 0.0
        %3686 = vmatprep.subr.mxu0 0.0
        %3687 = vmatpush2.msra.mxu0 0.0
        %3688 = vmatprep.subr.mxu0 0.0
        %3689 = vmatpush2.msra.mxu0 0.0
        %3690 = vmatprep.subr.mxu0 0.0
        %3691 = vmatpush2.msra.mxu0 0.0
        %3692 = vmatprep.subr.mxu0 0.0
        %3693 = vmatpush2.msra.mxu0 0.0
        %3694 = vmatprep.subr.mxu0 0.0
        %3695 = vmatpush2.msra.mxu0 0.0
        %3696 = vmatprep.subr.mxu0 0.0
        %3697 = vmatpush2.msra.mxu0 0.0
        %3698 = vmatprep.subr.mxu0 0.0
        %3699 = vmatpush2.msra.mxu0 0.0
        %3700 = vmatprep.subr.mxu0 0.0
        %3701 = vmatpush2.msra.mxu0 0.0
        %3702 = vmatprep.subr.mxu0 0.0
        %3703 = vmatpush2.msra.mxu0 0.0
        %3704 = vmatprep.subr.mxu0 0.0
        %3705 = vmatpush2.msra.mxu0 0.0
        %3706 = vmatprep.subr.mxu0 0.0
        %3707 = vmatpush2.msra.mxu0 0.0
        %3708 = vmatprep.subr.mxu0 0.0
        %3709 = vmatpush2.msra.mxu0 0.0
        %3710 = vmatprep.subr.mxu0 0.0
        %3711 = vmatpush2.msra.mxu0 0.0
        %3712 = vmatprep.mubr.f32.mxu0 0.0
        %3713 = vmatmul.mubr.f32.gmra.mxu0 %v3646
        %v3714 = vpop.f32.mrf.mxu0
        %v3715 = vadd.f32 %v3644, %v3714
        %v3716 = vpop.f32.mrf.mxu0
        %3717 = vdwg.mxu0
        %vm3718 = vcmask 8192
        %3719 = vst.msk [vmem:[%s604] sm:$0x1] %vm3718, %v3715
        %s3720 = sand.u32 %s428, 1
        %s3721 = scalar_lea.sflag [#allocation3], %s3720
        %s3722 = sand.u32 %s428, 1
        %s3723 = scalar_lea.vmem [#allocation2], %s3722
        %s3724 = sand.u32 %s454, 1
        %s3725 = scalar_lea.sflag [#allocation5], %s3724
        %s3726 = sand.u32 %s454, 1
        %s3727 = scalar_lea.vmem [#allocation4], %s3726
        // Predicated region
        $region93: #{vitdino_forward.1} parent=91 // pred_check
          %p3728 = pneg %p438
        $region94: #{vitdino_forward.1} parent=91 // pred_check_branch
          %3730 = sbr.rel (%p3728) target = $region96
        $region95: #{vitdino_forward.1} parent=91 // pred_region
          %s3732 = ssub.s32 16, 16
          %3733 = vsyncadd %s3721, %s3732
          %s3734 = smul.addr %s37, 16
          %s3735 = scalar_lea.hbm %s18, %s3734
          %s3737 = sshll.u32 %s3723, 4
          %s3738 = int_to_ptr.vmem [resolvable:$true] %s3737
          %3740 = dma.vmem_to_hbm [thread:$0]  %s3738, 16, %s3735, %s3721
        $region96: #{vitdino_forward.1} parent=91 // pred_fallthru
          _
        // Predicated region
        $region97: #{vitdino_forward.1} parent=91 // pred_check
          %p3741 = pneg %p464
        $region98: #{vitdino_forward.1} parent=91 // pred_check_branch
          %3743 = sbr.rel (%p3741) target = $region100
        $region99: #{vitdino_forward.1} parent=91 // pred_region
          %s3745 = ssub.s32 16, 16
          %3746 = vsyncadd %s3725, %s3745
          %s3747 = smul.addr %s37, 16
          %s3748 = scalar_lea.hbm %s19, %s3747
          %s3750 = sshll.u32 %s3727, 4
          %s3751 = int_to_ptr.vmem [resolvable:$true] %s3750
          %3753 = dma.vmem_to_hbm [thread:$0]  %s3751, 16, %s3748, %s3725
        $region100: #{vitdino_forward.1} parent=91 // pred_fallthru
          _
      $region92: #{vitdino_forward.1} parent=5 // pred_fallthru
        _
      %p3754 = scmp.le.s32.totalorder 2, %s32
      // Predicated region
      $region101: #{vitdino_forward.1} parent=5 // pred_check
        %p3755 = pneg %p3754
      $region102: #{vitdino_forward.1} parent=5 // pred_check_branch
        %3757 = sbr.rel (%p3755) target = $region104
      $region103: #{vitdino_forward.1} parent=5 // pred_region
        %s3758 = ssub.s32 %s32, 2
        // Predicated region
        $region105: #{vitdino_forward.1} parent=103 // pred_check
          %p3759 = pneg %p444
        $region106: #{vitdino_forward.1} parent=103 // pred_check_branch
          %3761 = sbr.rel (%p3759) target = $region108
        $region107: #{vitdino_forward.1} parent=103 // pred_region
          %s3762 = sand.u32 %s429, 1
          %s3763 = scalar_lea.sflag [#allocation3], %s3762
          %s3764 = sand.u32 %s429, 1
          %s3765 = scalar_lea.vmem [#allocation2], %s3764
          %3766 = dma.done %s3763, 16
        $region108: #{vitdino_forward.1} parent=103 // pred_fallthru
          _
        // Predicated region
        $region109: #{vitdino_forward.1} parent=103 // pred_check
          %p3767 = pneg %p470
        $region110: #{vitdino_forward.1} parent=103 // pred_check_branch
          %3769 = sbr.rel (%p3767) target = $region112
        $region111: #{vitdino_forward.1} parent=103 // pred_region
          %s3770 = sand.u32 %s455, 1
          %s3771 = scalar_lea.sflag [#allocation5], %s3770
          %s3772 = sand.u32 %s455, 1
          %s3773 = scalar_lea.vmem [#allocation4], %s3772
          %3774 = dma.done %s3771, 16
        $region112: #{vitdino_forward.1} parent=103 // pred_fallthru
          _
      $region104: #{vitdino_forward.1} parent=5 // pred_fallthru
        _
    $region6: #{vitdino_forward.1} parent=1 // loop_footer
      %s36 = sadd.s32 1, %s32
    $region7: #{vitdino_forward.1} parent=1 // loop_footer_branch
      %31 = sbr.rel target = $region3
    $region8: #{vitdino_forward.1} parent=1 // loop_exit
      _
    %3775 = vsyncpa [#allocation3], 1
    %s3776 = scalar_lea.sflag [#allocation3], 1
    %3777 = vsyncpa %s3776, 1
    %3778 = vsyncpa [#allocation5], 1
    %s3779 = scalar_lea.sflag [#allocation5], 1
    %3780 = vsyncpa %s3779, 1

</llo_original>
